<compile_context>
chip_gen: v5e
topology: v5e:2x2
jax: 0.10.0
libtpu: 0.0.40
codegen_flags: <defaults>
</compile_context>

<pallas_src>
import functools

import jax
import jax.numpy as jnp
from jax.experimental import pallas as pl
from jax.experimental.pallas import tpu as pltpu

_HIDDEN_DIMS = (128, 256, 512, 1024, 512, 256, 128)
_MIN_GRID_STEPS = 2  # keep both v7x TensorCores fed; ~0.35us extra on single-TC chips


def _round_up(n, m):
    return ((n + m - 1) // m) * m


# --------------------------------------------------------------------------- kernel
def _mlp_kernel(x_ref, *refs):
    """Fused 8-layer MLP on one batch tile.

    x_ref : (tile, D)   f32 activations (cast to bf16 in-kernel)
    refs  : w1, b1, ..., w8, b8, o_ref
            w_l : (in_l, out_l) bf16, b_l : (1, out_l) f32, o_ref : (tile, D) f32
    """
    o_ref = refs[-1]
    wb_refs = refs[:-1]
    n_layers = len(wb_refs) // 2

    h = x_ref[...].astype(jnp.bfloat16)  # cast once in VMEM; no bf16 x copy in HBM
    for l in range(n_layers):
        w_ref = wb_refs[2 * l]
        b_ref = wb_refs[2 * l + 1]
        # bf16 x bf16 -> f32 accumulate on the MXU.
        y = jnp.dot(h, w_ref[...], preferred_element_type=jnp.float32)
        y = y + b_ref[...]                 # (1, out) broadcast over the batch tile (f32)
        if l < n_layers - 1:
            y = jnp.maximum(y, 0.0)        # ReLU; dropout == identity (eval mode)
            h = y.astype(jnp.bfloat16)     # feed next MXU pass in bf16
        else:
            h = y
    o_ref[...] = h.astype(o_ref.dtype)


# ------------------------------------------------------------------ cached pallas_call
@functools.lru_cache(maxsize=None)
def _build_call(n_steps, tile, d, w_shapes, out_dtype_name):
    out_dtype = jnp.dtype(out_dtype_name)
    b_pad = n_steps * tile

    wb_specs = []
    for (kin, kout) in w_shapes:
        # Constant (0, 0) index_map -> block stays resident; no per-step re-DMA.
        wb_specs.append(pl.BlockSpec((kin, kout), lambda i: (0, 0)))
        wb_specs.append(pl.BlockSpec((1, kout), lambda i: (0, 0)))

    flops = int(2 * b_pad * sum(kin * kout for kin, kout in w_shapes))
    w_bytes = sum(kin * kout * 2 + kout * 4 for kin, kout in w_shapes)
    bytes_accessed = int(w_bytes + b_pad * d * 4 + b_pad * d * out_dtype.itemsize)

    grid_spec = pltpu.PrefetchScalarGridSpec(
        num_scalar_prefetch=0,
        grid=(n_steps,),
        in_specs=[pl.BlockSpec((tile, d), lambda i: (i, 0))] + wb_specs,
        out_specs=pl.BlockSpec((tile, d), lambda i: (i, 0)),
    )
    return pl.pallas_call(
        _mlp_kernel,
        out_shape=jax.ShapeDtypeStruct((b_pad, d), out_dtype),
        grid_spec=grid_spec,
        compiler_params=pltpu.CompilerParams(
            dimension_semantics=("parallel",),   # batch tiles shard across TCs (v7x)
            vmem_limit_bytes=48 << 20,           # <= 64 MiB physical VMEM on v7x
        ),
        cost_estimate=pl.CostEstimate(
            flops=flops, transcendentals=0, bytes_accessed=bytes_accessed),
    )


# ----------------------------------------------------------------------------- wrapper
def _plan_tiling(batch, batch_tile):
    """n grid steps, per-step tile (multiple of 8), padded batch = n * tile."""
    b8 = _round_up(max(batch, 1), 8)
    n = pl.cdiv(b8, batch_tile)
    if n < _MIN_GRID_STEPS and b8 >= _MIN_GRID_STEPS * 8:
        n = _MIN_GRID_STEPS               # megacore: never collapse to a single step
    tile = _round_up(-(-batch // n), 8)   # ceil(B / n) rounded up to a sublane multiple
    return n, tile, n * tile


def prepare_params(params):
    """One-time conversion: W -> [in, out] bf16, bias -> (1, out) f32."""
    prepared = []
    for w_t, b in params:
        prepared.append((jnp.asarray(w_t, jnp.bfloat16),
                         jnp.asarray(b, jnp.float32).reshape(1, -1)))
    return tuple(prepared)


def _forward(x, prepared_params, *, batch_tile=512):
    B, D = x.shape
    n, tile, b_pad = _plan_tiling(B, batch_tile)

    x_in = x if b_pad == B else jnp.pad(x, ((0, b_pad - B), (0, 0)))

    weight_args = []
    w_shapes = []
    for w, b in prepared_params:
        weight_args += [w, b]
        w_shapes.append((int(w.shape[0]), int(w.shape[1])))

    fn = _build_call(n, tile, D, tuple(w_shapes), jnp.dtype(x.dtype).name)
    out = fn(x_in, *weight_args)
    return out[:B]


deep_matrix_net = jax.jit(_forward, static_argnames=("batch_tile",))


# ----------------------------------------------------------------------- init / refs
def init_params(key, input_size):
    """Deterministic init mimicking nn.Linear default (uniform(-1/sqrt(in), 1/sqrt(in)))."""
    dims = [input_size] + list(_HIDDEN_DIMS) + [input_size]
    params = []
    for i in range(8):
        fan_in, fan_out = dims[i], dims[i + 1]
        key, kw, kb = jax.random.split(key, 3)
        bound = 1.0 / (fan_in ** 0.5)
        # PyTorch stores W as [out, in]; we keep the transposed [in, out] layout.
        w_t = jax.random.uniform(kw, (fan_in, fan_out), jnp.float32, -bound, bound)
        b = jax.random.uniform(kb, (fan_out,), jnp.float32, -bound, bound)
        params.append((w_t, b))
    return params


def reference_f32(x, params):
    """Pure-JAX f32 reference of the PyTorch forward (dropout = identity)."""
    h = x
    for idx, (w_t, b) in enumerate(params):
        h = h @ w_t + b
        if idx < 7:
            h = jnp.maximum(h, 0.0)
    return h


def reference_bf16(x, params):
    """Pure-JAX reference using the same bf16-matmul / f32-accumulate recipe as the kernel."""
    h = x.astype(jnp.bfloat16)
    for idx, (w_t, b) in enumerate(params):
        y = jnp.dot(h, w_t.astype(jnp.bfloat16), preferred_element_type=jnp.float32)
        y = y + b.astype(jnp.float32)
        if idx < 7:
            y = jnp.maximum(y, 0.0)
            h = y.astype(jnp.bfloat16)
        else:
            h = y
    return h


if __name__ == "__main__":
    key = jax.random.PRNGKey(0)
    input_size = 128   # lane-aligned; hidden dims are fixed by the module (128..1024)
    batch = 16         # small; tiling plan -> 2 parallel grid steps of 8 rows, zero pad waste

    params = init_params(key, input_size)
    prepared = prepare_params(params)

    key, kx = jax.random.split(key)
    x = jax.random.normal(kx, (batch, input_size), jnp.float32)

    out = deep_matrix_net(x, prepared)
    out = jax.block_until_ready(out)
    assert out.shape == (batch, input_size)

    # Exact-recipe check (kernel vs bf16/f32-accumulate reference): should be near-bitwise.
    ref_b = reference_bf16(x, params)
    assert jnp.allclose(out, ref_b, atol=2e-3, rtol=2e-3), "mismatch vs bf16 reference"

    # Sanity check vs the full-f32 PyTorch-equivalent forward (looser: bf16 matmul inputs).
    ref_f = reference_f32(x, params)
    assert jnp.allclose(out, ref_f, atol=1e-2, rtol=5e-2), "mismatch vs f32 reference"

    print("KERNEL_OK")
</pallas_src>

<mosaic_0001>
module attributes {stable_mosaic.version = 11 : i64} {
  func.func @_mlp_kernel(%arg0: i32, %arg1: memref<8x128xf32, #tpu.memory_space<vmem>>, %arg2: memref<128x128xbf16, #tpu.memory_space<vmem>>, %arg3: memref<1x128xf32, #tpu.memory_space<vmem>>, %arg4: memref<128x256xbf16, #tpu.memory_space<vmem>>, %arg5: memref<1x256xf32, #tpu.memory_space<vmem>>, %arg6: memref<256x512xbf16, #tpu.memory_space<vmem>>, %arg7: memref<1x512xf32, #tpu.memory_space<vmem>>, %arg8: memref<512x1024xbf16, #tpu.memory_space<vmem>>, %arg9: memref<1x1024xf32, #tpu.memory_space<vmem>>, %arg10: memref<1024x512xbf16, #tpu.memory_space<vmem>>, %arg11: memref<1x512xf32, #tpu.memory_space<vmem>>, %arg12: memref<512x256xbf16, #tpu.memory_space<vmem>>, %arg13: memref<1x256xf32, #tpu.memory_space<vmem>>, %arg14: memref<256x128xbf16, #tpu.memory_space<vmem>>, %arg15: memref<1x128xf32, #tpu.memory_space<vmem>>, %arg16: memref<128x128xbf16, #tpu.memory_space<vmem>>, %arg17: memref<1x128xf32, #tpu.memory_space<vmem>>, %arg18: memref<8x128xf32, #tpu.memory_space<vmem>>) attributes {dimension_semantics = [#tpu.dimension_semantics<parallel>], iteration_bounds = array<i64: 2>, scalar_prefetch = 0 : i64, scratch_operands = 0 : i64, tpu.core_type = #tpu.core_type<tc>, window_params = [{transform_indices = @transform_0, window_bounds = array<i64: 8, 128>}, {pipeline_mode = #tpu.pipeline_mode<synchronous>, transform_indices = @transform_1, window_bounds = array<i64: 128, 128>}, {pipeline_mode = #tpu.pipeline_mode<synchronous>, transform_indices = @transform_2, window_bounds = array<i64: 1, 128>}, {pipeline_mode = #tpu.pipeline_mode<synchronous>, transform_indices = @transform_3, window_bounds = array<i64: 128, 256>}, {pipeline_mode = #tpu.pipeline_mode<synchronous>, transform_indices = @transform_4, window_bounds = array<i64: 1, 256>}, {pipeline_mode = #tpu.pipeline_mode<synchronous>, transform_indices = @transform_5, window_bounds = array<i64: 256, 512>}, {pipeline_mode = #tpu.pipeline_mode<synchronous>, transform_indices = @transform_6, window_bounds = array<i64: 1, 512>}, {pipeline_mode = #tpu.pipeline_mode<synchronous>, transform_indices = @transform_7, window_bounds = array<i64: 512, 1024>}, {pipeline_mode = #tpu.pipeline_mode<synchronous>, transform_indices = @transform_8, window_bounds = array<i64: 1, 1024>}, {pipeline_mode = #tpu.pipeline_mode<synchronous>, transform_indices = @transform_9, window_bounds = array<i64: 1024, 512>}, {pipeline_mode = #tpu.pipeline_mode<synchronous>, transform_indices = @transform_10, window_bounds = array<i64: 1, 512>}, {pipeline_mode = #tpu.pipeline_mode<synchronous>, transform_indices = @transform_11, window_bounds = array<i64: 512, 256>}, {pipeline_mode = #tpu.pipeline_mode<synchronous>, transform_indices = @transform_12, window_bounds = array<i64: 1, 256>}, {pipeline_mode = #tpu.pipeline_mode<synchronous>, transform_indices = @transform_13, window_bounds = array<i64: 256, 128>}, {pipeline_mode = #tpu.pipeline_mode<synchronous>, transform_indices = @transform_14, window_bounds = array<i64: 1, 128>}, {pipeline_mode = #tpu.pipeline_mode<synchronous>, transform_indices = @transform_15, window_bounds = array<i64: 128, 128>}, {pipeline_mode = #tpu.pipeline_mode<synchronous>, transform_indices = @transform_16, window_bounds = array<i64: 1, 128>}, {transform_indices = @transform_17, window_bounds = array<i64: 8, 128>}]} {
    %c0 = arith.constant 0 : index
    %c0_0 = arith.constant 0 : index
    %0 = vector.load %arg1[%c0, %c0_0] : memref<8x128xf32, #tpu.memory_space<vmem>>, vector<8x128xf32>
    %1 = arith.truncf %0 : vector<8x128xf32> to vector<8x128xbf16>
    %c0_1 = arith.constant 0 : index
    %c0_2 = arith.constant 0 : index
    %2 = vector.load %arg2[%c0_1, %c0_2] : memref<128x128xbf16, #tpu.memory_space<vmem>>, vector<128x128xbf16>
    %cst = arith.constant dense<0.000000e+00> : vector<8x128xf32>
    %3 = tpu.matmul %1, %2, %cst {dimension_numbers = #tpu.dot_dimension_numbers<[1], [0], [0], [1], [0, 0, 1, 1], [], []>} : vector<8x128xbf16>, vector<128x128xbf16>, vector<8x128xf32> -> vector<8x128xf32>
    %c0_3 = arith.constant 0 : index
    %c0_4 = arith.constant 0 : index
    %4 = vector.load %arg3[%c0_3, %c0_4] : memref<1x128xf32, #tpu.memory_space<vmem>>, vector<1x128xf32>
    %5 = vector.broadcast %4 : vector<1x128xf32> to vector<8x128xf32>
    %6 = arith.addf %3, %5 : vector<8x128xf32>
    %cst_5 = arith.constant 0.000000e+00 : f32
    %7 = vector.broadcast %cst_5 : f32 to vector<8x128xf32>
    %8 = arith.maximumf %6, %7 : vector<8x128xf32>
    %9 = arith.truncf %8 : vector<8x128xf32> to vector<8x128xbf16>
    %c0_6 = arith.constant 0 : index
    %c0_7 = arith.constant 0 : index
    %10 = vector.load %arg4[%c0_6, %c0_7] : memref<128x256xbf16, #tpu.memory_space<vmem>>, vector<128x256xbf16>
    %cst_8 = arith.constant dense<0.000000e+00> : vector<8x256xf32>
    %11 = tpu.matmul %9, %10, %cst_8 {dimension_numbers = #tpu.dot_dimension_numbers<[1], [0], [0], [1], [0, 0, 1, 1], [], []>} : vector<8x128xbf16>, vector<128x256xbf16>, vector<8x256xf32> -> vector<8x256xf32>
    %c0_9 = arith.constant 0 : index
    %c0_10 = arith.constant 0 : index
    %12 = vector.load %arg5[%c0_9, %c0_10] : memref<1x256xf32, #tpu.memory_space<vmem>>, vector<1x256xf32>
    %13 = vector.broadcast %12 : vector<1x256xf32> to vector<8x256xf32>
    %14 = arith.addf %11, %13 : vector<8x256xf32>
    %cst_11 = arith.constant 0.000000e+00 : f32
    %15 = vector.broadcast %cst_11 : f32 to vector<8x256xf32>
    %16 = arith.maximumf %14, %15 : vector<8x256xf32>
    %17 = arith.truncf %16 : vector<8x256xf32> to vector<8x256xbf16>
    %c0_12 = arith.constant 0 : index
    %c0_13 = arith.constant 0 : index
    %18 = vector.load %arg6[%c0_12, %c0_13] : memref<256x512xbf16, #tpu.memory_space<vmem>>, vector<256x512xbf16>
    %cst_14 = arith.constant dense<0.000000e+00> : vector<8x512xf32>
    %19 = tpu.matmul %17, %18, %cst_14 {dimension_numbers = #tpu.dot_dimension_numbers<[1], [0], [0], [1], [0, 0, 1, 1], [], []>} : vector<8x256xbf16>, vector<256x512xbf16>, vector<8x512xf32> -> vector<8x512xf32>
    %c0_15 = arith.constant 0 : index
    %c0_16 = arith.constant 0 : index
    %20 = vector.load %arg7[%c0_15, %c0_16] : memref<1x512xf32, #tpu.memory_space<vmem>>, vector<1x512xf32>
    %21 = vector.broadcast %20 : vector<1x512xf32> to vector<8x512xf32>
    %22 = arith.addf %19, %21 : vector<8x512xf32>
    %cst_17 = arith.constant 0.000000e+00 : f32
    %23 = vector.broadcast %cst_17 : f32 to vector<8x512xf32>
    %24 = arith.maximumf %22, %23 : vector<8x512xf32>
    %25 = arith.truncf %24 : vector<8x512xf32> to vector<8x512xbf16>
    %c0_18 = arith.constant 0 : index
    %c0_19 = arith.constant 0 : index
    %26 = vector.load %arg8[%c0_18, %c0_19] : memref<512x1024xbf16, #tpu.memory_space<vmem>>, vector<512x1024xbf16>
    %cst_20 = arith.constant dense<0.000000e+00> : vector<8x1024xf32>
    %27 = tpu.matmul %25, %26, %cst_20 {dimension_numbers = #tpu.dot_dimension_numbers<[1], [0], [0], [1], [0, 0, 1, 1], [], []>} : vector<8x512xbf16>, vector<512x1024xbf16>, vector<8x1024xf32> -> vector<8x1024xf32>
    %c0_21 = arith.constant 0 : index
    %c0_22 = arith.constant 0 : index
    %28 = vector.load %arg9[%c0_21, %c0_22] : memref<1x1024xf32, #tpu.memory_space<vmem>>, vector<1x1024xf32>
    %29 = vector.broadcast %28 : vector<1x1024xf32> to vector<8x1024xf32>
    %30 = arith.addf %27, %29 : vector<8x1024xf32>
    %cst_23 = arith.constant 0.000000e+00 : f32
    %31 = vector.broadcast %cst_23 : f32 to vector<8x1024xf32>
    %32 = arith.maximumf %30, %31 : vector<8x1024xf32>
    %33 = arith.truncf %32 : vector<8x1024xf32> to vector<8x1024xbf16>
    %c0_24 = arith.constant 0 : index
    %c0_25 = arith.constant 0 : index
    %34 = vector.load %arg10[%c0_24, %c0_25] : memref<1024x512xbf16, #tpu.memory_space<vmem>>, vector<1024x512xbf16>
    %cst_26 = arith.constant dense<0.000000e+00> : vector<8x512xf32>
    %35 = tpu.matmul %33, %34, %cst_26 {dimension_numbers = #tpu.dot_dimension_numbers<[1], [0], [0], [1], [0, 0, 1, 1], [], []>} : vector<8x1024xbf16>, vector<1024x512xbf16>, vector<8x512xf32> -> vector<8x512xf32>
    %c0_27 = arith.constant 0 : index
    %c0_28 = arith.constant 0 : index
    %36 = vector.load %arg11[%c0_27, %c0_28] : memref<1x512xf32, #tpu.memory_space<vmem>>, vector<1x512xf32>
    %37 = vector.broadcast %36 : vector<1x512xf32> to vector<8x512xf32>
    %38 = arith.addf %35, %37 : vector<8x512xf32>
    %cst_29 = arith.constant 0.000000e+00 : f32
    %39 = vector.broadcast %cst_29 : f32 to vector<8x512xf32>
    %40 = arith.maximumf %38, %39 : vector<8x512xf32>
    %41 = arith.truncf %40 : vector<8x512xf32> to vector<8x512xbf16>
    %c0_30 = arith.constant 0 : index
    %c0_31 = arith.constant 0 : index
    %42 = vector.load %arg12[%c0_30, %c0_31] : memref<512x256xbf16, #tpu.memory_space<vmem>>, vector<512x256xbf16>
    %cst_32 = arith.constant dense<0.000000e+00> : vector<8x256xf32>
    %43 = tpu.matmul %41, %42, %cst_32 {dimension_numbers = #tpu.dot_dimension_numbers<[1], [0], [0], [1], [0, 0, 1, 1], [], []>} : vector<8x512xbf16>, vector<512x256xbf16>, vector<8x256xf32> -> vector<8x256xf32>
    %c0_33 = arith.constant 0 : index
    %c0_34 = arith.constant 0 : index
    %44 = vector.load %arg13[%c0_33, %c0_34] : memref<1x256xf32, #tpu.memory_space<vmem>>, vector<1x256xf32>
    %45 = vector.broadcast %44 : vector<1x256xf32> to vector<8x256xf32>
    %46 = arith.addf %43, %45 : vector<8x256xf32>
    %cst_35 = arith.constant 0.000000e+00 : f32
    %47 = vector.broadcast %cst_35 : f32 to vector<8x256xf32>
    %48 = arith.maximumf %46, %47 : vector<8x256xf32>
    %49 = arith.truncf %48 : vector<8x256xf32> to vector<8x256xbf16>
    %c0_36 = arith.constant 0 : index
    %c0_37 = arith.constant 0 : index
    %50 = vector.load %arg14[%c0_36, %c0_37] : memref<256x128xbf16, #tpu.memory_space<vmem>>, vector<256x128xbf16>
    %cst_38 = arith.constant dense<0.000000e+00> : vector<8x128xf32>
    %51 = tpu.matmul %49, %50, %cst_38 {dimension_numbers = #tpu.dot_dimension_numbers<[1], [0], [0], [1], [0, 0, 1, 1], [], []>} : vector<8x256xbf16>, vector<256x128xbf16>, vector<8x128xf32> -> vector<8x128xf32>
    %c0_39 = arith.constant 0 : index
    %c0_40 = arith.constant 0 : index
    %52 = vector.load %arg15[%c0_39, %c0_40] : memref<1x128xf32, #tpu.memory_space<vmem>>, vector<1x128xf32>
    %53 = vector.broadcast %52 : vector<1x128xf32> to vector<8x128xf32>
    %54 = arith.addf %51, %53 : vector<8x128xf32>
    %cst_41 = arith.constant 0.000000e+00 : f32
    %55 = vector.broadcast %cst_41 : f32 to vector<8x128xf32>
    %56 = arith.maximumf %54, %55 : vector<8x128xf32>
    %57 = arith.truncf %56 : vector<8x128xf32> to vector<8x128xbf16>
    %c0_42 = arith.constant 0 : index
    %c0_43 = arith.constant 0 : index
    %58 = vector.load %arg16[%c0_42, %c0_43] : memref<128x128xbf16, #tpu.memory_space<vmem>>, vector<128x128xbf16>
    %cst_44 = arith.constant dense<0.000000e+00> : vector<8x128xf32>
    %59 = tpu.matmul %57, %58, %cst_44 {dimension_numbers = #tpu.dot_dimension_numbers<[1], [0], [0], [1], [0, 0, 1, 1], [], []>} : vector<8x128xbf16>, vector<128x128xbf16>, vector<8x128xf32> -> vector<8x128xf32>
    %c0_45 = arith.constant 0 : index
    %c0_46 = arith.constant 0 : index
    %60 = vector.load %arg17[%c0_45, %c0_46] : memref<1x128xf32, #tpu.memory_space<vmem>>, vector<1x128xf32>
    %61 = vector.broadcast %60 : vector<1x128xf32> to vector<8x128xf32>
    %62 = arith.addf %59, %61 : vector<8x128xf32>
    %c0_47 = arith.constant 0 : index
    %c0_48 = arith.constant 0 : index
    %63 = vector.load %arg18[%c0_47, %c0_48] : memref<8x128xf32, #tpu.memory_space<vmem>>, vector<8x128xf32>
    tpu.vector_store %arg18[%c0_47, %c0_48], %62 {strides = array<i32>} : memref<8x128xf32, #tpu.memory_space<vmem>>, vector<8x128xf32>,
    return
  }
  func.func @transform_0(%arg0: i32) -> (i32, i32) {
    %c0_i32 = arith.constant 0 : i32
    %c0_i32_0 = arith.constant 0 : i32
    return %arg0, %c0_i32 : i32, i32
  }
  func.func @transform_1(%arg0: i32) -> (i32, i32) {
    %c0_i32 = arith.constant 0 : i32
    %c0_i32_0 = arith.constant 0 : i32
    %c0_i32_1 = arith.constant 0 : i32
    return %c0_i32, %c0_i32_0 : i32, i32
  }
  func.func @transform_2(%arg0: i32) -> (i32, i32) {
    %c0_i32 = arith.constant 0 : i32
    %c0_i32_0 = arith.constant 0 : i32
    %c0_i32_1 = arith.constant 0 : i32
    return %c0_i32, %c0_i32_0 : i32, i32
  }
  func.func @transform_3(%arg0: i32) -> (i32, i32) {
    %c0_i32 = arith.constant 0 : i32
    %c0_i32_0 = arith.constant 0 : i32
    %c0_i32_1 = arith.constant 0 : i32
    return %c0_i32, %c0_i32_0 : i32, i32
  }
  func.func @transform_4(%arg0: i32) -> (i32, i32) {
    %c0_i32 = arith.constant 0 : i32
    %c0_i32_0 = arith.constant 0 : i32
    %c0_i32_1 = arith.constant 0 : i32
    return %c0_i32, %c0_i32_0 : i32, i32
  }
  func.func @transform_5(%arg0: i32) -> (i32, i32) {
    %c0_i32 = arith.constant 0 : i32
    %c0_i32_0 = arith.constant 0 : i32
    %c0_i32_1 = arith.constant 0 : i32
    return %c0_i32, %c0_i32_0 : i32, i32
  }
  func.func @transform_6(%arg0: i32) -> (i32, i32) {
    %c0_i32 = arith.constant 0 : i32
    %c0_i32_0 = arith.constant 0 : i32
    %c0_i32_1 = arith.constant 0 : i32
    return %c0_i32, %c0_i32_0 : i32, i32
  }
  func.func @transform_7(%arg0: i32) -> (i32, i32) {
    %c0_i32 = arith.constant 0 : i32
    %c0_i32_0 = arith.constant 0 : i32
    %c0_i32_1 = arith.constant 0 : i32
    return %c0_i32, %c0_i32_0 : i32, i32
  }
  func.func @transform_8(%arg0: i32) -> (i32, i32) {
    %c0_i32 = arith.constant 0 : i32
    %c0_i32_0 = arith.constant 0 : i32
    %c0_i32_1 = arith.constant 0 : i32
    return %c0_i32, %c0_i32_0 : i32, i32
  }
  func.func @transform_9(%arg0: i32) -> (i32, i32) {
    %c0_i32 = arith.constant 0 : i32
    %c0_i32_0 = arith.constant 0 : i32
    %c0_i32_1 = arith.constant 0 : i32
    return %c0_i32, %c0_i32_0 : i32, i32
  }
  func.func @transform_10(%arg0: i32) -> (i32, i32) {
    %c0_i32 = arith.constant 0 : i32
    %c0_i32_0 = arith.constant 0 : i32
    %c0_i32_1 = arith.constant 0 : i32
    return %c0_i32, %c0_i32_0 : i32, i32
  }
  func.func @transform_11(%arg0: i32) -> (i32, i32) {
    %c0_i32 = arith.constant 0 : i32
    %c0_i32_0 = arith.constant 0 : i32
    %c0_i32_1 = arith.constant 0 : i32
    return %c0_i32, %c0_i32_0 : i32, i32
  }
  func.func @transform_12(%arg0: i32) -> (i32, i32) {
    %c0_i32 = arith.constant 0 : i32
    %c0_i32_0 = arith.constant 0 : i32
    %c0_i32_1 = arith.constant 0 : i32
    return %c0_i32, %c0_i32_0 : i32, i32
  }
  func.func @transform_13(%arg0: i32) -> (i32, i32) {
    %c0_i32 = arith.constant 0 : i32
    %c0_i32_0 = arith.constant 0 : i32
    %c0_i32_1 = arith.constant 0 : i32
    return %c0_i32, %c0_i32_0 : i32, i32
  }
  func.func @transform_14(%arg0: i32) -> (i32, i32) {
    %c0_i32 = arith.constant 0 : i32
    %c0_i32_0 = arith.constant 0 : i32
    %c0_i32_1 = arith.constant 0 : i32
    return %c0_i32, %c0_i32_0 : i32, i32
  }
  func.func @transform_15(%arg0: i32) -> (i32, i32) {
    %c0_i32 = arith.constant 0 : i32
    %c0_i32_0 = arith.constant 0 : i32
    %c0_i32_1 = arith.constant 0 : i32
    return %c0_i32, %c0_i32_0 : i32, i32
  }
  func.func @transform_16(%arg0: i32) -> (i32, i32) {
    %c0_i32 = arith.constant 0 : i32
    %c0_i32_0 = arith.constant 0 : i32
    %c0_i32_1 = arith.constant 0 : i32
    return %c0_i32, %c0_i32_0 : i32, i32
  }
  func.func @transform_17(%arg0: i32) -> (i32, i32) {
    %c0_i32 = arith.constant 0 : i32
    %c0_i32_0 = arith.constant 0 : i32
    return %arg0, %c0_i32 : i32, i32
  }
}

</mosaic_0001>

<llo_original>
// kernel: _forward.1
$region0: #{_forward.1}
  #allocation0 [shape = 'u32[]', space=smem, size = 0x4, offset = 0x4, fixed_abs, tag = 'smem constant byte address 0x4 - core index']
  #allocation1 [shape = 'u32[72,128]{1,0:T(1,128)}', space=vmem, size = 0x9000, scoped, tag = 'internal scratch']
  %s0 = inlined_call_operand.hbm [shape: f32[16,128], index: 0, kind: input, shape index: {}]
  %s1 = inlined_call_operand.hbm [shape: bf16[128,128], index: 1, kind: input, shape index: {}]
  %s2 = inlined_call_operand.hbm [shape: f32[1,128], index: 2, kind: input, shape index: {}]
  %s3 = inlined_call_operand.hbm [shape: bf16[128,256], index: 3, kind: input, shape index: {}]
  %s4 = inlined_call_operand.hbm [shape: f32[1,256], index: 4, kind: input, shape index: {}]
  %s5 = inlined_call_operand.hbm [shape: bf16[256,512], index: 5, kind: input, shape index: {}]
  %s6 = inlined_call_operand.vmem [shape: f32[1,512], index: 6, kind: input, shape index: {}]
  %s7 = inlined_call_operand.hbm [shape: bf16[512,1024], index: 7, kind: input, shape index: {}]
  %s8 = inlined_call_operand.hbm [shape: f32[1,1024], index: 8, kind: input, shape index: {}]
  %s9 = inlined_call_operand.hbm [shape: bf16[1024,512], index: 9, kind: input, shape index: {}]
  %s10 = inlined_call_operand.vmem [shape: f32[1,512], index: 10, kind: input, shape index: {}]
  %s11 = inlined_call_operand.hbm [shape: bf16[512,256], index: 11, kind: input, shape index: {}]
  %s12 = inlined_call_operand.vmem [shape: f32[1,256], index: 12, kind: input, shape index: {}]
  %s13 = inlined_call_operand.hbm [shape: bf16[256,128], index: 13, kind: input, shape index: {}]
  %s14 = inlined_call_operand.vmem [shape: f32[1,128], index: 14, kind: input, shape index: {}]
  %s15 = inlined_call_operand.hbm [shape: bf16[128,128], index: 15, kind: input, shape index: {}]
  %s16 = inlined_call_operand.vmem [shape: f32[1,128], index: 16, kind: input, shape index: {}]
  %s17 = inlined_call_operand.hbm [shape: f32[16,128], index: 17, kind: output, shape index: {}]
  %s18 = sld [smem:[#allocation0]]
  $region149: #{_forward.1} parent=0
    _
  %s20 = ssub.s32 1, %s18
  %s21 = scalar_select 0, %s20, %s18
  $region1: #{_forward.1} parent=0
    #allocation2 [shape = 'u8[8192]{0}', space=vmem, size = 0x2000, scoped, tag = 'input window, operand 0']
    #allocation3 [shape = 's32[2]{0}', space=sflag, size = 0x8, scoped, tag = 'scoped memory for _forward.1']
    #allocation4 [shape = 's32[2]{0}', space=sflag, size = 0x8, scoped, tag = 'scoped memory for _forward.1']
    #allocation5 [shape = 'u8[32768]{0}', space=vmem, size = 0x8000, scoped, tag = 'input window, operand 1, single buffered']
    #allocation6 [shape = 's32[1]{0}', space=sflag, size = 0x4, scoped, tag = 'scoped memory for _forward.1']
    #allocation7 [shape = 'u8[512]{0}', space=vmem, size = 0x400, scoped, tag = 'input window, operand 2, single buffered']
    #allocation8 [shape = 'u8[65536]{0}', space=vmem, size = 0x10000, scoped, tag = 'input window, operand 3, single buffered']
    #allocation9 [shape = 's32[1]{0}', space=sflag, size = 0x4, scoped, tag = 'scoped memory for _forward.1']
    #allocation10 [shape = 'u8[1024]{0}', space=vmem, size = 0x400, scoped, tag = 'input window, operand 4, single buffered']
    #allocation11 [shape = 'u8[262144]{0}', space=vmem, size = 0x40000, scoped, tag = 'input window, operand 5, single buffered']
    #allocation12 [shape = 's32[1]{0}', space=sflag, size = 0x4, scoped, tag = 'scoped memory for _forward.1']
    #allocation13 [shape = 'u8[1048576]{0}', space=vmem, size = 0x100000, scoped, tag = 'input window, operand 7, single buffered']
    #allocation14 [shape = 'u8[4096]{0}', space=vmem, size = 0x1000, scoped, tag = 'input window, operand 8, single buffered']
    #allocation15 [shape = 's32[1]{0}', space=sflag, size = 0x4, scoped, tag = 'scoped memory for _forward.1']
    #allocation16 [shape = 'u8[1048576]{0}', space=vmem, size = 0x100000, scoped, tag = 'input window, operand 9, single buffered']
    #allocation17 [shape = 'u8[262144]{0}', space=vmem, size = 0x40000, scoped, tag = 'input window, operand 11, single buffered']
    #allocation18 [shape = 's32[1]{0}', space=sflag, size = 0x4, scoped, tag = 'scoped memory for _forward.1']
    #allocation19 [shape = 'u8[65536]{0}', space=vmem, size = 0x10000, scoped, tag = 'input window, operand 13, single buffered']
    #allocation20 [shape = 'u8[32768]{0}', space=vmem, size = 0x8000, scoped, tag = 'input window, operand 15, single buffered']
    #allocation21 [shape = 's32[1]{0}', space=sflag, size = 0x4, scoped, tag = 'scoped memory for _forward.1']
    #allocation22 [shape = 'u8[8192]{0}', space=vmem, size = 0x2000, scoped, tag = 'output window, operand 0']
    %22 = vsyncpa [#allocation3], 0
    %s23 = scalar_lea.sflag [#allocation3], 1
    %24 = vsyncpa %s23, 0
    %25 = vsyncpa [#allocation6], 0
    %26 = vsyncpa [#allocation9], 0
    %27 = vsyncpa [#allocation12], 0
    %28 = vsyncpa [#allocation15], 0
    %29 = vsyncpa [#allocation18], 0
    %30 = vsyncpa [#allocation21], 0
    %31 = vsyncpa [#allocation4], 0
    %s32 = scalar_lea.sflag [#allocation4], 1
    %33 = vsyncpa %s32, 0
    loop: start=0, step=1, limit=4
    $region2: #{_forward.1} parent=1 // loop_pre_header
      _
    $region3: #{_forward.1} parent=1 // loop_header
      %s35 = sphi 0, %s39
      %p36 = scmp.ge.s32.totalorder %s35, 4
      %s45 = sphi 0, %s47
      %s48 = sphi 0, %s45
      %s49 = sphi 0, %s48
      %s65 = sphi 0, %s49
      %s69 = sphi 0, %s69
      %s71 = sphi 0, %s69
      %s72 = sphi 0, %s71
      %s86 = sphi 0, %s72
      %s90 = sphi 0, %s90
      %s92 = sphi 0, %s90
      %s93 = sphi 0, %s92
      %s107 = sphi 0, %s93
      %s111 = sphi 0, %s111
      %s113 = sphi 0, %s111
      %s114 = sphi 0, %s113
      %s128 = sphi 0, %s114
      %s132 = sphi 0, %s132
      %s134 = sphi 0, %s132
      %s135 = sphi 0, %s134
      %s149 = sphi 0, %s135
      %s153 = sphi 0, %s153
      %s155 = sphi 0, %s153
      %s156 = sphi 0, %s155
      %s170 = sphi 0, %s156
      %s174 = sphi 0, %s174
      %s176 = sphi 0, %s174
      %s177 = sphi 0, %s176
      %s191 = sphi 0, %s177
      %s195 = sphi 0, %s195
      %s197 = sphi 0, %s195
      %s198 = sphi 0, %s197
      %s212 = sphi 0, %s198
      %s216 = sphi 0, %s216
      %s218 = sphi 0, %s216
      %s219 = sphi 0, %s218
      %s233 = sphi 0, %s219
      %s237 = sphi 0, %s237
      %s239 = sphi 0, %s237
      %s240 = sphi 0, %s239
      %s254 = sphi 0, %s240
      %s258 = sphi 0, %s258
      %s260 = sphi 0, %s258
      %s261 = sphi 0, %s260
      %s275 = sphi 0, %s261
      %s279 = sphi 0, %s279
      %s281 = sphi 0, %s279
      %s282 = sphi 0, %s281
      %s296 = sphi 0, %s282
      %s300 = sphi 0, %s300
      %s302 = sphi 0, %s300
      %s303 = sphi 0, %s302
      %s317 = sphi 0, %s303
      %s321 = sphi 0, %s321
      %s323 = sphi 0, %s321
      %s324 = sphi 0, %s323
      %s338 = sphi 0, %s324
      %s342 = sphi 0, %s342
      %s344 = sphi 0, %s342
      %s345 = sphi 0, %s344
      %s359 = sphi 0, %s345
      %s363 = sphi 0, %s363
      %s365 = sphi 0, %s363
      %s366 = sphi 0, %s365
      %s380 = sphi 0, %s366
      %s384 = sphi 0, %s384
      %s386 = sphi 0, %s384
      %s387 = sphi 0, %s386
      %s401 = sphi 0, %s387
      %s407 = sphi 0, %s409
      %s410 = sphi 0, %s407
      %s411 = sphi 0, %s410
      %s427 = sphi 0, %s411
    $region4: #{_forward.1} parent=1 // loop_header_branch
      %38 = sbr.rel (%p36) target = $region8
    $region5: #{_forward.1} parent=1 // loop_body
      %s40 = ssub.s32 %s35, 1
      %s41 = ssub.s32 %s35, 2
      %s42 = sadd.s32 %s35, 1
      %s43 = ssub.s32 %s35, %s42
      %p44 = scmp.eq.s32.totalorder %s43, 0
      %s46 = sadd.s32 %s45, 1
      %s47 = scalar_select %p44, %s45, %s46
      %p50 = pneg %p44
      %p51 = scmp.eq.s32.totalorder %s35, 1
      %p52 = por %p50, %p51
      %p53 = scmp.ne.s32.totalorder %s45, %s48
      %p54 = scmp.eq.s32.totalorder %s35, 0
      %p55 = por %p53, %p54
      %p56 = scmp.ne.s32.totalorder %s45, %s48
      %p57 = scmp.eq.s32.totalorder %s40, 1
      %p58 = por %p56, %p57
      %p59 = scmp.ne.s32.totalorder %s48, %s49
      %p60 = scmp.eq.s32.totalorder %s40, 0
      %p61 = por %p59, %p60
      %p62 = scmp.ne.s32.totalorder %s48, %s49
      %p63 = scmp.eq.s32.totalorder %s41, 1
      %p64 = por %p62, %p63
      %p66 = scmp.ne.s32.totalorder %s49, %s65
      %p67 = scmp.eq.s32.totalorder %s41, 0
      %p68 = por %p66, %p67
      %s70 = sadd.s32 %s69, 1
      %p73 = scmp.eq.s32.totalorder %s35, 1
      %p74 = scmp.ne.s32.totalorder %s69, %s71
      %p75 = scmp.eq.s32.totalorder %s35, 0
      %p76 = por %p74, %p75
      %p77 = scmp.ne.s32.totalorder %s69, %s71
      %p78 = scmp.eq.s32.totalorder %s40, 1
      %p79 = por %p77, %p78
      %p80 = scmp.ne.s32.totalorder %s71, %s72
      %p81 = scmp.eq.s32.totalorder %s40, 0
      %p82 = por %p80, %p81
      %p83 = scmp.ne.s32.totalorder %s71, %s72
      %p84 = scmp.eq.s32.totalorder %s41, 1
      %p85 = por %p83, %p84
      %p87 = scmp.ne.s32.totalorder %s72, %s86
      %p88 = scmp.eq.s32.totalorder %s41, 0
      %p89 = por %p87, %p88
      %s91 = sadd.s32 %s90, 1
      %p94 = scmp.eq.s32.totalorder %s35, 1
      %p95 = scmp.ne.s32.totalorder %s90, %s92
      %p96 = scmp.eq.s32.totalorder %s35, 0
      %p97 = por %p95, %p96
      %p98 = scmp.ne.s32.totalorder %s90, %s92
      %p99 = scmp.eq.s32.totalorder %s40, 1
      %p100 = por %p98, %p99
      %p101 = scmp.ne.s32.totalorder %s92, %s93
      %p102 = scmp.eq.s32.totalorder %s40, 0
      %p103 = por %p101, %p102
      %p104 = scmp.ne.s32.totalorder %s92, %s93
      %p105 = scmp.eq.s32.totalorder %s41, 1
      %p106 = por %p104, %p105
      %p108 = scmp.ne.s32.totalorder %s93, %s107
      %p109 = scmp.eq.s32.totalorder %s41, 0
      %p110 = por %p108, %p109
      %s112 = sadd.s32 %s111, 1
      %p115 = scmp.eq.s32.totalorder %s35, 1
      %p116 = scmp.ne.s32.totalorder %s111, %s113
      %p117 = scmp.eq.s32.totalorder %s35, 0
      %p118 = por %p116, %p117
      %p119 = scmp.ne.s32.totalorder %s111, %s113
      %p120 = scmp.eq.s32.totalorder %s40, 1
      %p121 = por %p119, %p120
      %p122 = scmp.ne.s32.totalorder %s113, %s114
      %p123 = scmp.eq.s32.totalorder %s40, 0
      %p124 = por %p122, %p123
      %p125 = scmp.ne.s32.totalorder %s113, %s114
      %p126 = scmp.eq.s32.totalorder %s41, 1
      %p127 = por %p125, %p126
      %p129 = scmp.ne.s32.totalorder %s114, %s128
      %p130 = scmp.eq.s32.totalorder %s41, 0
      %p131 = por %p129, %p130
      %s133 = sadd.s32 %s132, 1
      %p136 = scmp.eq.s32.totalorder %s35, 1
      %p137 = scmp.ne.s32.totalorder %s132, %s134
      %p138 = scmp.eq.s32.totalorder %s35, 0
      %p139 = por %p137, %p138
      %p140 = scmp.ne.s32.totalorder %s132, %s134
      %p141 = scmp.eq.s32.totalorder %s40, 1
      %p142 = por %p140, %p141
      %p143 = scmp.ne.s32.totalorder %s134, %s135
      %p144 = scmp.eq.s32.totalorder %s40, 0
      %p145 = por %p143, %p144
      %p146 = scmp.ne.s32.totalorder %s134, %s135
      %p147 = scmp.eq.s32.totalorder %s41, 1
      %p148 = por %p146, %p147
      %p150 = scmp.ne.s32.totalorder %s135, %s149
      %p151 = scmp.eq.s32.totalorder %s41, 0
      %p152 = por %p150, %p151
      %s154 = sadd.s32 %s153, 1
      %p157 = scmp.eq.s32.totalorder %s35, 1
      %p158 = scmp.ne.s32.totalorder %s153, %s155
      %p159 = scmp.eq.s32.totalorder %s35, 0
      %p160 = por %p158, %p159
      %p161 = scmp.ne.s32.totalorder %s153, %s155
      %p162 = scmp.eq.s32.totalorder %s40, 1
      %p163 = por %p161, %p162
      %p164 = scmp.ne.s32.totalorder %s155, %s156
      %p165 = scmp.eq.s32.totalorder %s40, 0
      %p166 = por %p164, %p165
      %p167 = scmp.ne.s32.totalorder %s155, %s156
      %p168 = scmp.eq.s32.totalorder %s41, 1
      %p169 = por %p167, %p168
      %p171 = scmp.ne.s32.totalorder %s156, %s170
      %p172 = scmp.eq.s32.totalorder %s41, 0
      %p173 = por %p171, %p172
      %s175 = sadd.s32 %s174, 1
      %p178 = scmp.eq.s32.totalorder %s35, 1
      %p179 = scmp.ne.s32.totalorder %s174, %s176
      %p180 = scmp.eq.s32.totalorder %s35, 0
      %p181 = por %p179, %p180
      %p182 = scmp.ne.s32.totalorder %s174, %s176
      %p183 = scmp.eq.s32.totalorder %s40, 1
      %p184 = por %p182, %p183
      %p185 = scmp.ne.s32.totalorder %s176, %s177
      %p186 = scmp.eq.s32.totalorder %s40, 0
      %p187 = por %p185, %p186
      %p188 = scmp.ne.s32.totalorder %s176, %s177
      %p189 = scmp.eq.s32.totalorder %s41, 1
      %p190 = por %p188, %p189
      %p192 = scmp.ne.s32.totalorder %s177, %s191
      %p193 = scmp.eq.s32.totalorder %s41, 0
      %p194 = por %p192, %p193
      %s196 = sadd.s32 %s195, 1
      %p199 = scmp.eq.s32.totalorder %s35, 1
      %p200 = scmp.ne.s32.totalorder %s195, %s197
      %p201 = scmp.eq.s32.totalorder %s35, 0
      %p202 = por %p200, %p201
      %p203 = scmp.ne.s32.totalorder %s195, %s197
      %p204 = scmp.eq.s32.totalorder %s40, 1
      %p205 = por %p203, %p204
      %p206 = scmp.ne.s32.totalorder %s197, %s198
      %p207 = scmp.eq.s32.totalorder %s40, 0
      %p208 = por %p206, %p207
      %p209 = scmp.ne.s32.totalorder %s197, %s198
      %p210 = scmp.eq.s32.totalorder %s41, 1
      %p211 = por %p209, %p210
      %p213 = scmp.ne.s32.totalorder %s198, %s212
      %p214 = scmp.eq.s32.totalorder %s41, 0
      %p215 = por %p213, %p214
      %s217 = sadd.s32 %s216, 1
      %p220 = scmp.eq.s32.totalorder %s35, 1
      %p221 = scmp.ne.s32.totalorder %s216, %s218
      %p222 = scmp.eq.s32.totalorder %s35, 0
      %p223 = por %p221, %p222
      %p224 = scmp.ne.s32.totalorder %s216, %s218
      %p225 = scmp.eq.s32.totalorder %s40, 1
      %p226 = por %p224, %p225
      %p227 = scmp.ne.s32.totalorder %s218, %s219
      %p228 = scmp.eq.s32.totalorder %s40, 0
      %p229 = por %p227, %p228
      %p230 = scmp.ne.s32.totalorder %s218, %s219
      %p231 = scmp.eq.s32.totalorder %s41, 1
      %p232 = por %p230, %p231
      %p234 = scmp.ne.s32.totalorder %s219, %s233
      %p235 = scmp.eq.s32.totalorder %s41, 0
      %p236 = por %p234, %p235
      %s238 = sadd.s32 %s237, 1
      %p241 = scmp.eq.s32.totalorder %s35, 1
      %p242 = scmp.ne.s32.totalorder %s237, %s239
      %p243 = scmp.eq.s32.totalorder %s35, 0
      %p244 = por %p242, %p243
      %p245 = scmp.ne.s32.totalorder %s237, %s239
      %p246 = scmp.eq.s32.totalorder %s40, 1
      %p247 = por %p245, %p246
      %p248 = scmp.ne.s32.totalorder %s239, %s240
      %p249 = scmp.eq.s32.totalorder %s40, 0
      %p250 = por %p248, %p249
      %p251 = scmp.ne.s32.totalorder %s239, %s240
      %p252 = scmp.eq.s32.totalorder %s41, 1
      %p253 = por %p251, %p252
      %p255 = scmp.ne.s32.totalorder %s240, %s254
      %p256 = scmp.eq.s32.totalorder %s41, 0
      %p257 = por %p255, %p256
      %s259 = sadd.s32 %s258, 1
      %p262 = scmp.eq.s32.totalorder %s35, 1
      %p263 = scmp.ne.s32.totalorder %s258, %s260
      %p264 = scmp.eq.s32.totalorder %s35, 0
      %p265 = por %p263, %p264
      %p266 = scmp.ne.s32.totalorder %s258, %s260
      %p267 = scmp.eq.s32.totalorder %s40, 1
      %p268 = por %p266, %p267
      %p269 = scmp.ne.s32.totalorder %s260, %s261
      %p270 = scmp.eq.s32.totalorder %s40, 0
      %p271 = por %p269, %p270
      %p272 = scmp.ne.s32.totalorder %s260, %s261
      %p273 = scmp.eq.s32.totalorder %s41, 1
      %p274 = por %p272, %p273
      %p276 = scmp.ne.s32.totalorder %s261, %s275
      %p277 = scmp.eq.s32.totalorder %s41, 0
      %p278 = por %p276, %p277
      %s280 = sadd.s32 %s279, 1
      %p283 = scmp.eq.s32.totalorder %s35, 1
      %p284 = scmp.ne.s32.totalorder %s279, %s281
      %p285 = scmp.eq.s32.totalorder %s35, 0
      %p286 = por %p284, %p285
      %p287 = scmp.ne.s32.totalorder %s279, %s281
      %p288 = scmp.eq.s32.totalorder %s40, 1
      %p289 = por %p287, %p288
      %p290 = scmp.ne.s32.totalorder %s281, %s282
      %p291 = scmp.eq.s32.totalorder %s40, 0
      %p292 = por %p290, %p291
      %p293 = scmp.ne.s32.totalorder %s281, %s282
      %p294 = scmp.eq.s32.totalorder %s41, 1
      %p295 = por %p293, %p294
      %p297 = scmp.ne.s32.totalorder %s282, %s296
      %p298 = scmp.eq.s32.totalorder %s41, 0
      %p299 = por %p297, %p298
      %s301 = sadd.s32 %s300, 1
      %p304 = scmp.eq.s32.totalorder %s35, 1
      %p305 = scmp.ne.s32.totalorder %s300, %s302
      %p306 = scmp.eq.s32.totalorder %s35, 0
      %p307 = por %p305, %p306
      %p308 = scmp.ne.s32.totalorder %s300, %s302
      %p309 = scmp.eq.s32.totalorder %s40, 1
      %p310 = por %p308, %p309
      %p311 = scmp.ne.s32.totalorder %s302, %s303
      %p312 = scmp.eq.s32.totalorder %s40, 0
      %p313 = por %p311, %p312
      %p314 = scmp.ne.s32.totalorder %s302, %s303
      %p315 = scmp.eq.s32.totalorder %s41, 1
      %p316 = por %p314, %p315
      %p318 = scmp.ne.s32.totalorder %s303, %s317
      %p319 = scmp.eq.s32.totalorder %s41, 0
      %p320 = por %p318, %p319
      %s322 = sadd.s32 %s321, 1
      %p325 = scmp.eq.s32.totalorder %s35, 1
      %p326 = scmp.ne.s32.totalorder %s321, %s323
      %p327 = scmp.eq.s32.totalorder %s35, 0
      %p328 = por %p326, %p327
      %p329 = scmp.ne.s32.totalorder %s321, %s323
      %p330 = scmp.eq.s32.totalorder %s40, 1
      %p331 = por %p329, %p330
      %p332 = scmp.ne.s32.totalorder %s323, %s324
      %p333 = scmp.eq.s32.totalorder %s40, 0
      %p334 = por %p332, %p333
      %p335 = scmp.ne.s32.totalorder %s323, %s324
      %p336 = scmp.eq.s32.totalorder %s41, 1
      %p337 = por %p335, %p336
      %p339 = scmp.ne.s32.totalorder %s324, %s338
      %p340 = scmp.eq.s32.totalorder %s41, 0
      %p341 = por %p339, %p340
      %s343 = sadd.s32 %s342, 1
      %p346 = scmp.eq.s32.totalorder %s35, 1
      %p347 = scmp.ne.s32.totalorder %s342, %s344
      %p348 = scmp.eq.s32.totalorder %s35, 0
      %p349 = por %p347, %p348
      %p350 = scmp.ne.s32.totalorder %s342, %s344
      %p351 = scmp.eq.s32.totalorder %s40, 1
      %p352 = por %p350, %p351
      %p353 = scmp.ne.s32.totalorder %s344, %s345
      %p354 = scmp.eq.s32.totalorder %s40, 0
      %p355 = por %p353, %p354
      %p356 = scmp.ne.s32.totalorder %s344, %s345
      %p357 = scmp.eq.s32.totalorder %s41, 1
      %p358 = por %p356, %p357
      %p360 = scmp.ne.s32.totalorder %s345, %s359
      %p361 = scmp.eq.s32.totalorder %s41, 0
      %p362 = por %p360, %p361
      %s364 = sadd.s32 %s363, 1
      %p367 = scmp.eq.s32.totalorder %s35, 1
      %p368 = scmp.ne.s32.totalorder %s363, %s365
      %p369 = scmp.eq.s32.totalorder %s35, 0
      %p370 = por %p368, %p369
      %p371 = scmp.ne.s32.totalorder %s363, %s365
      %p372 = scmp.eq.s32.totalorder %s40, 1
      %p373 = por %p371, %p372
      %p374 = scmp.ne.s32.totalorder %s365, %s366
      %p375 = scmp.eq.s32.totalorder %s40, 0
      %p376 = por %p374, %p375
      %p377 = scmp.ne.s32.totalorder %s365, %s366
      %p378 = scmp.eq.s32.totalorder %s41, 1
      %p379 = por %p377, %p378
      %p381 = scmp.ne.s32.totalorder %s366, %s380
      %p382 = scmp.eq.s32.totalorder %s41, 0
      %p383 = por %p381, %p382
      %s385 = sadd.s32 %s384, 1
      %p388 = scmp.eq.s32.totalorder %s35, 1
      %p389 = scmp.ne.s32.totalorder %s384, %s386
      %p390 = scmp.eq.s32.totalorder %s35, 0
      %p391 = por %p389, %p390
      %p392 = scmp.ne.s32.totalorder %s384, %s386
      %p393 = scmp.eq.s32.totalorder %s40, 1
      %p394 = por %p392, %p393
      %p395 = scmp.ne.s32.totalorder %s386, %s387
      %p396 = scmp.eq.s32.totalorder %s40, 0
      %p397 = por %p395, %p396
      %p398 = scmp.ne.s32.totalorder %s386, %s387
      %p399 = scmp.eq.s32.totalorder %s41, 1
      %p400 = por %p398, %p399
      %p402 = scmp.ne.s32.totalorder %s387, %s401
      %p403 = scmp.eq.s32.totalorder %s41, 0
      %p404 = por %p402, %p403
      %s405 = ssub.s32 %s35, %s42
      %p406 = scmp.eq.s32.totalorder %s405, 0
      %s408 = sadd.s32 %s407, 1
      %s409 = scalar_select %p406, %s407, %s408
      %p412 = pneg %p406
      %p413 = scmp.eq.s32.totalorder %s35, 1
      %p414 = por %p412, %p413
      %p415 = scmp.ne.s32.totalorder %s407, %s410
      %p416 = scmp.eq.s32.totalorder %s35, 0
      %p417 = por %p415, %p416
      %p418 = scmp.ne.s32.totalorder %s407, %s410
      %p419 = scmp.eq.s32.totalorder %s40, 1
      %p420 = por %p418, %p419
      %p421 = scmp.ne.s32.totalorder %s410, %s411
      %p422 = scmp.eq.s32.totalorder %s40, 0
      %p423 = por %p421, %p422
      %p424 = scmp.ne.s32.totalorder %s410, %s411
      %p425 = scmp.eq.s32.totalorder %s41, 1
      %p426 = por %p424, %p425
      %p428 = scmp.ne.s32.totalorder %s411, %s427
      %p429 = scmp.eq.s32.totalorder %s41, 0
      %p430 = por %p428, %p429
      %p431 = scmp.le.s32.totalorder 1, %s35
      %p432 = scmp.lt.s32.totalorder %s35, 3
      %p433 = pnand %p431, %p432
      %p434 = pneg %p433
      // Predicated region
      $region9: #{_forward.1} parent=5 // pred_check
        _
      $region10: #{_forward.1} parent=5 // pred_check_branch
        %436 = sbr.rel (%p433) target = $region12
      $region11: #{_forward.1} parent=5 // pred_region
        %s437 = ssub.s32 %s35, 1
        // Predicated region
        $region13: #{_forward.1} parent=11 // pred_check
          %p438 = pneg %p82
        $region14: #{_forward.1} parent=11 // pred_check_branch
          %440 = sbr.rel (%p438) target = $region16
        $region15: #{_forward.1} parent=11 // pred_region
          %442 = vsyncadd [#allocation6], 0
          %s443 = sshll.u32 %s1, 4
          %s444 = int_to_ptr.hbm [resolvable:$true] %s443
          %s445 = sshll.u32 [#allocation5], 4
          %s446 = int_to_ptr.vmem [resolvable:$true] %s445
          %451 = dma.hbm_to_vmem [thread:$0]  %s444, 1024, %s446, [#allocation6], 64, 64, 4
        $region16: #{_forward.1} parent=11 // pred_fallthru
          _
        // Predicated region
        $region17: #{_forward.1} parent=11 // pred_check
          %p452 = pneg %p103
        $region18: #{_forward.1} parent=11 // pred_check_branch
          %454 = sbr.rel (%p452) target = $region20
        $region19: #{_forward.1} parent=11 // pred_region
          %456 = vsyncadd [#allocation6], 0
          %s458 = sshll.u32 %s2, 4
          %s459 = int_to_ptr.hbm [resolvable:$true] %s458
          %s460 = sshll.u32 [#allocation7], 4
          %s461 = int_to_ptr.vmem [resolvable:$true] %s460
          %463 = dma.hbm_to_vmem [thread:$0]  %s459, 16, %s461, [#allocation6]
        $region20: #{_forward.1} parent=11 // pred_fallthru
          _
        // Predicated region
        $region21: #{_forward.1} parent=11 // pred_check
          %p464 = pneg %p124
        $region22: #{_forward.1} parent=11 // pred_check_branch
          %466 = sbr.rel (%p464) target = $region24
        $region23: #{_forward.1} parent=11 // pred_region
          %468 = vsyncadd [#allocation9], 0
          %s469 = sshll.u32 %s3, 4
          %s470 = int_to_ptr.hbm [resolvable:$true] %s469
          %s471 = sshll.u32 [#allocation8], 4
          %s472 = int_to_ptr.vmem [resolvable:$true] %s471
          %477 = dma.hbm_to_vmem [thread:$0]  %s470, 2048, %s472, [#allocation9], 128, 128, 8
        $region24: #{_forward.1} parent=11 // pred_fallthru
          _
        // Predicated region
        $region25: #{_forward.1} parent=11 // pred_check
          %p478 = pneg %p145
        $region26: #{_forward.1} parent=11 // pred_check_branch
          %480 = sbr.rel (%p478) target = $region28
        $region27: #{_forward.1} parent=11 // pred_region
          %482 = vsyncadd [#allocation9], 0
          %s484 = sshll.u32 %s4, 4
          %s485 = int_to_ptr.hbm [resolvable:$true] %s484
          %s486 = sshll.u32 [#allocation10], 4
          %s487 = int_to_ptr.vmem [resolvable:$true] %s486
          %489 = dma.hbm_to_vmem [thread:$0]  %s485, 32, %s487, [#allocation9]
        $region28: #{_forward.1} parent=11 // pred_fallthru
          _
        // Predicated region
        $region29: #{_forward.1} parent=11 // pred_check
          %p490 = pneg %p166
        $region30: #{_forward.1} parent=11 // pred_check_branch
          %492 = sbr.rel (%p490) target = $region32
        $region31: #{_forward.1} parent=11 // pred_region
          %494 = vsyncadd [#allocation12], 0
          %s495 = sshll.u32 %s5, 4
          %s496 = int_to_ptr.hbm [resolvable:$true] %s495
          %s497 = sshll.u32 [#allocation11], 4
          %s498 = int_to_ptr.vmem [resolvable:$true] %s497
          %503 = dma.hbm_to_vmem [thread:$0]  %s496, 8192, %s498, [#allocation12], 256, 256, 16
        $region32: #{_forward.1} parent=11 // pred_fallthru
          _
        // Predicated region
        $region33: #{_forward.1} parent=11 // pred_check
          %p504 = pneg %p187
        $region34: #{_forward.1} parent=11 // pred_check_branch
          %506 = sbr.rel (%p504) target = $region36
        $region35: #{_forward.1} parent=11 // pred_region
          _
        $region36: #{_forward.1} parent=11 // pred_fallthru
          _
        // Predicated region
        $region37: #{_forward.1} parent=11 // pred_check
          %p507 = pneg %p208
        $region38: #{_forward.1} parent=11 // pred_check_branch
          %509 = sbr.rel (%p507) target = $region40
        $region39: #{_forward.1} parent=11 // pred_region
          %511 = vsyncadd [#allocation12], 0
          %s512 = sshll.u32 %s7, 4
          %s513 = int_to_ptr.hbm [resolvable:$true] %s512
          %s514 = sshll.u32 [#allocation13], 4
          %s515 = int_to_ptr.vmem [resolvable:$true] %s514
          %520 = dma.hbm_to_vmem [thread:$0]  %s513, 32768, %s515, [#allocation12], 512, 512, 32
        $region40: #{_forward.1} parent=11 // pred_fallthru
          _
        // Predicated region
        $region41: #{_forward.1} parent=11 // pred_check
          %p521 = pneg %p229
        $region42: #{_forward.1} parent=11 // pred_check_branch
          %523 = sbr.rel (%p521) target = $region44
        $region43: #{_forward.1} parent=11 // pred_region
          %525 = vsyncadd [#allocation15], 0
          %s527 = sshll.u32 %s8, 4
          %s528 = int_to_ptr.hbm [resolvable:$true] %s527
          %s529 = sshll.u32 [#allocation14], 4
          %s530 = int_to_ptr.vmem [resolvable:$true] %s529
          %532 = dma.hbm_to_vmem [thread:$0]  %s528, 128, %s530, [#allocation15]
        $region44: #{_forward.1} parent=11 // pred_fallthru
          _
        // Predicated region
        $region45: #{_forward.1} parent=11 // pred_check
          %p533 = pneg %p250
        $region46: #{_forward.1} parent=11 // pred_check_branch
          %535 = sbr.rel (%p533) target = $region48
        $region47: #{_forward.1} parent=11 // pred_region
          %537 = vsyncadd [#allocation15], 0
          %s538 = sshll.u32 %s9, 4
          %s539 = int_to_ptr.hbm [resolvable:$true] %s538
          %s540 = sshll.u32 [#allocation16], 4
          %s541 = int_to_ptr.vmem [resolvable:$true] %s540
          %546 = dma.hbm_to_vmem [thread:$0]  %s539, 32768, %s541, [#allocation15], 256, 256, 16
        $region48: #{_forward.1} parent=11 // pred_fallthru
          _
        // Predicated region
        $region49: #{_forward.1} parent=11 // pred_check
          %p547 = pneg %p271
        $region50: #{_forward.1} parent=11 // pred_check_branch
          %549 = sbr.rel (%p547) target = $region52
        $region51: #{_forward.1} parent=11 // pred_region
          _
        $region52: #{_forward.1} parent=11 // pred_fallthru
          _
        // Predicated region
        $region53: #{_forward.1} parent=11 // pred_check
          %p550 = pneg %p292
        $region54: #{_forward.1} parent=11 // pred_check_branch
          %552 = sbr.rel (%p550) target = $region56
        $region55: #{_forward.1} parent=11 // pred_region
          %554 = vsyncadd [#allocation18], 0
          %s555 = sshll.u32 %s11, 4
          %s556 = int_to_ptr.hbm [resolvable:$true] %s555
          %s557 = sshll.u32 [#allocation17], 4
          %s558 = int_to_ptr.vmem [resolvable:$true] %s557
          %563 = dma.hbm_to_vmem [thread:$0]  %s556, 8192, %s558, [#allocation18], 128, 128, 8
        $region56: #{_forward.1} parent=11 // pred_fallthru
          _
        // Predicated region
        $region57: #{_forward.1} parent=11 // pred_check
          %p564 = pneg %p313
        $region58: #{_forward.1} parent=11 // pred_check_branch
          %566 = sbr.rel (%p564) target = $region60
        $region59: #{_forward.1} parent=11 // pred_region
          _
        $region60: #{_forward.1} parent=11 // pred_fallthru
          _
        // Predicated region
        $region61: #{_forward.1} parent=11 // pred_check
          %p567 = pneg %p334
        $region62: #{_forward.1} parent=11 // pred_check_branch
          %569 = sbr.rel (%p567) target = $region64
        $region63: #{_forward.1} parent=11 // pred_region
          %571 = vsyncadd [#allocation18], 0
          %s572 = sshll.u32 %s13, 4
          %s573 = int_to_ptr.hbm [resolvable:$true] %s572
          %s574 = sshll.u32 [#allocation19], 4
          %s575 = int_to_ptr.vmem [resolvable:$true] %s574
          %580 = dma.hbm_to_vmem [thread:$0]  %s573, 2048, %s575, [#allocation18], 64, 64, 4
        $region64: #{_forward.1} parent=11 // pred_fallthru
          _
        // Predicated region
        $region65: #{_forward.1} parent=11 // pred_check
          %p581 = pneg %p355
        $region66: #{_forward.1} parent=11 // pred_check_branch
          %583 = sbr.rel (%p581) target = $region68
        $region67: #{_forward.1} parent=11 // pred_region
          _
        $region68: #{_forward.1} parent=11 // pred_fallthru
          _
        // Predicated region
        $region69: #{_forward.1} parent=11 // pred_check
          %p584 = pneg %p376
        $region70: #{_forward.1} parent=11 // pred_check_branch
          %586 = sbr.rel (%p584) target = $region72
        $region71: #{_forward.1} parent=11 // pred_region
          %588 = vsyncadd [#allocation21], 0
          %s589 = sshll.u32 %s15, 4
          %s590 = int_to_ptr.hbm [resolvable:$true] %s589
          %s591 = sshll.u32 [#allocation20], 4
          %s592 = int_to_ptr.vmem [resolvable:$true] %s591
          %597 = dma.hbm_to_vmem [thread:$0]  %s590, 1024, %s592, [#allocation21], 64, 64, 4
        $region72: #{_forward.1} parent=11 // pred_fallthru
          _
        // Predicated region
        $region73: #{_forward.1} parent=11 // pred_check
          %p598 = pneg %p397
        $region74: #{_forward.1} parent=11 // pred_check_branch
          %600 = sbr.rel (%p598) target = $region76
        $region75: #{_forward.1} parent=11 // pred_region
          _
        $region76: #{_forward.1} parent=11 // pred_fallthru
          _
      $region12: #{_forward.1} parent=5 // pred_fallthru
        _
      %p601 = scmp.lt.s32.totalorder %s35, 2
      // Predicated region
      $region77: #{_forward.1} parent=5 // pred_check
        %p602 = pneg %p601
      $region78: #{_forward.1} parent=5 // pred_check_branch
        %604 = sbr.rel (%p602) target = $region80
      $region79: #{_forward.1} parent=5 // pred_region
        // Predicated region
        $region81: #{_forward.1} parent=79 // pred_check
          %p605 = pneg %p55
        $region82: #{_forward.1} parent=79 // pred_check_branch
          %607 = sbr.rel (%p605) target = $region84
        $region83: #{_forward.1} parent=79 // pred_region
          %s608 = sand.u32 %s45, 1
          %s609 = scalar_lea.sflag [#allocation3], %s608
          %s610 = sand.u32 %s45, 1
          %s611 = smul.addr %s610, 8
          %s612 = scalar_lea.vmem [#allocation2], %s611
          %614 = vsyncadd %s609, 0
          %s615 = smul.addr %s35, 8
          %s616 = scalar_lea.hbm %s0, %s615
          %s618 = sshll.u32 %s616, 4
          %s619 = int_to_ptr.hbm [resolvable:$true] %s618
          %s620 = sshll.u32 %s612, 4
          %s621 = int_to_ptr.vmem [resolvable:$true] %s620
          %623 = dma.hbm_to_vmem [thread:$0]  %s619, 128, %s621, %s609
        $region84: #{_forward.1} parent=79 // pred_fallthru
          _
      $region80: #{_forward.1} parent=5 // pred_fallthru
        _
      %p624 = scmp.le.s32.totalorder 1, %s35
      %p625 = scmp.lt.s32.totalorder %s35, 3
      %p626 = pnand %p624, %p625
      %p627 = pneg %p626
      // Predicated region
      $region85: #{_forward.1} parent=5 // pred_check
        _
      $region86: #{_forward.1} parent=5 // pred_check_branch
        %629 = sbr.rel (%p626) target = $region88
      $region87: #{_forward.1} parent=5 // pred_region
        %s630 = ssub.s32 %s35, 1
        %s631 = sand.u32 %s48, 1
        %s632 = scalar_lea.sflag [#allocation3], %s631
        %s633 = sand.u32 %s48, 1
        %s634 = smul.addr %s633, 8
        %s635 = scalar_lea.vmem [#allocation2], %s634
        // Predicated region
        $region89: #{_forward.1} parent=87 // pred_check
          %p636 = pneg %p61
        $region90: #{_forward.1} parent=87 // pred_check_branch
          %638 = sbr.rel (%p636) target = $region92
        $region91: #{_forward.1} parent=87 // pred_region
          %640 = dma.done %s632, 128
        $region92: #{_forward.1} parent=87 // pred_fallthru
          _
        // Predicated region
        $region93: #{_forward.1} parent=87 // pred_check
          %p641 = pneg %p82
        $region94: #{_forward.1} parent=87 // pred_check_branch
          %643 = sbr.rel (%p641) target = $region96
        $region95: #{_forward.1} parent=87 // pred_region
          %645 = dma.done [#allocation6], 1024
        $region96: #{_forward.1} parent=87 // pred_fallthru
          _
        // Predicated region
        $region97: #{_forward.1} parent=87 // pred_check
          %p646 = pneg %p103
        $region98: #{_forward.1} parent=87 // pred_check_branch
          %648 = sbr.rel (%p646) target = $region100
        $region99: #{_forward.1} parent=87 // pred_region
          %650 = dma.done [#allocation6], 16
        $region100: #{_forward.1} parent=87 // pred_fallthru
          _
        // Predicated region
        $region101: #{_forward.1} parent=87 // pred_check
          %p651 = pneg %p124
        $region102: #{_forward.1} parent=87 // pred_check_branch
          %653 = sbr.rel (%p651) target = $region104
        $region103: #{_forward.1} parent=87 // pred_region
          %655 = dma.done [#allocation9], 2048
        $region104: #{_forward.1} parent=87 // pred_fallthru
          _
        // Predicated region
        $region105: #{_forward.1} parent=87 // pred_check
          %p656 = pneg %p145
        $region106: #{_forward.1} parent=87 // pred_check_branch
          %658 = sbr.rel (%p656) target = $region108
        $region107: #{_forward.1} parent=87 // pred_region
          %660 = dma.done [#allocation9], 32
        $region108: #{_forward.1} parent=87 // pred_fallthru
          _
        // Predicated region
        $region109: #{_forward.1} parent=87 // pred_check
          %p661 = pneg %p166
        $region110: #{_forward.1} parent=87 // pred_check_branch
          %663 = sbr.rel (%p661) target = $region112
        $region111: #{_forward.1} parent=87 // pred_region
          %665 = dma.done [#allocation12], 8192
        $region112: #{_forward.1} parent=87 // pred_fallthru
          _
        // Predicated region
        $region113: #{_forward.1} parent=87 // pred_check
          %p666 = pneg %p208
        $region114: #{_forward.1} parent=87 // pred_check_branch
          %668 = sbr.rel (%p666) target = $region116
        $region115: #{_forward.1} parent=87 // pred_region
          %670 = dma.done [#allocation12], 32768
        $region116: #{_forward.1} parent=87 // pred_fallthru
          _
        // Predicated region
        $region117: #{_forward.1} parent=87 // pred_check
          %p671 = pneg %p229
        $region118: #{_forward.1} parent=87 // pred_check_branch
          %673 = sbr.rel (%p671) target = $region120
        $region119: #{_forward.1} parent=87 // pred_region
          %675 = dma.done [#allocation15], 128
        $region120: #{_forward.1} parent=87 // pred_fallthru
          _
        // Predicated region
        $region121: #{_forward.1} parent=87 // pred_check
          %p676 = pneg %p250
        $region122: #{_forward.1} parent=87 // pred_check_branch
          %678 = sbr.rel (%p676) target = $region124
        $region123: #{_forward.1} parent=87 // pred_region
          %680 = dma.done [#allocation15], 32768
        $region124: #{_forward.1} parent=87 // pred_fallthru
          _
        // Predicated region
        $region125: #{_forward.1} parent=87 // pred_check
          %p681 = pneg %p292
        $region126: #{_forward.1} parent=87 // pred_check_branch
          %683 = sbr.rel (%p681) target = $region128
        $region127: #{_forward.1} parent=87 // pred_region
          %685 = dma.done [#allocation18], 8192
        $region128: #{_forward.1} parent=87 // pred_fallthru
          _
        // Predicated region
        $region129: #{_forward.1} parent=87 // pred_check
          %p686 = pneg %p334
        $region130: #{_forward.1} parent=87 // pred_check_branch
          %688 = sbr.rel (%p686) target = $region132
        $region131: #{_forward.1} parent=87 // pred_region
          %690 = dma.done [#allocation18], 2048
        $region132: #{_forward.1} parent=87 // pred_fallthru
          _
        // Predicated region
        $region133: #{_forward.1} parent=87 // pred_check
          %p691 = pneg %p376
        $region134: #{_forward.1} parent=87 // pred_check_branch
          %693 = sbr.rel (%p691) target = $region136
        $region135: #{_forward.1} parent=87 // pred_region
          %695 = dma.done [#allocation21], 1024
        $region136: #{_forward.1} parent=87 // pred_fallthru
          _
        %s696 = sand.u32 %s48, 1
        %s697 = scalar_lea.sflag [#allocation3], %s696
        %s698 = sand.u32 %s48, 1
        %s699 = smul.addr %s698, 8
        %s700 = scalar_lea.vmem [#allocation2], %s699
        %p701 = pneg %p61
        %p702 = pneg %p58
        %p703 = pneg %p82
        %p704 = pneg %p79
        %p705 = pneg %p103
        %p706 = pneg %p100
        %p707 = pneg %p124
        %p708 = pneg %p121
        %p709 = pneg %p145
        %p710 = pneg %p142
        %p711 = pneg %p166
        %p712 = pneg %p163
        %p713 = pneg %p187
        %p714 = pneg %p184
        %p715 = pneg %p208
        %p716 = pneg %p205
        %p717 = pneg %p229
        %p718 = pneg %p226
        %p719 = pneg %p250
        %p720 = pneg %p247
        %p721 = pneg %p271
        %p722 = pneg %p268
        %p723 = pneg %p292
        %p724 = pneg %p289
        %p725 = pneg %p313
        %p726 = pneg %p310
        %p727 = pneg %p334
        %p728 = pneg %p331
        %p729 = pneg %p355
        %p730 = pneg %p352
        %p731 = pneg %p376
        %p732 = pneg %p373
        %p733 = pneg %p397
        %p734 = pneg %p394
        %p735 = pneg %p423
        %p736 = pneg %p420
        %s737 = sand.u32 %s410, 1
        %s738 = scalar_lea.sflag [#allocation4], %s737
        %s739 = sand.u32 %s410, 1
        %s740 = smul.addr %s739, 8
        %s741 = scalar_lea.vmem [#allocation22], %s740
        %v742 = vld [vmem:[%s635] sm:$0xff]
        %v743 = vpack.c.bf16 %v742, %v742
        %v744 = vld [vmem:[#allocation5] sm:$0xf]
        %v745 = vld [vmem:[#allocation5 + $0x4] sm:$0xf]
        %v746 = vld [vmem:[#allocation5 + $0x8] sm:$0xf]
        %v747 = vld [vmem:[#allocation5 + $0xc] sm:$0xf]
        %v748 = vld [vmem:[#allocation5 + $0x10] sm:$0xf]
        %v749 = vld [vmem:[#allocation5 + $0x14] sm:$0xf]
        %v750 = vld [vmem:[#allocation5 + $0x18] sm:$0xf]
        %v751 = vld [vmem:[#allocation5 + $0x1c] sm:$0xf]
        %v752 = vld [vmem:[#allocation5 + $0x20] sm:$0xf]
        %v753 = vld [vmem:[#allocation5 + $0x24] sm:$0xf]
        %v754 = vld [vmem:[#allocation5 + $0x28] sm:$0xf]
        %v755 = vld [vmem:[#allocation5 + $0x2c] sm:$0xf]
        %v756 = vld [vmem:[#allocation5 + $0x30] sm:$0xf]
        %v757 = vld [vmem:[#allocation5 + $0x34] sm:$0xf]
        %v758 = vld [vmem:[#allocation5 + $0x38] sm:$0xf]
        %v759 = vld [vmem:[#allocation5 + $0x3c] sm:$0xf]
        %v760 = vld [vmem:[#allocation7] sm:$0x1]
        %v762 = vperm.slane %v760, 0
        %v780 = vunpack.c.l.b16 %v744
        %v781 = vunpack.c.l.b16 %v745
        %v782 = vunpack.c.l.b16 %v746
        %v783 = vunpack.c.l.b16 %v747
        %v784 = vunpack.c.l.b16 %v748
        %v785 = vunpack.c.l.b16 %v749
        %v786 = vunpack.c.l.b16 %v750
        %v787 = vunpack.c.l.b16 %v751
        %v788 = vunpack.c.l.b16 %v752
        %v789 = vunpack.c.l.b16 %v753
        %v790 = vunpack.c.l.b16 %v754
        %v791 = vunpack.c.l.b16 %v755
        %v792 = vunpack.c.l.b16 %v756
        %v793 = vunpack.c.l.b16 %v757
        %v794 = vunpack.c.l.b16 %v758
        %v795 = vunpack.c.l.b16 %v759
        %v796 = vpack.c.b16 %v781, %v780
        %v797 = vpack.c.b16 %v783, %v782
        %v798 = vpack.c.b16 %v785, %v784
        %v799 = vpack.c.b16 %v787, %v786
        %v800 = vpack.c.b16 %v789, %v788
        %v801 = vpack.c.b16 %v791, %v790
        %v802 = vpack.c.b16 %v793, %v792
        %v803 = vpack.c.b16 %v795, %v794
        %812 = vmatpush.bf16.msra.mxu0 %v803
        %813 = vmatpush.bf16.msra.mxu0 %v802
        %814 = vmatpush.bf16.msra.mxu0 %v801
        %815 = vmatpush.bf16.msra.mxu0 %v800
        %816 = vmatpush.bf16.msra.mxu0 %v799
        %817 = vmatpush.bf16.msra.mxu0 %v798
        %818 = vmatpush.bf16.msra.mxu0 %v797
        %819 = vmatpush.bf16.msra.mxu0 %v796
        %820 = vmatmul.bf16.gmra.mxu0 %v743
        %v821 = vpop.f32.mrf.mxu0
        %v822 = vadd.f32 %v762, %v821
        %v823 = vpop.f32.mrf.mxu0
        %824 = vdwg.mxu0
        %v825 = vmax.f32 %v822, 0.0
        %v826 = vpack.c.bf16 %v825, %v825
        %v827 = vld [vmem:[#allocation8] sm:$0xff]
        %v828 = vld [vmem:[#allocation8 + $0x8] sm:$0xff]
        %v829 = vld [vmem:[#allocation8 + $0x10] sm:$0xff]
        %v830 = vld [vmem:[#allocation8 + $0x18] sm:$0xff]
        %v831 = vld [vmem:[#allocation8 + $0x20] sm:$0xff]
        %v832 = vld [vmem:[#allocation8 + $0x28] sm:$0xff]
        %v833 = vld [vmem:[#allocation8 + $0x30] sm:$0xff]
        %v834 = vld [vmem:[#allocation8 + $0x38] sm:$0xff]
        %v835 = vld [vmem:[#allocation8 + $0x40] sm:$0xff]
        %v836 = vld [vmem:[#allocation8 + $0x48] sm:$0xff]
        %v837 = vld [vmem:[#allocation8 + $0x50] sm:$0xff]
        %v838 = vld [vmem:[#allocation8 + $0x58] sm:$0xff]
        %v839 = vld [vmem:[#allocation8 + $0x60] sm:$0xff]
        %v840 = vld [vmem:[#allocation8 + $0x68] sm:$0xff]
        %v841 = vld [vmem:[#allocation8 + $0x70] sm:$0xff]
        %v842 = vld [vmem:[#allocation8 + $0x78] sm:$0xff]
        %v843 = vld [vmem:[#allocation10] sm:$0x3]
        %v845 = vperm.slane %v843, 0
        %v846 = vperm.slane %v843, 1
        %v865 = vunpack.c.l.b16 %v827
        %v866 = vunpack.c.h.b16 %v827
        %v867 = vunpack.c.l.b16 %v828
        %v868 = vunpack.c.h.b16 %v828
        %v869 = vunpack.c.l.b16 %v829
        %v870 = vunpack.c.h.b16 %v829
        %v871 = vunpack.c.l.b16 %v830
        %v872 = vunpack.c.h.b16 %v830
        %v873 = vunpack.c.l.b16 %v831
        %v874 = vunpack.c.h.b16 %v831
        %v875 = vunpack.c.l.b16 %v832
        %v876 = vunpack.c.h.b16 %v832
        %v877 = vunpack.c.l.b16 %v833
        %v878 = vunpack.c.h.b16 %v833
        %v879 = vunpack.c.l.b16 %v834
        %v880 = vunpack.c.h.b16 %v834
        %v881 = vunpack.c.l.b16 %v835
        %v882 = vunpack.c.h.b16 %v835
        %v883 = vunpack.c.l.b16 %v836
        %v884 = vunpack.c.h.b16 %v836
        %v885 = vunpack.c.l.b16 %v837
        %v886 = vunpack.c.h.b16 %v837
        %v887 = vunpack.c.l.b16 %v838
        %v888 = vunpack.c.h.b16 %v838
        %v889 = vunpack.c.l.b16 %v839
        %v890 = vunpack.c.h.b16 %v839
        %v891 = vunpack.c.l.b16 %v840
        %v892 = vunpack.c.h.b16 %v840
        %v893 = vunpack.c.l.b16 %v841
        %v894 = vunpack.c.h.b16 %v841
        %v895 = vunpack.c.l.b16 %v842
        %v896 = vunpack.c.h.b16 %v842
        %v897 = vpack.c.b16 %v867, %v865
        %v898 = vpack.c.b16 %v868, %v866
        %v899 = vpack.c.b16 %v871, %v869
        %v900 = vpack.c.b16 %v872, %v870
        %v901 = vpack.c.b16 %v875, %v873
        %v902 = vpack.c.b16 %v876, %v874
        %v903 = vpack.c.b16 %v879, %v877
        %v904 = vpack.c.b16 %v880, %v878
        %v905 = vpack.c.b16 %v883, %v881
        %v906 = vpack.c.b16 %v884, %v882
        %v907 = vpack.c.b16 %v887, %v885
        %v908 = vpack.c.b16 %v888, %v886
        %v909 = vpack.c.b16 %v891, %v889
        %v910 = vpack.c.b16 %v892, %v890
        %v911 = vpack.c.b16 %v895, %v893
        %v912 = vpack.c.b16 %v896, %v894
        %929 = vmatpush.bf16.msra.mxu0 %v911
        %930 = vmatpush.bf16.msra.mxu0 %v909
        %931 = vmatpush.bf16.msra.mxu0 %v907
        %932 = vmatpush.bf16.msra.mxu0 %v905
        %933 = vmatpush.bf16.msra.mxu0 %v903
        %934 = vmatpush.bf16.msra.mxu0 %v901
        %935 = vmatpush.bf16.msra.mxu0 %v899
        %936 = vmatpush.bf16.msra.mxu0 %v897
        %937 = vmatmul.bf16.gmra.mxu0 %v826
        %v938 = vpop.f32.mrf.mxu0
        %v939 = vadd.f32 %v845, %v938
        %v940 = vpop.f32.mrf.mxu0
        %941 = vdwg.mxu0
        %942 = vmatpush.bf16.msra.mxu0 %v912
        %943 = vmatpush.bf16.msra.mxu0 %v910
        %944 = vmatpush.bf16.msra.mxu0 %v908
        %945 = vmatpush.bf16.msra.mxu0 %v906
        %946 = vmatpush.bf16.msra.mxu0 %v904
        %947 = vmatpush.bf16.msra.mxu0 %v902
        %948 = vmatpush.bf16.msra.mxu0 %v900
        %949 = vmatpush.bf16.msra.mxu0 %v898
        %950 = vmatmul.bf16.gmra.mxu0 %v826
        %v951 = vpop.f32.mrf.mxu0
        %v952 = vadd.f32 %v846, %v951
        %v953 = vpop.f32.mrf.mxu0
        %954 = vdwg.mxu0
        %v955 = vmax.f32 %v939, 0.0
        %v956 = vmax.f32 %v952, 0.0
        %v957 = vpack.c.bf16 %v955, %v955
        %v958 = vpack.c.bf16 %v956, %v956
        %v959 = vld [vmem:[#allocation11] sm:$0xff]
        %v960 = vld [vmem:[#allocation11 + $0x8] sm:$0xff]
        %v961 = vld [vmem:[#allocation11 + $0x10] sm:$0xff]
        %v962 = vld [vmem:[#allocation11 + $0x18] sm:$0xff]
        %v963 = vld [vmem:[#allocation11 + $0x20] sm:$0xff]
        %v964 = vld [vmem:[#allocation11 + $0x28] sm:$0xff]
        %v965 = vld [vmem:[#allocation11 + $0x30] sm:$0xff]
        %v966 = vld [vmem:[#allocation11 + $0x38] sm:$0xff]
        %v967 = vld [vmem:[#allocation11 + $0x40] sm:$0xff]
        %v968 = vld [vmem:[#allocation11 + $0x48] sm:$0xff]
        %v969 = vld [vmem:[#allocation11 + $0x50] sm:$0xff]
        %v970 = vld [vmem:[#allocation11 + $0x58] sm:$0xff]
        %v971 = vld [vmem:[#allocation11 + $0x60] sm:$0xff]
        %v972 = vld [vmem:[#allocation11 + $0x68] sm:$0xff]
        %v973 = vld [vmem:[#allocation11 + $0x70] sm:$0xff]
        %v974 = vld [vmem:[#allocation11 + $0x78] sm:$0xff]
        %v975 = vld [vmem:[#allocation11 + $0x80] sm:$0xff]
        %v976 = vld [vmem:[#allocation11 + $0x88] sm:$0xff]
        %v977 = vld [vmem:[#allocation11 + $0x90] sm:$0xff]
        %v978 = vld [vmem:[#allocation11 + $0x98] sm:$0xff]
        %v979 = vld [vmem:[#allocation11 + $0xa0] sm:$0xff]
        %v980 = vld [vmem:[#allocation11 + $0xa8] sm:$0xff]
        %v981 = vld [vmem:[#allocation11 + $0xb0] sm:$0xff]
        %v982 = vld [vmem:[#allocation11 + $0xb8] sm:$0xff]
        %v983 = vld [vmem:[#allocation11 + $0xc0] sm:$0xff]
        %v984 = vld [vmem:[#allocation11 + $0xc8] sm:$0xff]
        %v985 = vld [vmem:[#allocation11 + $0xd0] sm:$0xff]
        %v986 = vld [vmem:[#allocation11 + $0xd8] sm:$0xff]
        %v987 = vld [vmem:[#allocation11 + $0xe0] sm:$0xff]
        %v988 = vld [vmem:[#allocation11 + $0xe8] sm:$0xff]
        %v989 = vld [vmem:[#allocation11 + $0xf0] sm:$0xff]
        %v990 = vld [vmem:[#allocation11 + $0xf8] sm:$0xff]
        %v991 = vld [vmem:[#allocation11 + $0x100] sm:$0xff]
        %v992 = vld [vmem:[#allocation11 + $0x108] sm:$0xff]
        %v993 = vld [vmem:[#allocation11 + $0x110] sm:$0xff]
        %v994 = vld [vmem:[#allocation11 + $0x118] sm:$0xff]
        %v995 = vld [vmem:[#allocation11 + $0x120] sm:$0xff]
        %v996 = vld [vmem:[#allocation11 + $0x128] sm:$0xff]
        %v997 = vld [vmem:[#allocation11 + $0x130] sm:$0xff]
        %v998 = vld [vmem:[#allocation11 + $0x138] sm:$0xff]
        %v999 = vld [vmem:[#allocation11 + $0x140] sm:$0xff]
        %v1000 = vld [vmem:[#allocation11 + $0x148] sm:$0xff]
        %v1001 = vld [vmem:[#allocation11 + $0x150] sm:$0xff]
        %v1002 = vld [vmem:[#allocation11 + $0x158] sm:$0xff]
        %v1003 = vld [vmem:[#allocation11 + $0x160] sm:$0xff]
        %v1004 = vld [vmem:[#allocation11 + $0x168] sm:$0xff]
        %v1005 = vld [vmem:[#allocation11 + $0x170] sm:$0xff]
        %v1006 = vld [vmem:[#allocation11 + $0x178] sm:$0xff]
        %v1007 = vld [vmem:[#allocation11 + $0x180] sm:$0xff]
        %v1008 = vld [vmem:[#allocation11 + $0x188] sm:$0xff]
        %v1009 = vld [vmem:[#allocation11 + $0x190] sm:$0xff]
        %v1010 = vld [vmem:[#allocation11 + $0x198] sm:$0xff]
        %v1011 = vld [vmem:[#allocation11 + $0x1a0] sm:$0xff]
        %v1012 = vld [vmem:[#allocation11 + $0x1a8] sm:$0xff]
        %v1013 = vld [vmem:[#allocation11 + $0x1b0] sm:$0xff]
        %v1014 = vld [vmem:[#allocation11 + $0x1b8] sm:$0xff]
        %v1015 = vld [vmem:[#allocation11 + $0x1c0] sm:$0xff]
        %v1016 = vld [vmem:[#allocation11 + $0x1c8] sm:$0xff]
        %v1017 = vld [vmem:[#allocation11 + $0x1d0] sm:$0xff]
        %v1018 = vld [vmem:[#allocation11 + $0x1d8] sm:$0xff]
        %v1019 = vld [vmem:[#allocation11 + $0x1e0] sm:$0xff]
        %v1020 = vld [vmem:[#allocation11 + $0x1e8] sm:$0xff]
        %v1021 = vld [vmem:[#allocation11 + $0x1f0] sm:$0xff]
        %v1022 = vld [vmem:[#allocation11 + $0x1f8] sm:$0xff]
        %v1023 = vld [vmem:[%s6] sm:$0xf]
        %v1025 = vperm.slane %v1023, 0
        %v1026 = vperm.slane %v1023, 1
        %v1027 = vperm.slane %v1023, 2
        %v1028 = vperm.slane %v1023, 3
        %v1097 = vunpack.c.l.b16 %v959
        %v1098 = vunpack.c.h.b16 %v959
        %v1099 = vunpack.c.l.b16 %v960
        %v1100 = vunpack.c.h.b16 %v960
        %v1101 = vunpack.c.l.b16 %v961
        %v1102 = vunpack.c.h.b16 %v961
        %v1103 = vunpack.c.l.b16 %v962
        %v1104 = vunpack.c.h.b16 %v962
        %v1105 = vunpack.c.l.b16 %v963
        %v1106 = vunpack.c.h.b16 %v963
        %v1107 = vunpack.c.l.b16 %v964
        %v1108 = vunpack.c.h.b16 %v964
        %v1109 = vunpack.c.l.b16 %v965
        %v1110 = vunpack.c.h.b16 %v965
        %v1111 = vunpack.c.l.b16 %v966
        %v1112 = vunpack.c.h.b16 %v966
        %v1113 = vunpack.c.l.b16 %v967
        %v1114 = vunpack.c.h.b16 %v967
        %v1115 = vunpack.c.l.b16 %v968
        %v1116 = vunpack.c.h.b16 %v968
        %v1117 = vunpack.c.l.b16 %v969
        %v1118 = vunpack.c.h.b16 %v969
        %v1119 = vunpack.c.l.b16 %v970
        %v1120 = vunpack.c.h.b16 %v970
        %v1121 = vunpack.c.l.b16 %v971
        %v1122 = vunpack.c.h.b16 %v971
        %v1123 = vunpack.c.l.b16 %v972
        %v1124 = vunpack.c.h.b16 %v972
        %v1125 = vunpack.c.l.b16 %v973
        %v1126 = vunpack.c.h.b16 %v973
        %v1127 = vunpack.c.l.b16 %v974
        %v1128 = vunpack.c.h.b16 %v974
        %v1129 = vunpack.c.l.b16 %v975
        %v1130 = vunpack.c.h.b16 %v975
        %v1131 = vunpack.c.l.b16 %v976
        %v1132 = vunpack.c.h.b16 %v976
        %v1133 = vunpack.c.l.b16 %v977
        %v1134 = vunpack.c.h.b16 %v977
        %v1135 = vunpack.c.l.b16 %v978
        %v1136 = vunpack.c.h.b16 %v978
        %v1137 = vunpack.c.l.b16 %v979
        %v1138 = vunpack.c.h.b16 %v979
        %v1139 = vunpack.c.l.b16 %v980
        %v1140 = vunpack.c.h.b16 %v980
        %v1141 = vunpack.c.l.b16 %v981
        %v1142 = vunpack.c.h.b16 %v981
        %v1143 = vunpack.c.l.b16 %v982
        %v1144 = vunpack.c.h.b16 %v982
        %v1145 = vunpack.c.l.b16 %v983
        %v1146 = vunpack.c.h.b16 %v983
        %v1147 = vunpack.c.l.b16 %v984
        %v1148 = vunpack.c.h.b16 %v984
        %v1149 = vunpack.c.l.b16 %v985
        %v1150 = vunpack.c.h.b16 %v985
        %v1151 = vunpack.c.l.b16 %v986
        %v1152 = vunpack.c.h.b16 %v986
        %v1153 = vunpack.c.l.b16 %v987
        %v1154 = vunpack.c.h.b16 %v987
        %v1155 = vunpack.c.l.b16 %v988
        %v1156 = vunpack.c.h.b16 %v988
        %v1157 = vunpack.c.l.b16 %v989
        %v1158 = vunpack.c.h.b16 %v989
        %v1159 = vunpack.c.l.b16 %v990
        %v1160 = vunpack.c.h.b16 %v990
        %v1161 = vunpack.c.l.b16 %v991
        %v1162 = vunpack.c.h.b16 %v991
        %v1163 = vunpack.c.l.b16 %v992
        %v1164 = vunpack.c.h.b16 %v992
        %v1165 = vunpack.c.l.b16 %v993
        %v1166 = vunpack.c.h.b16 %v993
        %v1167 = vunpack.c.l.b16 %v994
        %v1168 = vunpack.c.h.b16 %v994
        %v1169 = vunpack.c.l.b16 %v995
        %v1170 = vunpack.c.h.b16 %v995
        %v1171 = vunpack.c.l.b16 %v996
        %v1172 = vunpack.c.h.b16 %v996
        %v1173 = vunpack.c.l.b16 %v997
        %v1174 = vunpack.c.h.b16 %v997
        %v1175 = vunpack.c.l.b16 %v998
        %v1176 = vunpack.c.h.b16 %v998
        %v1177 = vunpack.c.l.b16 %v999
        %v1178 = vunpack.c.h.b16 %v999
        %v1179 = vunpack.c.l.b16 %v1000
        %v1180 = vunpack.c.h.b16 %v1000
        %v1181 = vunpack.c.l.b16 %v1001
        %v1182 = vunpack.c.h.b16 %v1001
        %v1183 = vunpack.c.l.b16 %v1002
        %v1184 = vunpack.c.h.b16 %v1002
        %v1185 = vunpack.c.l.b16 %v1003
        %v1186 = vunpack.c.h.b16 %v1003
        %v1187 = vunpack.c.l.b16 %v1004
        %v1188 = vunpack.c.h.b16 %v1004
        %v1189 = vunpack.c.l.b16 %v1005
        %v1190 = vunpack.c.h.b16 %v1005
        %v1191 = vunpack.c.l.b16 %v1006
        %v1192 = vunpack.c.h.b16 %v1006
        %v1193 = vunpack.c.l.b16 %v1007
        %v1194 = vunpack.c.h.b16 %v1007
        %v1195 = vunpack.c.l.b16 %v1008
        %v1196 = vunpack.c.h.b16 %v1008
        %v1197 = vunpack.c.l.b16 %v1009
        %v1198 = vunpack.c.h.b16 %v1009
        %v1199 = vunpack.c.l.b16 %v1010
        %v1200 = vunpack.c.h.b16 %v1010
        %v1201 = vunpack.c.l.b16 %v1011
        %v1202 = vunpack.c.h.b16 %v1011
        %v1203 = vunpack.c.l.b16 %v1012
        %v1204 = vunpack.c.h.b16 %v1012
        %v1205 = vunpack.c.l.b16 %v1013
        %v1206 = vunpack.c.h.b16 %v1013
        %v1207 = vunpack.c.l.b16 %v1014
        %v1208 = vunpack.c.h.b16 %v1014
        %v1209 = vunpack.c.l.b16 %v1015
        %v1210 = vunpack.c.h.b16 %v1015
        %v1211 = vunpack.c.l.b16 %v1016
        %v1212 = vunpack.c.h.b16 %v1016
        %v1213 = vunpack.c.l.b16 %v1017
        %v1214 = vunpack.c.h.b16 %v1017
        %v1215 = vunpack.c.l.b16 %v1018
        %v1216 = vunpack.c.h.b16 %v1018
        %v1217 = vunpack.c.l.b16 %v1019
        %v1218 = vunpack.c.h.b16 %v1019
        %v1219 = vunpack.c.l.b16 %v1020
        %v1220 = vunpack.c.h.b16 %v1020
        %v1221 = vunpack.c.l.b16 %v1021
        %v1222 = vunpack.c.h.b16 %v1021
        %v1223 = vunpack.c.l.b16 %v1022
        %v1224 = vunpack.c.h.b16 %v1022
        %v1225 = vpack.c.b16 %v1101, %v1097
        %v1226 = vpack.c.b16 %v1102, %v1098
        %v1227 = vpack.c.b16 %v1103, %v1099
        %v1228 = vpack.c.b16 %v1104, %v1100
        %v1229 = vpack.c.b16 %v1109, %v1105
        %v1230 = vpack.c.b16 %v1110, %v1106
        %v1231 = vpack.c.b16 %v1111, %v1107
        %v1232 = vpack.c.b16 %v1112, %v1108
        %v1233 = vpack.c.b16 %v1117, %v1113
        %v1234 = vpack.c.b16 %v1118, %v1114
        %v1235 = vpack.c.b16 %v1119, %v1115
        %v1236 = vpack.c.b16 %v1120, %v1116
        %v1237 = vpack.c.b16 %v1125, %v1121
        %v1238 = vpack.c.b16 %v1126, %v1122
        %v1239 = vpack.c.b16 %v1127, %v1123
        %v1240 = vpack.c.b16 %v1128, %v1124
        %v1241 = vpack.c.b16 %v1133, %v1129
        %v1242 = vpack.c.b16 %v1134, %v1130
        %v1243 = vpack.c.b16 %v1135, %v1131
        %v1244 = vpack.c.b16 %v1136, %v1132
        %v1245 = vpack.c.b16 %v1141, %v1137
        %v1246 = vpack.c.b16 %v1142, %v1138
        %v1247 = vpack.c.b16 %v1143, %v1139
        %v1248 = vpack.c.b16 %v1144, %v1140
        %v1249 = vpack.c.b16 %v1149, %v1145
        %v1250 = vpack.c.b16 %v1150, %v1146
        %v1251 = vpack.c.b16 %v1151, %v1147
        %v1252 = vpack.c.b16 %v1152, %v1148
        %v1253 = vpack.c.b16 %v1157, %v1153
        %v1254 = vpack.c.b16 %v1158, %v1154
        %v1255 = vpack.c.b16 %v1159, %v1155
        %v1256 = vpack.c.b16 %v1160, %v1156
        %v1257 = vpack.c.b16 %v1165, %v1161
        %v1258 = vpack.c.b16 %v1166, %v1162
        %v1259 = vpack.c.b16 %v1167, %v1163
        %v1260 = vpack.c.b16 %v1168, %v1164
        %v1261 = vpack.c.b16 %v1173, %v1169
        %v1262 = vpack.c.b16 %v1174, %v1170
        %v1263 = vpack.c.b16 %v1175, %v1171
        %v1264 = vpack.c.b16 %v1176, %v1172
        %v1265 = vpack.c.b16 %v1181, %v1177
        %v1266 = vpack.c.b16 %v1182, %v1178
        %v1267 = vpack.c.b16 %v1183, %v1179
        %v1268 = vpack.c.b16 %v1184, %v1180
        %v1269 = vpack.c.b16 %v1189, %v1185
        %v1270 = vpack.c.b16 %v1190, %v1186
        %v1271 = vpack.c.b16 %v1191, %v1187
        %v1272 = vpack.c.b16 %v1192, %v1188
        %v1273 = vpack.c.b16 %v1197, %v1193
        %v1274 = vpack.c.b16 %v1198, %v1194
        %v1275 = vpack.c.b16 %v1199, %v1195
        %v1276 = vpack.c.b16 %v1200, %v1196
        %v1277 = vpack.c.b16 %v1205, %v1201
        %v1278 = vpack.c.b16 %v1206, %v1202
        %v1279 = vpack.c.b16 %v1207, %v1203
        %v1280 = vpack.c.b16 %v1208, %v1204
        %v1281 = vpack.c.b16 %v1213, %v1209
        %v1282 = vpack.c.b16 %v1214, %v1210
        %v1283 = vpack.c.b16 %v1215, %v1211
        %v1284 = vpack.c.b16 %v1216, %v1212
        %v1285 = vpack.c.b16 %v1221, %v1217
        %v1286 = vpack.c.b16 %v1222, %v1218
        %v1287 = vpack.c.b16 %v1223, %v1219
        %v1288 = vpack.c.b16 %v1224, %v1220
        %1353 = vmatpush.bf16.msra.mxu0 %v1253
        %1354 = vmatpush.bf16.msra.mxu0 %v1249
        %1355 = vmatpush.bf16.msra.mxu0 %v1245
        %1356 = vmatpush.bf16.msra.mxu0 %v1241
        %1357 = vmatpush.bf16.msra.mxu0 %v1237
        %1358 = vmatpush.bf16.msra.mxu0 %v1233
        %1359 = vmatpush.bf16.msra.mxu0 %v1229
        %1360 = vmatpush.bf16.msra.mxu0 %v1225
        %1361 = vmatmul.bf16.gmra.mxu0 %v957
        %v1362 = vpop.f32.mrf.mxu0
        %v1363 = vadd.f32 %v1025, %v1362
        %v1364 = vpop.f32.mrf.mxu0
        %1365 = vdwg.mxu0
        %1366 = vmatpush.bf16.msra.mxu0 %v1285
        %1367 = vmatpush.bf16.msra.mxu0 %v1281
        %1368 = vmatpush.bf16.msra.mxu0 %v1277
        %1369 = vmatpush.bf16.msra.mxu0 %v1273
        %1370 = vmatpush.bf16.msra.mxu0 %v1269
        %1371 = vmatpush.bf16.msra.mxu0 %v1265
        %1372 = vmatpush.bf16.msra.mxu0 %v1261
        %1373 = vmatpush.bf16.msra.mxu0 %v1257
        %1374 = vmatmul.bf16.gmra.mxu0 %v958
        %v1375 = vpop.f32.mrf.mxu0
        %v1376 = vadd.f32 %v1363, %v1375
        %v1377 = vpop.f32.mrf.mxu0
        %1378 = vdwg.mxu0
        %1379 = vmatpush.bf16.msra.mxu0 %v1254
        %1380 = vmatpush.bf16.msra.mxu0 %v1250
        %1381 = vmatpush.bf16.msra.mxu0 %v1246
        %1382 = vmatpush.bf16.msra.mxu0 %v1242
        %1383 = vmatpush.bf16.msra.mxu0 %v1238
        %1384 = vmatpush.bf16.msra.mxu0 %v1234
        %1385 = vmatpush.bf16.msra.mxu0 %v1230
        %1386 = vmatpush.bf16.msra.mxu0 %v1226
        %1387 = vmatmul.bf16.gmra.mxu0 %v957
        %v1388 = vpop.f32.mrf.mxu0
        %v1389 = vadd.f32 %v1026, %v1388
        %v1390 = vpop.f32.mrf.mxu0
        %1391 = vdwg.mxu0
        %1392 = vmatpush.bf16.msra.mxu0 %v1286
        %1393 = vmatpush.bf16.msra.mxu0 %v1282
        %1394 = vmatpush.bf16.msra.mxu0 %v1278
        %1395 = vmatpush.bf16.msra.mxu0 %v1274
        %1396 = vmatpush.bf16.msra.mxu0 %v1270
        %1397 = vmatpush.bf16.msra.mxu0 %v1266
        %1398 = vmatpush.bf16.msra.mxu0 %v1262
        %1399 = vmatpush.bf16.msra.mxu0 %v1258
        %1400 = vmatmul.bf16.gmra.mxu0 %v958
        %v1401 = vpop.f32.mrf.mxu0
        %v1402 = vadd.f32 %v1389, %v1401
        %v1403 = vpop.f32.mrf.mxu0
        %1404 = vdwg.mxu0
        %1405 = vmatpush.bf16.msra.mxu0 %v1255
        %1406 = vmatpush.bf16.msra.mxu0 %v1251
        %1407 = vmatpush.bf16.msra.mxu0 %v1247
        %1408 = vmatpush.bf16.msra.mxu0 %v1243
        %1409 = vmatpush.bf16.msra.mxu0 %v1239
        %1410 = vmatpush.bf16.msra.mxu0 %v1235
        %1411 = vmatpush.bf16.msra.mxu0 %v1231
        %1412 = vmatpush.bf16.msra.mxu0 %v1227
        %1413 = vmatmul.bf16.gmra.mxu0 %v957
        %v1414 = vpop.f32.mrf.mxu0
        %v1415 = vadd.f32 %v1027, %v1414
        %v1416 = vpop.f32.mrf.mxu0
        %1417 = vdwg.mxu0
        %1418 = vmatpush.bf16.msra.mxu0 %v1287
        %1419 = vmatpush.bf16.msra.mxu0 %v1283
        %1420 = vmatpush.bf16.msra.mxu0 %v1279
        %1421 = vmatpush.bf16.msra.mxu0 %v1275
        %1422 = vmatpush.bf16.msra.mxu0 %v1271
        %1423 = vmatpush.bf16.msra.mxu0 %v1267
        %1424 = vmatpush.bf16.msra.mxu0 %v1263
        %1425 = vmatpush.bf16.msra.mxu0 %v1259
        %1426 = vmatmul.bf16.gmra.mxu0 %v958
        %v1427 = vpop.f32.mrf.mxu0
        %v1428 = vadd.f32 %v1415, %v1427
        %v1429 = vpop.f32.mrf.mxu0
        %1430 = vdwg.mxu0
        %1431 = vmatpush.bf16.msra.mxu0 %v1256
        %1432 = vmatpush.bf16.msra.mxu0 %v1252
        %1433 = vmatpush.bf16.msra.mxu0 %v1248
        %1434 = vmatpush.bf16.msra.mxu0 %v1244
        %1435 = vmatpush.bf16.msra.mxu0 %v1240
        %1436 = vmatpush.bf16.msra.mxu0 %v1236
        %1437 = vmatpush.bf16.msra.mxu0 %v1232
        %1438 = vmatpush.bf16.msra.mxu0 %v1228
        %1439 = vmatmul.bf16.gmra.mxu0 %v957
        %v1440 = vpop.f32.mrf.mxu0
        %v1441 = vadd.f32 %v1028, %v1440
        %v1442 = vpop.f32.mrf.mxu0
        %1443 = vdwg.mxu0
        %1444 = vmatpush.bf16.msra.mxu0 %v1288
        %1445 = vmatpush.bf16.msra.mxu0 %v1284
        %1446 = vmatpush.bf16.msra.mxu0 %v1280
        %1447 = vmatpush.bf16.msra.mxu0 %v1276
        %1448 = vmatpush.bf16.msra.mxu0 %v1272
        %1449 = vmatpush.bf16.msra.mxu0 %v1268
        %1450 = vmatpush.bf16.msra.mxu0 %v1264
        %1451 = vmatpush.bf16.msra.mxu0 %v1260
        %1452 = vmatmul.bf16.gmra.mxu0 %v958
        %v1453 = vpop.f32.mrf.mxu0
        %v1454 = vadd.f32 %v1441, %v1453
        %v1455 = vpop.f32.mrf.mxu0
        %1456 = vdwg.mxu0
        %v1457 = vmax.f32 %v1376, 0.0
        %v1458 = vmax.f32 %v1402, 0.0
        %v1459 = vmax.f32 %v1428, 0.0
        %v1460 = vmax.f32 %v1454, 0.0
        %v1461 = vpack.c.bf16 %v1457, %v1457
        %v1462 = vpack.c.bf16 %v1458, %v1458
        %v1463 = vpack.c.bf16 %v1459, %v1459
        %v1464 = vpack.c.bf16 %v1460, %v1460
        %v1465 = vld [vmem:[#allocation13] sm:$0xff]
        %v1466 = vld [vmem:[#allocation13 + $0x8] sm:$0xff]
        %v1467 = vld [vmem:[#allocation13 + $0x10] sm:$0xff]
        %v1468 = vld [vmem:[#allocation13 + $0x18] sm:$0xff]
        %v1469 = vld [vmem:[#allocation13 + $0x20] sm:$0xff]
        %v1470 = vld [vmem:[#allocation13 + $0x28] sm:$0xff]
        %v1471 = vld [vmem:[#allocation13 + $0x30] sm:$0xff]
        %v1472 = vld [vmem:[#allocation13 + $0x38] sm:$0xff]
        %v1473 = vld [vmem:[#allocation13 + $0x40] sm:$0xff]
        %v1474 = vld [vmem:[#allocation13 + $0x48] sm:$0xff]
        %v1475 = vld [vmem:[#allocation13 + $0x50] sm:$0xff]
        %v1476 = vld [vmem:[#allocation13 + $0x58] sm:$0xff]
        %v1477 = vld [vmem:[#allocation13 + $0x60] sm:$0xff]
        %v1478 = vld [vmem:[#allocation13 + $0x68] sm:$0xff]
        %v1479 = vld [vmem:[#allocation13 + $0x70] sm:$0xff]
        %v1480 = vld [vmem:[#allocation13 + $0x78] sm:$0xff]
        %v1481 = vld [vmem:[#allocation13 + $0x80] sm:$0xff]
        %v1482 = vld [vmem:[#allocation13 + $0x88] sm:$0xff]
        %v1483 = vld [vmem:[#allocation13 + $0x90] sm:$0xff]
        %v1484 = vld [vmem:[#allocation13 + $0x98] sm:$0xff]
        %v1485 = vld [vmem:[#allocation13 + $0xa0] sm:$0xff]
        %v1486 = vld [vmem:[#allocation13 + $0xa8] sm:$0xff]
        %v1487 = vld [vmem:[#allocation13 + $0xb0] sm:$0xff]
        %v1488 = vld [vmem:[#allocation13 + $0xb8] sm:$0xff]
        %v1489 = vld [vmem:[#allocation13 + $0xc0] sm:$0xff]
        %v1490 = vld [vmem:[#allocation13 + $0xc8] sm:$0xff]
        %v1491 = vld [vmem:[#allocation13 + $0xd0] sm:$0xff]
        %v1492 = vld [vmem:[#allocation13 + $0xd8] sm:$0xff]
        %v1493 = vld [vmem:[#allocation13 + $0xe0] sm:$0xff]
        %v1494 = vld [vmem:[#allocation13 + $0xe8] sm:$0xff]
        %v1495 = vld [vmem:[#allocation13 + $0xf0] sm:$0xff]
        %v1496 = vld [vmem:[#allocation13 + $0xf8] sm:$0xff]
        %v1497 = vld [vmem:[#allocation13 + $0x100] sm:$0xff]
        %v1498 = vld [vmem:[#allocation13 + $0x108] sm:$0xff]
        %v1499 = vld [vmem:[#allocation13 + $0x110] sm:$0xff]
        %v1500 = vld [vmem:[#allocation13 + $0x118] sm:$0xff]
        %v1501 = vld [vmem:[#allocation13 + $0x120] sm:$0xff]
        %v1502 = vld [vmem:[#allocation13 + $0x128] sm:$0xff]
        %v1503 = vld [vmem:[#allocation13 + $0x130] sm:$0xff]
        %v1504 = vld [vmem:[#allocation13 + $0x138] sm:$0xff]
        %v1505 = vld [vmem:[#allocation13 + $0x140] sm:$0xff]
        %v1506 = vld [vmem:[#allocation13 + $0x148] sm:$0xff]
        %v1507 = vld [vmem:[#allocation13 + $0x150] sm:$0xff]
        %v1508 = vld [vmem:[#allocation13 + $0x158] sm:$0xff]
        %v1509 = vld [vmem:[#allocation13 + $0x160] sm:$0xff]
        %v1510 = vld [vmem:[#allocation13 + $0x168] sm:$0xff]
        %v1511 = vld [vmem:[#allocation13 + $0x170] sm:$0xff]
        %v1512 = vld [vmem:[#allocation13 + $0x178] sm:$0xff]
        %v1513 = vld [vmem:[#allocation13 + $0x180] sm:$0xff]
        %v1514 = vld [vmem:[#allocation13 + $0x188] sm:$0xff]
        %v1515 = vld [vmem:[#allocation13 + $0x190] sm:$0xff]
        %v1516 = vld [vmem:[#allocation13 + $0x198] sm:$0xff]
        %v1517 = vld [vmem:[#allocation13 + $0x1a0] sm:$0xff]
        %v1518 = vld [vmem:[#allocation13 + $0x1a8] sm:$0xff]
        %v1519 = vld [vmem:[#allocation13 + $0x1b0] sm:$0xff]
        %v1520 = vld [vmem:[#allocation13 + $0x1b8] sm:$0xff]
        %v1521 = vld [vmem:[#allocation13 + $0x1c0] sm:$0xff]
        %v1522 = vld [vmem:[#allocation13 + $0x1c8] sm:$0xff]
        %v1523 = vld [vmem:[#allocation13 + $0x1d0] sm:$0xff]
        %v1524 = vld [vmem:[#allocation13 + $0x1d8] sm:$0xff]
        %v1525 = vld [vmem:[#allocation13 + $0x1e0] sm:$0xff]
        %v1526 = vld [vmem:[#allocation13 + $0x1e8] sm:$0xff]
        %v1527 = vld [vmem:[#allocation13 + $0x1f0] sm:$0xff]
        %v1528 = vld [vmem:[#allocation13 + $0x1f8] sm:$0xff]
        %v1529 = vld [vmem:[#allocation13 + $0x200] sm:$0xff]
        %v1530 = vld [vmem:[#allocation13 + $0x208] sm:$0xff]
        %v1531 = vld [vmem:[#allocation13 + $0x210] sm:$0xff]
        %v1532 = vld [vmem:[#allocation13 + $0x218] sm:$0xff]
        %v1533 = vld [vmem:[#allocation13 + $0x220] sm:$0xff]
        %v1534 = vld [vmem:[#allocation13 + $0x228] sm:$0xff]
        %v1535 = vld [vmem:[#allocation13 + $0x230] sm:$0xff]
        %v1536 = vld [vmem:[#allocation13 + $0x238] sm:$0xff]
        %v1537 = vld [vmem:[#allocation13 + $0x240] sm:$0xff]
        %v1538 = vld [vmem:[#allocation13 + $0x248] sm:$0xff]
        %v1539 = vld [vmem:[#allocation13 + $0x250] sm:$0xff]
        %v1540 = vld [vmem:[#allocation13 + $0x258] sm:$0xff]
        %v1541 = vld [vmem:[#allocation13 + $0x260] sm:$0xff]
        %v1542 = vld [vmem:[#allocation13 + $0x268] sm:$0xff]
        %v1543 = vld [vmem:[#allocation13 + $0x270] sm:$0xff]
        %v1544 = vld [vmem:[#allocation13 + $0x278] sm:$0xff]
        %v1545 = vld [vmem:[#allocation13 + $0x280] sm:$0xff]
        %v1546 = vld [vmem:[#allocation13 + $0x288] sm:$0xff]
        %v1547 = vld [vmem:[#allocation13 + $0x290] sm:$0xff]
        %v1548 = vld [vmem:[#allocation13 + $0x298] sm:$0xff]
        %v1549 = vld [vmem:[#allocation13 + $0x2a0] sm:$0xff]
        %v1550 = vld [vmem:[#allocation13 + $0x2a8] sm:$0xff]
        %v1551 = vld [vmem:[#allocation13 + $0x2b0] sm:$0xff]
        %v1552 = vld [vmem:[#allocation13 + $0x2b8] sm:$0xff]
        %v1553 = vld [vmem:[#allocation13 + $0x2c0] sm:$0xff]
        %v1554 = vld [vmem:[#allocation13 + $0x2c8] sm:$0xff]
        %v1555 = vld [vmem:[#allocation13 + $0x2d0] sm:$0xff]
        %v1556 = vld [vmem:[#allocation13 + $0x2d8] sm:$0xff]
        %v1557 = vld [vmem:[#allocation13 + $0x2e0] sm:$0xff]
        %v1558 = vld [vmem:[#allocation13 + $0x2e8] sm:$0xff]
        %v1559 = vld [vmem:[#allocation13 + $0x2f0] sm:$0xff]
        %v1560 = vld [vmem:[#allocation13 + $0x2f8] sm:$0xff]
        %v1561 = vld [vmem:[#allocation13 + $0x300] sm:$0xff]
        %v1562 = vld [vmem:[#allocation13 + $0x308] sm:$0xff]
        %v1563 = vld [vmem:[#allocation13 + $0x310] sm:$0xff]
        %v1564 = vld [vmem:[#allocation13 + $0x318] sm:$0xff]
        %v1565 = vld [vmem:[#allocation13 + $0x320] sm:$0xff]
        %v1566 = vld [vmem:[#allocation13 + $0x328] sm:$0xff]
        %v1567 = vld [vmem:[#allocation13 + $0x330] sm:$0xff]
        %v1568 = vld [vmem:[#allocation13 + $0x338] sm:$0xff]
        %v1569 = vld [vmem:[#allocation13 + $0x340] sm:$0xff]
        %v1570 = vld [vmem:[#allocation13 + $0x348] sm:$0xff]
        %v1571 = vld [vmem:[#allocation13 + $0x350] sm:$0xff]
        %v1572 = vld [vmem:[#allocation13 + $0x358] sm:$0xff]
        %v1573 = vld [vmem:[#allocation13 + $0x360] sm:$0xff]
        %v1574 = vld [vmem:[#allocation13 + $0x368] sm:$0xff]
        %v1575 = vld [vmem:[#allocation13 + $0x370] sm:$0xff]
        %v1576 = vld [vmem:[#allocation13 + $0x378] sm:$0xff]
        %v1577 = vld [vmem:[#allocation13 + $0x380] sm:$0xff]
        %v1578 = vld [vmem:[#allocation13 + $0x388] sm:$0xff]
        %v1579 = vld [vmem:[#allocation13 + $0x390] sm:$0xff]
        %v1580 = vld [vmem:[#allocation13 + $0x398] sm:$0xff]
        %v1581 = vld [vmem:[#allocation13 + $0x3a0] sm:$0xff]
        %v1582 = vld [vmem:[#allocation13 + $0x3a8] sm:$0xff]
        %v1583 = vld [vmem:[#allocation13 + $0x3b0] sm:$0xff]
        %v1584 = vld [vmem:[#allocation13 + $0x3b8] sm:$0xff]
        %v1585 = vld [vmem:[#allocation13 + $0x3c0] sm:$0xff]
        %v1586 = vld [vmem:[#allocation13 + $0x3c8] sm:$0xff]
        %v1587 = vld [vmem:[#allocation13 + $0x3d0] sm:$0xff]
        %v1588 = vld [vmem:[#allocation13 + $0x3d8] sm:$0xff]
        %v1589 = vld [vmem:[#allocation13 + $0x3e0] sm:$0xff]
        %v1590 = vld [vmem:[#allocation13 + $0x3e8] sm:$0xff]
        %v1591 = vld [vmem:[#allocation13 + $0x3f0] sm:$0xff]
        %v1592 = vld [vmem:[#allocation13 + $0x3f8] sm:$0xff]
        %v1593 = vld [vmem:[#allocation13 + $0x400] sm:$0xff]
        %v1594 = vld [vmem:[#allocation13 + $0x408] sm:$0xff]
        %v1595 = vld [vmem:[#allocation13 + $0x410] sm:$0xff]
        %v1596 = vld [vmem:[#allocation13 + $0x418] sm:$0xff]
        %v1597 = vld [vmem:[#allocation13 + $0x420] sm:$0xff]
        %v1598 = vld [vmem:[#allocation13 + $0x428] sm:$0xff]
        %v1599 = vld [vmem:[#allocation13 + $0x430] sm:$0xff]
        %v1600 = vld [vmem:[#allocation13 + $0x438] sm:$0xff]
        %v1601 = vld [vmem:[#allocation13 + $0x440] sm:$0xff]
        %v1602 = vld [vmem:[#allocation13 + $0x448] sm:$0xff]
        %v1603 = vld [vmem:[#allocation13 + $0x450] sm:$0xff]
        %v1604 = vld [vmem:[#allocation13 + $0x458] sm:$0xff]
        %v1605 = vld [vmem:[#allocation13 + $0x460] sm:$0xff]
        %v1606 = vld [vmem:[#allocation13 + $0x468] sm:$0xff]
        %v1607 = vld [vmem:[#allocation13 + $0x470] sm:$0xff]
        %v1608 = vld [vmem:[#allocation13 + $0x478] sm:$0xff]
        %v1609 = vld [vmem:[#allocation13 + $0x480] sm:$0xff]
        %v1610 = vld [vmem:[#allocation13 + $0x488] sm:$0xff]
        %v1611 = vld [vmem:[#allocation13 + $0x490] sm:$0xff]
        %v1612 = vld [vmem:[#allocation13 + $0x498] sm:$0xff]
        %v1613 = vld [vmem:[#allocation13 + $0x4a0] sm:$0xff]
        %v1614 = vld [vmem:[#allocation13 + $0x4a8] sm:$0xff]
        %v1615 = vld [vmem:[#allocation13 + $0x4b0] sm:$0xff]
        %v1616 = vld [vmem:[#allocation13 + $0x4b8] sm:$0xff]
        %v1617 = vld [vmem:[#allocation13 + $0x4c0] sm:$0xff]
        %v1618 = vld [vmem:[#allocation13 + $0x4c8] sm:$0xff]
        %v1619 = vld [vmem:[#allocation13 + $0x4d0] sm:$0xff]
        %v1620 = vld [vmem:[#allocation13 + $0x4d8] sm:$0xff]
        %v1621 = vld [vmem:[#allocation13 + $0x4e0] sm:$0xff]
        %v1622 = vld [vmem:[#allocation13 + $0x4e8] sm:$0xff]
        %v1623 = vld [vmem:[#allocation13 + $0x4f0] sm:$0xff]
        %v1624 = vld [vmem:[#allocation13 + $0x4f8] sm:$0xff]
        %v1625 = vld [vmem:[#allocation13 + $0x500] sm:$0xff]
        %v1626 = vld [vmem:[#allocation13 + $0x508] sm:$0xff]
        %v1627 = vld [vmem:[#allocation13 + $0x510] sm:$0xff]
        %v1628 = vld [vmem:[#allocation13 + $0x518] sm:$0xff]
        %v1629 = vld [vmem:[#allocation13 + $0x520] sm:$0xff]
        %v1630 = vld [vmem:[#allocation13 + $0x528] sm:$0xff]
        %v1631 = vld [vmem:[#allocation13 + $0x530] sm:$0xff]
        %v1632 = vld [vmem:[#allocation13 + $0x538] sm:$0xff]
        %v1633 = vld [vmem:[#allocation13 + $0x540] sm:$0xff]
        %v1634 = vld [vmem:[#allocation13 + $0x548] sm:$0xff]
        %v1635 = vld [vmem:[#allocation13 + $0x550] sm:$0xff]
        %v1636 = vld [vmem:[#allocation13 + $0x558] sm:$0xff]
        %v1637 = vld [vmem:[#allocation13 + $0x560] sm:$0xff]
        %v1638 = vld [vmem:[#allocation13 + $0x568] sm:$0xff]
        %v1639 = vld [vmem:[#allocation13 + $0x570] sm:$0xff]
        %v1640 = vld [vmem:[#allocation13 + $0x578] sm:$0xff]
        %v1641 = vld [vmem:[#allocation13 + $0x580] sm:$0xff]
        %v1642 = vld [vmem:[#allocation13 + $0x588] sm:$0xff]
        %v1643 = vld [vmem:[#allocation13 + $0x590] sm:$0xff]
        %v1644 = vld [vmem:[#allocation13 + $0x598] sm:$0xff]
        %v1645 = vld [vmem:[#allocation13 + $0x5a0] sm:$0xff]
        %v1646 = vld [vmem:[#allocation13 + $0x5a8] sm:$0xff]
        %v1647 = vld [vmem:[#allocation13 + $0x5b0] sm:$0xff]
        %v1648 = vld [vmem:[#allocation13 + $0x5b8] sm:$0xff]
        %v1649 = vld [vmem:[#allocation13 + $0x5c0] sm:$0xff]
        %v1650 = vld [vmem:[#allocation13 + $0x5c8] sm:$0xff]
        %v1651 = vld [vmem:[#allocation13 + $0x5d0] sm:$0xff]
        %v1652 = vld [vmem:[#allocation13 + $0x5d8] sm:$0xff]
        %v1653 = vld [vmem:[#allocation13 + $0x5e0] sm:$0xff]
        %v1654 = vld [vmem:[#allocation13 + $0x5e8] sm:$0xff]
        %v1655 = vld [vmem:[#allocation13 + $0x5f0] sm:$0xff]
        %v1656 = vld [vmem:[#allocation13 + $0x5f8] sm:$0xff]
        %v1657 = vld [vmem:[#allocation13 + $0x600] sm:$0xff]
        %v1658 = vld [vmem:[#allocation13 + $0x608] sm:$0xff]
        %v1659 = vld [vmem:[#allocation13 + $0x610] sm:$0xff]
        %v1660 = vld [vmem:[#allocation13 + $0x618] sm:$0xff]
        %v1661 = vld [vmem:[#allocation13 + $0x620] sm:$0xff]
        %v1662 = vld [vmem:[#allocation13 + $0x628] sm:$0xff]
        %v1663 = vld [vmem:[#allocation13 + $0x630] sm:$0xff]
        %v1664 = vld [vmem:[#allocation13 + $0x638] sm:$0xff]
        %v1665 = vld [vmem:[#allocation13 + $0x640] sm:$0xff]
        %v1666 = vld [vmem:[#allocation13 + $0x648] sm:$0xff]
        %v1667 = vld [vmem:[#allocation13 + $0x650] sm:$0xff]
        %v1668 = vld [vmem:[#allocation13 + $0x658] sm:$0xff]
        %v1669 = vld [vmem:[#allocation13 + $0x660] sm:$0xff]
        %v1670 = vld [vmem:[#allocation13 + $0x668] sm:$0xff]
        %v1671 = vld [vmem:[#allocation13 + $0x670] sm:$0xff]
        %v1672 = vld [vmem:[#allocation13 + $0x678] sm:$0xff]
        %v1673 = vld [vmem:[#allocation13 + $0x680] sm:$0xff]
        %v1674 = vld [vmem:[#allocation13 + $0x688] sm:$0xff]
        %v1675 = vld [vmem:[#allocation13 + $0x690] sm:$0xff]
        %v1676 = vld [vmem:[#allocation13 + $0x698] sm:$0xff]
        %v1677 = vld [vmem:[#allocation13 + $0x6a0] sm:$0xff]
        %v1678 = vld [vmem:[#allocation13 + $0x6a8] sm:$0xff]
        %v1679 = vld [vmem:[#allocation13 + $0x6b0] sm:$0xff]
        %v1680 = vld [vmem:[#allocation13 + $0x6b8] sm:$0xff]
        %v1681 = vld [vmem:[#allocation13 + $0x6c0] sm:$0xff]
        %v1682 = vld [vmem:[#allocation13 + $0x6c8] sm:$0xff]
        %v1683 = vld [vmem:[#allocation13 + $0x6d0] sm:$0xff]
        %v1684 = vld [vmem:[#allocation13 + $0x6d8] sm:$0xff]
        %v1685 = vld [vmem:[#allocation13 + $0x6e0] sm:$0xff]
        %v1686 = vld [vmem:[#allocation13 + $0x6e8] sm:$0xff]
        %v1687 = vld [vmem:[#allocation13 + $0x6f0] sm:$0xff]
        %v1688 = vld [vmem:[#allocation13 + $0x6f8] sm:$0xff]
        %v1689 = vld [vmem:[#allocation13 + $0x700] sm:$0xff]
        %v1690 = vld [vmem:[#allocation13 + $0x708] sm:$0xff]
        %v1691 = vld [vmem:[#allocation13 + $0x710] sm:$0xff]
        %v1692 = vld [vmem:[#allocation13 + $0x718] sm:$0xff]
        %v1693 = vld [vmem:[#allocation13 + $0x720] sm:$0xff]
        %v1694 = vld [vmem:[#allocation13 + $0x728] sm:$0xff]
        %v1695 = vld [vmem:[#allocation13 + $0x730] sm:$0xff]
        %v1696 = vld [vmem:[#allocation13 + $0x738] sm:$0xff]
        %v1697 = vld [vmem:[#allocation13 + $0x740] sm:$0xff]
        %v1698 = vld [vmem:[#allocation13 + $0x748] sm:$0xff]
        %v1699 = vld [vmem:[#allocation13 + $0x750] sm:$0xff]
        %v1700 = vld [vmem:[#allocation13 + $0x758] sm:$0xff]
        %v1701 = vld [vmem:[#allocation13 + $0x760] sm:$0xff]
        %v1702 = vld [vmem:[#allocation13 + $0x768] sm:$0xff]
        %v1703 = vld [vmem:[#allocation13 + $0x770] sm:$0xff]
        %v1704 = vld [vmem:[#allocation13 + $0x778] sm:$0xff]
        %v1705 = vld [vmem:[#allocation13 + $0x780] sm:$0xff]
        %v1706 = vld [vmem:[#allocation13 + $0x788] sm:$0xff]
        %v1707 = vld [vmem:[#allocation13 + $0x790] sm:$0xff]
        %v1708 = vld [vmem:[#allocation13 + $0x798] sm:$0xff]
        %v1709 = vld [vmem:[#allocation13 + $0x7a0] sm:$0xff]
        %v1710 = vld [vmem:[#allocation13 + $0x7a8] sm:$0xff]
        %v1711 = vld [vmem:[#allocation13 + $0x7b0] sm:$0xff]
        %v1712 = vld [vmem:[#allocation13 + $0x7b8] sm:$0xff]
        %v1713 = vld [vmem:[#allocation13 + $0x7c0] sm:$0xff]
        %v1714 = vld [vmem:[#allocation13 + $0x7c8] sm:$0xff]
        %v1715 = vld [vmem:[#allocation13 + $0x7d0] sm:$0xff]
        %v1716 = vld [vmem:[#allocation13 + $0x7d8] sm:$0xff]
        %v1717 = vld [vmem:[#allocation13 + $0x7e0] sm:$0xff]
        %v1718 = vld [vmem:[#allocation13 + $0x7e8] sm:$0xff]
        %v1719 = vld [vmem:[#allocation13 + $0x7f0] sm:$0xff]
        %v1720 = vld [vmem:[#allocation13 + $0x7f8] sm:$0xff]
        %v1721 = vld [vmem:[#allocation14] sm:$0xff]
        %v1723 = vperm.slane %v1721, 0
        %v1724 = vperm.slane %v1721, 1
        %v1725 = vperm.slane %v1721, 2
        %v1726 = vperm.slane %v1721, 3
        %v1727 = vperm.slane %v1721, 4
        %v1728 = vperm.slane %v1721, 5
        %v1729 = vperm.slane %v1721, 6
        %v1730 = vperm.slane %v1721, 7
        %v1995 = vunpack.c.l.b16 %v1465
        %v1996 = vunpack.c.h.b16 %v1465
        %v1997 = vunpack.c.l.b16 %v1466
        %v1998 = vunpack.c.h.b16 %v1466
        %v1999 = vunpack.c.l.b16 %v1467
        %v2000 = vunpack.c.h.b16 %v1467
        %v2001 = vunpack.c.l.b16 %v1468
        %v2002 = vunpack.c.h.b16 %v1468
        %v2003 = vunpack.c.l.b16 %v1469
        %v2004 = vunpack.c.h.b16 %v1469
        %v2005 = vunpack.c.l.b16 %v1470
        %v2006 = vunpack.c.h.b16 %v1470
        %v2007 = vunpack.c.l.b16 %v1471
        %v2008 = vunpack.c.h.b16 %v1471
        %v2009 = vunpack.c.l.b16 %v1472
        %v2010 = vunpack.c.h.b16 %v1472
        %v2011 = vunpack.c.l.b16 %v1473
        %v2012 = vunpack.c.h.b16 %v1473
        %v2013 = vunpack.c.l.b16 %v1474
        %v2014 = vunpack.c.h.b16 %v1474
        %v2015 = vunpack.c.l.b16 %v1475
        %v2016 = vunpack.c.h.b16 %v1475
        %v2017 = vunpack.c.l.b16 %v1476
        %v2018 = vunpack.c.h.b16 %v1476
        %v2019 = vunpack.c.l.b16 %v1477
        %v2020 = vunpack.c.h.b16 %v1477
        %v2021 = vunpack.c.l.b16 %v1478
        %v2022 = vunpack.c.h.b16 %v1478
        %v2023 = vunpack.c.l.b16 %v1479
        %v2024 = vunpack.c.h.b16 %v1479
        %v2025 = vunpack.c.l.b16 %v1480
        %v2026 = vunpack.c.h.b16 %v1480
        %v2027 = vunpack.c.l.b16 %v1481
        %v2028 = vunpack.c.h.b16 %v1481
        %v2029 = vunpack.c.l.b16 %v1482
        %v2030 = vunpack.c.h.b16 %v1482
        %v2031 = vunpack.c.l.b16 %v1483
        %v2032 = vunpack.c.h.b16 %v1483
        %v2033 = vunpack.c.l.b16 %v1484
        %v2034 = vunpack.c.h.b16 %v1484
        %v2035 = vunpack.c.l.b16 %v1485
        %v2036 = vunpack.c.h.b16 %v1485
        %v2037 = vunpack.c.l.b16 %v1486
        %v2038 = vunpack.c.h.b16 %v1486
        %v2039 = vunpack.c.l.b16 %v1487
        %v2040 = vunpack.c.h.b16 %v1487
        %v2041 = vunpack.c.l.b16 %v1488
        %v2042 = vunpack.c.h.b16 %v1488
        %v2043 = vunpack.c.l.b16 %v1489
        %v2044 = vunpack.c.h.b16 %v1489
        %v2045 = vunpack.c.l.b16 %v1490
        %v2046 = vunpack.c.h.b16 %v1490
        %v2047 = vunpack.c.l.b16 %v1491
        %v2048 = vunpack.c.h.b16 %v1491
        %v2049 = vunpack.c.l.b16 %v1492
        %v2050 = vunpack.c.h.b16 %v1492
        %v2051 = vunpack.c.l.b16 %v1493
        %v2052 = vunpack.c.h.b16 %v1493
        %v2053 = vunpack.c.l.b16 %v1494
        %v2054 = vunpack.c.h.b16 %v1494
        %v2055 = vunpack.c.l.b16 %v1495
        %v2056 = vunpack.c.h.b16 %v1495
        %v2057 = vunpack.c.l.b16 %v1496
        %v2058 = vunpack.c.h.b16 %v1496
        %v2059 = vunpack.c.l.b16 %v1497
        %v2060 = vunpack.c.h.b16 %v1497
        %v2061 = vunpack.c.l.b16 %v1498
        %v2062 = vunpack.c.h.b16 %v1498
        %v2063 = vunpack.c.l.b16 %v1499
        %v2064 = vunpack.c.h.b16 %v1499
        %v2065 = vunpack.c.l.b16 %v1500
        %v2066 = vunpack.c.h.b16 %v1500
        %v2067 = vunpack.c.l.b16 %v1501
        %v2068 = vunpack.c.h.b16 %v1501
        %v2069 = vunpack.c.l.b16 %v1502
        %v2070 = vunpack.c.h.b16 %v1502
        %v2071 = vunpack.c.l.b16 %v1503
        %v2072 = vunpack.c.h.b16 %v1503
        %v2073 = vunpack.c.l.b16 %v1504
        %v2074 = vunpack.c.h.b16 %v1504
        %v2075 = vunpack.c.l.b16 %v1505
        %v2076 = vunpack.c.h.b16 %v1505
        %v2077 = vunpack.c.l.b16 %v1506
        %v2078 = vunpack.c.h.b16 %v1506
        %v2079 = vunpack.c.l.b16 %v1507
        %v2080 = vunpack.c.h.b16 %v1507
        %v2081 = vunpack.c.l.b16 %v1508
        %v2082 = vunpack.c.h.b16 %v1508
        %v2083 = vunpack.c.l.b16 %v1509
        %v2084 = vunpack.c.h.b16 %v1509
        %v2085 = vunpack.c.l.b16 %v1510
        %v2086 = vunpack.c.h.b16 %v1510
        %v2087 = vunpack.c.l.b16 %v1511
        %v2088 = vunpack.c.h.b16 %v1511
        %v2089 = vunpack.c.l.b16 %v1512
        %v2090 = vunpack.c.h.b16 %v1512
        %v2091 = vunpack.c.l.b16 %v1513
        %v2092 = vunpack.c.h.b16 %v1513
        %v2093 = vunpack.c.l.b16 %v1514
        %v2094 = vunpack.c.h.b16 %v1514
        %v2095 = vunpack.c.l.b16 %v1515
        %v2096 = vunpack.c.h.b16 %v1515
        %v2097 = vunpack.c.l.b16 %v1516
        %v2098 = vunpack.c.h.b16 %v1516
        %v2099 = vunpack.c.l.b16 %v1517
        %v2100 = vunpack.c.h.b16 %v1517
        %v2101 = vunpack.c.l.b16 %v1518
        %v2102 = vunpack.c.h.b16 %v1518
        %v2103 = vunpack.c.l.b16 %v1519
        %v2104 = vunpack.c.h.b16 %v1519
        %v2105 = vunpack.c.l.b16 %v1520
        %v2106 = vunpack.c.h.b16 %v1520
        %v2107 = vunpack.c.l.b16 %v1521
        %v2108 = vunpack.c.h.b16 %v1521
        %v2109 = vunpack.c.l.b16 %v1522
        %v2110 = vunpack.c.h.b16 %v1522
        %v2111 = vunpack.c.l.b16 %v1523
        %v2112 = vunpack.c.h.b16 %v1523
        %v2113 = vunpack.c.l.b16 %v1524
        %v2114 = vunpack.c.h.b16 %v1524
        %v2115 = vunpack.c.l.b16 %v1525
        %v2116 = vunpack.c.h.b16 %v1525
        %v2117 = vunpack.c.l.b16 %v1526
        %v2118 = vunpack.c.h.b16 %v1526
        %v2119 = vunpack.c.l.b16 %v1527
        %v2120 = vunpack.c.h.b16 %v1527
        %v2121 = vunpack.c.l.b16 %v1528
        %v2122 = vunpack.c.h.b16 %v1528
        %v2123 = vunpack.c.l.b16 %v1529
        %v2124 = vunpack.c.h.b16 %v1529
        %v2125 = vunpack.c.l.b16 %v1530
        %v2126 = vunpack.c.h.b16 %v1530
        %v2127 = vunpack.c.l.b16 %v1531
        %v2128 = vunpack.c.h.b16 %v1531
        %v2129 = vunpack.c.l.b16 %v1532
        %v2130 = vunpack.c.h.b16 %v1532
        %v2131 = vunpack.c.l.b16 %v1533
        %v2132 = vunpack.c.h.b16 %v1533
        %v2133 = vunpack.c.l.b16 %v1534
        %v2134 = vunpack.c.h.b16 %v1534
        %v2135 = vunpack.c.l.b16 %v1535
        %v2136 = vunpack.c.h.b16 %v1535
        %v2137 = vunpack.c.l.b16 %v1536
        %v2138 = vunpack.c.h.b16 %v1536
        %v2139 = vunpack.c.l.b16 %v1537
        %v2140 = vunpack.c.h.b16 %v1537
        %v2141 = vunpack.c.l.b16 %v1538
        %v2142 = vunpack.c.h.b16 %v1538
        %v2143 = vunpack.c.l.b16 %v1539
        %v2144 = vunpack.c.h.b16 %v1539
        %v2145 = vunpack.c.l.b16 %v1540
        %v2146 = vunpack.c.h.b16 %v1540
        %v2147 = vunpack.c.l.b16 %v1541
        %v2148 = vunpack.c.h.b16 %v1541
        %v2149 = vunpack.c.l.b16 %v1542
        %v2150 = vunpack.c.h.b16 %v1542
        %v2151 = vunpack.c.l.b16 %v1543
        %v2152 = vunpack.c.h.b16 %v1543
        %v2153 = vunpack.c.l.b16 %v1544
        %v2154 = vunpack.c.h.b16 %v1544
        %v2155 = vunpack.c.l.b16 %v1545
        %v2156 = vunpack.c.h.b16 %v1545
        %v2157 = vunpack.c.l.b16 %v1546
        %v2158 = vunpack.c.h.b16 %v1546
        %v2159 = vunpack.c.l.b16 %v1547
        %v2160 = vunpack.c.h.b16 %v1547
        %v2161 = vunpack.c.l.b16 %v1548
        %v2162 = vunpack.c.h.b16 %v1548
        %v2163 = vunpack.c.l.b16 %v1549
        %v2164 = vunpack.c.h.b16 %v1549
        %v2165 = vunpack.c.l.b16 %v1550
        %v2166 = vunpack.c.h.b16 %v1550
        %v2167 = vunpack.c.l.b16 %v1551
        %v2168 = vunpack.c.h.b16 %v1551
        %v2169 = vunpack.c.l.b16 %v1552
        %v2170 = vunpack.c.h.b16 %v1552
        %v2171 = vunpack.c.l.b16 %v1553
        %v2172 = vunpack.c.h.b16 %v1553
        %v2173 = vunpack.c.l.b16 %v1554
        %v2174 = vunpack.c.h.b16 %v1554
        %v2175 = vunpack.c.l.b16 %v1555
        %v2176 = vunpack.c.h.b16 %v1555
        %v2177 = vunpack.c.l.b16 %v1556
        %v2178 = vunpack.c.h.b16 %v1556
        %v2179 = vunpack.c.l.b16 %v1557
        %v2180 = vunpack.c.h.b16 %v1557
        %v2181 = vunpack.c.l.b16 %v1558
        %v2182 = vunpack.c.h.b16 %v1558
        %v2183 = vunpack.c.l.b16 %v1559
        %v2184 = vunpack.c.h.b16 %v1559
        %v2185 = vunpack.c.l.b16 %v1560
        %v2186 = vunpack.c.h.b16 %v1560
        %v2187 = vunpack.c.l.b16 %v1561
        %v2188 = vunpack.c.h.b16 %v1561
        %v2189 = vunpack.c.l.b16 %v1562
        %v2190 = vunpack.c.h.b16 %v1562
        %v2191 = vunpack.c.l.b16 %v1563
        %v2192 = vunpack.c.h.b16 %v1563
        %v2193 = vunpack.c.l.b16 %v1564
        %v2194 = vunpack.c.h.b16 %v1564
        %v2195 = vunpack.c.l.b16 %v1565
        %v2196 = vunpack.c.h.b16 %v1565
        %v2197 = vunpack.c.l.b16 %v1566
        %v2198 = vunpack.c.h.b16 %v1566
        %v2199 = vunpack.c.l.b16 %v1567
        %v2200 = vunpack.c.h.b16 %v1567
        %v2201 = vunpack.c.l.b16 %v1568
        %v2202 = vunpack.c.h.b16 %v1568
        %v2203 = vunpack.c.l.b16 %v1569
        %v2204 = vunpack.c.h.b16 %v1569
        %v2205 = vunpack.c.l.b16 %v1570
        %v2206 = vunpack.c.h.b16 %v1570
        %v2207 = vunpack.c.l.b16 %v1571
        %v2208 = vunpack.c.h.b16 %v1571
        %v2209 = vunpack.c.l.b16 %v1572
        %v2210 = vunpack.c.h.b16 %v1572
        %v2211 = vunpack.c.l.b16 %v1573
        %v2212 = vunpack.c.h.b16 %v1573
        %v2213 = vunpack.c.l.b16 %v1574
        %v2214 = vunpack.c.h.b16 %v1574
        %v2215 = vunpack.c.l.b16 %v1575
        %v2216 = vunpack.c.h.b16 %v1575
        %v2217 = vunpack.c.l.b16 %v1576
        %v2218 = vunpack.c.h.b16 %v1576
        %v2219 = vunpack.c.l.b16 %v1577
        %v2220 = vunpack.c.h.b16 %v1577
        %v2221 = vunpack.c.l.b16 %v1578
        %v2222 = vunpack.c.h.b16 %v1578
        %v2223 = vunpack.c.l.b16 %v1579
        %v2224 = vunpack.c.h.b16 %v1579
        %v2225 = vunpack.c.l.b16 %v1580
        %v2226 = vunpack.c.h.b16 %v1580
        %v2227 = vunpack.c.l.b16 %v1581
        %v2228 = vunpack.c.h.b16 %v1581
        %v2229 = vunpack.c.l.b16 %v1582
        %v2230 = vunpack.c.h.b16 %v1582
        %v2231 = vunpack.c.l.b16 %v1583
        %v2232 = vunpack.c.h.b16 %v1583
        %v2233 = vunpack.c.l.b16 %v1584
        %v2234 = vunpack.c.h.b16 %v1584
        %v2235 = vunpack.c.l.b16 %v1585
        %v2236 = vunpack.c.h.b16 %v1585
        %v2237 = vunpack.c.l.b16 %v1586
        %v2238 = vunpack.c.h.b16 %v1586
        %v2239 = vunpack.c.l.b16 %v1587
        %v2240 = vunpack.c.h.b16 %v1587
        %v2241 = vunpack.c.l.b16 %v1588
        %v2242 = vunpack.c.h.b16 %v1588
        %v2243 = vunpack.c.l.b16 %v1589
        %v2244 = vunpack.c.h.b16 %v1589
        %v2245 = vunpack.c.l.b16 %v1590
        %v2246 = vunpack.c.h.b16 %v1590
        %v2247 = vunpack.c.l.b16 %v1591
        %v2248 = vunpack.c.h.b16 %v1591
        %v2249 = vunpack.c.l.b16 %v1592
        %v2250 = vunpack.c.h.b16 %v1592
        %v2251 = vunpack.c.l.b16 %v1593
        %v2252 = vunpack.c.h.b16 %v1593
        %v2253 = vunpack.c.l.b16 %v1594
        %v2254 = vunpack.c.h.b16 %v1594
        %v2255 = vunpack.c.l.b16 %v1595
        %v2256 = vunpack.c.h.b16 %v1595
        %v2257 = vunpack.c.l.b16 %v1596
        %v2258 = vunpack.c.h.b16 %v1596
        %v2259 = vunpack.c.l.b16 %v1597
        %v2260 = vunpack.c.h.b16 %v1597
        %v2261 = vunpack.c.l.b16 %v1598
        %v2262 = vunpack.c.h.b16 %v1598
        %v2263 = vunpack.c.l.b16 %v1599
        %v2264 = vunpack.c.h.b16 %v1599
        %v2265 = vunpack.c.l.b16 %v1600
        %v2266 = vunpack.c.h.b16 %v1600
        %v2267 = vunpack.c.l.b16 %v1601
        %v2268 = vunpack.c.h.b16 %v1601
        %v2269 = vunpack.c.l.b16 %v1602
        %v2270 = vunpack.c.h.b16 %v1602
        %v2271 = vunpack.c.l.b16 %v1603
        %v2272 = vunpack.c.h.b16 %v1603
        %v2273 = vunpack.c.l.b16 %v1604
        %v2274 = vunpack.c.h.b16 %v1604
        %v2275 = vunpack.c.l.b16 %v1605
        %v2276 = vunpack.c.h.b16 %v1605
        %v2277 = vunpack.c.l.b16 %v1606
        %v2278 = vunpack.c.h.b16 %v1606
        %v2279 = vunpack.c.l.b16 %v1607
        %v2280 = vunpack.c.h.b16 %v1607
        %v2281 = vunpack.c.l.b16 %v1608
        %v2282 = vunpack.c.h.b16 %v1608
        %v2283 = vunpack.c.l.b16 %v1609
        %v2284 = vunpack.c.h.b16 %v1609
        %v2285 = vunpack.c.l.b16 %v1610
        %v2286 = vunpack.c.h.b16 %v1610
        %v2287 = vunpack.c.l.b16 %v1611
        %v2288 = vunpack.c.h.b16 %v1611
        %v2289 = vunpack.c.l.b16 %v1612
        %v2290 = vunpack.c.h.b16 %v1612
        %v2291 = vunpack.c.l.b16 %v1613
        %v2292 = vunpack.c.h.b16 %v1613
        %v2293 = vunpack.c.l.b16 %v1614
        %v2294 = vunpack.c.h.b16 %v1614
        %v2295 = vunpack.c.l.b16 %v1615
        %v2296 = vunpack.c.h.b16 %v1615
        %v2297 = vunpack.c.l.b16 %v1616
        %v2298 = vunpack.c.h.b16 %v1616
        %v2299 = vunpack.c.l.b16 %v1617
        %v2300 = vunpack.c.h.b16 %v1617
        %v2301 = vunpack.c.l.b16 %v1618
        %v2302 = vunpack.c.h.b16 %v1618
        %v2303 = vunpack.c.l.b16 %v1619
        %v2304 = vunpack.c.h.b16 %v1619
        %v2305 = vunpack.c.l.b16 %v1620
        %v2306 = vunpack.c.h.b16 %v1620
        %v2307 = vunpack.c.l.b16 %v1621
        %v2308 = vunpack.c.h.b16 %v1621
        %v2309 = vunpack.c.l.b16 %v1622
        %v2310 = vunpack.c.h.b16 %v1622
        %v2311 = vunpack.c.l.b16 %v1623
        %v2312 = vunpack.c.h.b16 %v1623
        %v2313 = vunpack.c.l.b16 %v1624
        %v2314 = vunpack.c.h.b16 %v1624
        %v2315 = vunpack.c.l.b16 %v1625
        %v2316 = vunpack.c.h.b16 %v1625
        %v2317 = vunpack.c.l.b16 %v1626
        %v2318 = vunpack.c.h.b16 %v1626
        %v2319 = vunpack.c.l.b16 %v1627
        %v2320 = vunpack.c.h.b16 %v1627
        %v2321 = vunpack.c.l.b16 %v1628
        %v2322 = vunpack.c.h.b16 %v1628
        %v2323 = vunpack.c.l.b16 %v1629
        %v2324 = vunpack.c.h.b16 %v1629
        %v2325 = vunpack.c.l.b16 %v1630
        %v2326 = vunpack.c.h.b16 %v1630
        %v2327 = vunpack.c.l.b16 %v1631
        %v2328 = vunpack.c.h.b16 %v1631
        %v2329 = vunpack.c.l.b16 %v1632
        %v2330 = vunpack.c.h.b16 %v1632
        %v2331 = vunpack.c.l.b16 %v1633
        %v2332 = vunpack.c.h.b16 %v1633
        %v2333 = vunpack.c.l.b16 %v1634
        %v2334 = vunpack.c.h.b16 %v1634
        %v2335 = vunpack.c.l.b16 %v1635
        %v2336 = vunpack.c.h.b16 %v1635
        %v2337 = vunpack.c.l.b16 %v1636
        %v2338 = vunpack.c.h.b16 %v1636
        %v2339 = vunpack.c.l.b16 %v1637
        %v2340 = vunpack.c.h.b16 %v1637
        %v2341 = vunpack.c.l.b16 %v1638
        %v2342 = vunpack.c.h.b16 %v1638
        %v2343 = vunpack.c.l.b16 %v1639
        %v2344 = vunpack.c.h.b16 %v1639
        %v2345 = vunpack.c.l.b16 %v1640
        %v2346 = vunpack.c.h.b16 %v1640
        %v2347 = vunpack.c.l.b16 %v1641
        %v2348 = vunpack.c.h.b16 %v1641
        %v2349 = vunpack.c.l.b16 %v1642
        %v2350 = vunpack.c.h.b16 %v1642
        %v2351 = vunpack.c.l.b16 %v1643
        %v2352 = vunpack.c.h.b16 %v1643
        %v2353 = vunpack.c.l.b16 %v1644
        %v2354 = vunpack.c.h.b16 %v1644
        %v2355 = vunpack.c.l.b16 %v1645
        %v2356 = vunpack.c.h.b16 %v1645
        %v2357 = vunpack.c.l.b16 %v1646
        %v2358 = vunpack.c.h.b16 %v1646
        %v2359 = vunpack.c.l.b16 %v1647
        %v2360 = vunpack.c.h.b16 %v1647
        %v2361 = vunpack.c.l.b16 %v1648
        %v2362 = vunpack.c.h.b16 %v1648
        %v2363 = vunpack.c.l.b16 %v1649
        %v2364 = vunpack.c.h.b16 %v1649
        %v2365 = vunpack.c.l.b16 %v1650
        %v2366 = vunpack.c.h.b16 %v1650
        %v2367 = vunpack.c.l.b16 %v1651
        %v2368 = vunpack.c.h.b16 %v1651
        %v2369 = vunpack.c.l.b16 %v1652
        %v2370 = vunpack.c.h.b16 %v1652
        %v2371 = vunpack.c.l.b16 %v1653
        %v2372 = vunpack.c.h.b16 %v1653
        %v2373 = vunpack.c.l.b16 %v1654
        %v2374 = vunpack.c.h.b16 %v1654
        %v2375 = vunpack.c.l.b16 %v1655
        %v2376 = vunpack.c.h.b16 %v1655
        %v2377 = vunpack.c.l.b16 %v1656
        %v2378 = vunpack.c.h.b16 %v1656
        %v2379 = vunpack.c.l.b16 %v1657
        %v2380 = vunpack.c.h.b16 %v1657
        %v2381 = vunpack.c.l.b16 %v1658
        %v2382 = vunpack.c.h.b16 %v1658
        %v2383 = vunpack.c.l.b16 %v1659
        %v2384 = vunpack.c.h.b16 %v1659
        %v2385 = vunpack.c.l.b16 %v1660
        %v2386 = vunpack.c.h.b16 %v1660
        %v2387 = vunpack.c.l.b16 %v1661
        %v2388 = vunpack.c.h.b16 %v1661
        %v2389 = vunpack.c.l.b16 %v1662
        %v2390 = vunpack.c.h.b16 %v1662
        %v2391 = vunpack.c.l.b16 %v1663
        %v2392 = vunpack.c.h.b16 %v1663
        %v2393 = vunpack.c.l.b16 %v1664
        %v2394 = vunpack.c.h.b16 %v1664
        %v2395 = vunpack.c.l.b16 %v1665
        %v2396 = vunpack.c.h.b16 %v1665
        %v2397 = vunpack.c.l.b16 %v1666
        %v2398 = vunpack.c.h.b16 %v1666
        %v2399 = vunpack.c.l.b16 %v1667
        %v2400 = vunpack.c.h.b16 %v1667
        %v2401 = vunpack.c.l.b16 %v1668
        %v2402 = vunpack.c.h.b16 %v1668
        %v2403 = vunpack.c.l.b16 %v1669
        %v2404 = vunpack.c.h.b16 %v1669
        %v2405 = vunpack.c.l.b16 %v1670
        %v2406 = vunpack.c.h.b16 %v1670
        %v2407 = vunpack.c.l.b16 %v1671
        %v2408 = vunpack.c.h.b16 %v1671
        %v2409 = vunpack.c.l.b16 %v1672
        %v2410 = vunpack.c.h.b16 %v1672
        %v2411 = vunpack.c.l.b16 %v1673
        %v2412 = vunpack.c.h.b16 %v1673
        %v2413 = vunpack.c.l.b16 %v1674
        %v2414 = vunpack.c.h.b16 %v1674
        %v2415 = vunpack.c.l.b16 %v1675
        %v2416 = vunpack.c.h.b16 %v1675
        %v2417 = vunpack.c.l.b16 %v1676
        %v2418 = vunpack.c.h.b16 %v1676
        %v2419 = vunpack.c.l.b16 %v1677
        %v2420 = vunpack.c.h.b16 %v1677
        %v2421 = vunpack.c.l.b16 %v1678
        %v2422 = vunpack.c.h.b16 %v1678
        %v2423 = vunpack.c.l.b16 %v1679
        %v2424 = vunpack.c.h.b16 %v1679
        %v2425 = vunpack.c.l.b16 %v1680
        %v2426 = vunpack.c.h.b16 %v1680
        %v2427 = vunpack.c.l.b16 %v1681
        %v2428 = vunpack.c.h.b16 %v1681
        %v2429 = vunpack.c.l.b16 %v1682
        %v2430 = vunpack.c.h.b16 %v1682
        %v2431 = vunpack.c.l.b16 %v1683
        %v2432 = vunpack.c.h.b16 %v1683
        %v2433 = vunpack.c.l.b16 %v1684
        %v2434 = vunpack.c.h.b16 %v1684
        %v2435 = vunpack.c.l.b16 %v1685
        %v2436 = vunpack.c.h.b16 %v1685
        %v2437 = vunpack.c.l.b16 %v1686
        %v2438 = vunpack.c.h.b16 %v1686
        %v2439 = vunpack.c.l.b16 %v1687
        %v2440 = vunpack.c.h.b16 %v1687
        %v2441 = vunpack.c.l.b16 %v1688
        %v2442 = vunpack.c.h.b16 %v1688
        %v2443 = vunpack.c.l.b16 %v1689
        %v2444 = vunpack.c.h.b16 %v1689
        %v2445 = vunpack.c.l.b16 %v1690
        %v2446 = vunpack.c.h.b16 %v1690
        %v2447 = vunpack.c.l.b16 %v1691
        %v2448 = vunpack.c.h.b16 %v1691
        %v2449 = vunpack.c.l.b16 %v1692
        %v2450 = vunpack.c.h.b16 %v1692
        %v2451 = vunpack.c.l.b16 %v1693
        %v2452 = vunpack.c.h.b16 %v1693
        %v2453 = vunpack.c.l.b16 %v1694
        %v2454 = vunpack.c.h.b16 %v1694
        %v2455 = vunpack.c.l.b16 %v1695
        %v2456 = vunpack.c.h.b16 %v1695
        %v2457 = vunpack.c.l.b16 %v1696
        %v2458 = vunpack.c.h.b16 %v1696
        %v2459 = vunpack.c.l.b16 %v1697
        %v2460 = vunpack.c.h.b16 %v1697
        %v2461 = vunpack.c.l.b16 %v1698
        %v2462 = vunpack.c.h.b16 %v1698
        %v2463 = vunpack.c.l.b16 %v1699
        %v2464 = vunpack.c.h.b16 %v1699
        %v2465 = vunpack.c.l.b16 %v1700
        %v2466 = vunpack.c.h.b16 %v1700
        %v2467 = vunpack.c.l.b16 %v1701
        %v2468 = vunpack.c.h.b16 %v1701
        %v2469 = vunpack.c.l.b16 %v1702
        %v2470 = vunpack.c.h.b16 %v1702
        %v2471 = vunpack.c.l.b16 %v1703
        %v2472 = vunpack.c.h.b16 %v1703
        %v2473 = vunpack.c.l.b16 %v1704
        %v2474 = vunpack.c.h.b16 %v1704
        %v2475 = vunpack.c.l.b16 %v1705
        %v2476 = vunpack.c.h.b16 %v1705
        %v2477 = vunpack.c.l.b16 %v1706
        %v2478 = vunpack.c.h.b16 %v1706
        %v2479 = vunpack.c.l.b16 %v1707
        %v2480 = vunpack.c.h.b16 %v1707
        %v2481 = vunpack.c.l.b16 %v1708
        %v2482 = vunpack.c.h.b16 %v1708
        %v2483 = vunpack.c.l.b16 %v1709
        %v2484 = vunpack.c.h.b16 %v1709
        %v2485 = vunpack.c.l.b16 %v1710
        %v2486 = vunpack.c.h.b16 %v1710
        %v2487 = vunpack.c.l.b16 %v1711
        %v2488 = vunpack.c.h.b16 %v1711
        %v2489 = vunpack.c.l.b16 %v1712
        %v2490 = vunpack.c.h.b16 %v1712
        %v2491 = vunpack.c.l.b16 %v1713
        %v2492 = vunpack.c.h.b16 %v1713
        %v2493 = vunpack.c.l.b16 %v1714
        %v2494 = vunpack.c.h.b16 %v1714
        %v2495 = vunpack.c.l.b16 %v1715
        %v2496 = vunpack.c.h.b16 %v1715
        %v2497 = vunpack.c.l.b16 %v1716
        %v2498 = vunpack.c.h.b16 %v1716
        %v2499 = vunpack.c.l.b16 %v1717
        %v2500 = vunpack.c.h.b16 %v1717
        %v2501 = vunpack.c.l.b16 %v1718
        %v2502 = vunpack.c.h.b16 %v1718
        %v2503 = vunpack.c.l.b16 %v1719
        %v2504 = vunpack.c.h.b16 %v1719
        %v2505 = vunpack.c.l.b16 %v1720
        %v2506 = vunpack.c.h.b16 %v1720
        %v2507 = vpack.c.b16 %v2003, %v1995
        %v2508 = vpack.c.b16 %v2004, %v1996
        %v2509 = vpack.c.b16 %v2005, %v1997
        %v2510 = vpack.c.b16 %v2006, %v1998
        %v2511 = vpack.c.b16 %v2007, %v1999
        %v2512 = vpack.c.b16 %v2008, %v2000
        %v2513 = vpack.c.b16 %v2009, %v2001
        %v2514 = vpack.c.b16 %v2010, %v2002
        %v2515 = vpack.c.b16 %v2019, %v2011
        %v2516 = vpack.c.b16 %v2020, %v2012
        %v2517 = vpack.c.b16 %v2021, %v2013
        %v2518 = vpack.c.b16 %v2022, %v2014
        %v2519 = vpack.c.b16 %v2023, %v2015
        %v2520 = vpack.c.b16 %v2024, %v2016
        %v2521 = vpack.c.b16 %v2025, %v2017
        %v2522 = vpack.c.b16 %v2026, %v2018
        %v2523 = vpack.c.b16 %v2035, %v2027
        %v2524 = vpack.c.b16 %v2036, %v2028
        %v2525 = vpack.c.b16 %v2037, %v2029
        %v2526 = vpack.c.b16 %v2038, %v2030
        %v2527 = vpack.c.b16 %v2039, %v2031
        %v2528 = vpack.c.b16 %v2040, %v2032
        %v2529 = vpack.c.b16 %v2041, %v2033
        %v2530 = vpack.c.b16 %v2042, %v2034
        %v2531 = vpack.c.b16 %v2051, %v2043
        %v2532 = vpack.c.b16 %v2052, %v2044
        %v2533 = vpack.c.b16 %v2053, %v2045
        %v2534 = vpack.c.b16 %v2054, %v2046
        %v2535 = vpack.c.b16 %v2055, %v2047
        %v2536 = vpack.c.b16 %v2056, %v2048
        %v2537 = vpack.c.b16 %v2057, %v2049
        %v2538 = vpack.c.b16 %v2058, %v2050
        %v2539 = vpack.c.b16 %v2067, %v2059
        %v2540 = vpack.c.b16 %v2068, %v2060
        %v2541 = vpack.c.b16 %v2069, %v2061
        %v2542 = vpack.c.b16 %v2070, %v2062
        %v2543 = vpack.c.b16 %v2071, %v2063
        %v2544 = vpack.c.b16 %v2072, %v2064
        %v2545 = vpack.c.b16 %v2073, %v2065
        %v2546 = vpack.c.b16 %v2074, %v2066
        %v2547 = vpack.c.b16 %v2083, %v2075
        %v2548 = vpack.c.b16 %v2084, %v2076
        %v2549 = vpack.c.b16 %v2085, %v2077
        %v2550 = vpack.c.b16 %v2086, %v2078
        %v2551 = vpack.c.b16 %v2087, %v2079
        %v2552 = vpack.c.b16 %v2088, %v2080
        %v2553 = vpack.c.b16 %v2089, %v2081
        %v2554 = vpack.c.b16 %v2090, %v2082
        %v2555 = vpack.c.b16 %v2099, %v2091
        %v2556 = vpack.c.b16 %v2100, %v2092
        %v2557 = vpack.c.b16 %v2101, %v2093
        %v2558 = vpack.c.b16 %v2102, %v2094
        %v2559 = vpack.c.b16 %v2103, %v2095
        %v2560 = vpack.c.b16 %v2104, %v2096
        %v2561 = vpack.c.b16 %v2105, %v2097
        %v2562 = vpack.c.b16 %v2106, %v2098
        %v2563 = vpack.c.b16 %v2115, %v2107
        %v2564 = vpack.c.b16 %v2116, %v2108
        %v2565 = vpack.c.b16 %v2117, %v2109
        %v2566 = vpack.c.b16 %v2118, %v2110
        %v2567 = vpack.c.b16 %v2119, %v2111
        %v2568 = vpack.c.b16 %v2120, %v2112
        %v2569 = vpack.c.b16 %v2121, %v2113
        %v2570 = vpack.c.b16 %v2122, %v2114
        %v2571 = vpack.c.b16 %v2131, %v2123
        %v2572 = vpack.c.b16 %v2132, %v2124
        %v2573 = vpack.c.b16 %v2133, %v2125
        %v2574 = vpack.c.b16 %v2134, %v2126
        %v2575 = vpack.c.b16 %v2135, %v2127
        %v2576 = vpack.c.b16 %v2136, %v2128
        %v2577 = vpack.c.b16 %v2137, %v2129
        %v2578 = vpack.c.b16 %v2138, %v2130
        %v2579 = vpack.c.b16 %v2147, %v2139
        %v2580 = vpack.c.b16 %v2148, %v2140
        %v2581 = vpack.c.b16 %v2149, %v2141
        %v2582 = vpack.c.b16 %v2150, %v2142
        %v2583 = vpack.c.b16 %v2151, %v2143
        %v2584 = vpack.c.b16 %v2152, %v2144
        %v2585 = vpack.c.b16 %v2153, %v2145
        %v2586 = vpack.c.b16 %v2154, %v2146
        %v2587 = vpack.c.b16 %v2163, %v2155
        %v2588 = vpack.c.b16 %v2164, %v2156
        %v2589 = vpack.c.b16 %v2165, %v2157
        %v2590 = vpack.c.b16 %v2166, %v2158
        %v2591 = vpack.c.b16 %v2167, %v2159
        %v2592 = vpack.c.b16 %v2168, %v2160
        %v2593 = vpack.c.b16 %v2169, %v2161
        %v2594 = vpack.c.b16 %v2170, %v2162
        %v2595 = vpack.c.b16 %v2179, %v2171
        %v2596 = vpack.c.b16 %v2180, %v2172
        %v2597 = vpack.c.b16 %v2181, %v2173
        %v2598 = vpack.c.b16 %v2182, %v2174
        %v2599 = vpack.c.b16 %v2183, %v2175
        %v2600 = vpack.c.b16 %v2184, %v2176
        %v2601 = vpack.c.b16 %v2185, %v2177
        %v2602 = vpack.c.b16 %v2186, %v2178
        %v2603 = vpack.c.b16 %v2195, %v2187
        %v2604 = vpack.c.b16 %v2196, %v2188
        %v2605 = vpack.c.b16 %v2197, %v2189
        %v2606 = vpack.c.b16 %v2198, %v2190
        %v2607 = vpack.c.b16 %v2199, %v2191
        %v2608 = vpack.c.b16 %v2200, %v2192
        %v2609 = vpack.c.b16 %v2201, %v2193
        %v2610 = vpack.c.b16 %v2202, %v2194
        %v2611 = vpack.c.b16 %v2211, %v2203
        %v2612 = vpack.c.b16 %v2212, %v2204
        %v2613 = vpack.c.b16 %v2213, %v2205
        %v2614 = vpack.c.b16 %v2214, %v2206
        %v2615 = vpack.c.b16 %v2215, %v2207
        %v2616 = vpack.c.b16 %v2216, %v2208
        %v2617 = vpack.c.b16 %v2217, %v2209
        %v2618 = vpack.c.b16 %v2218, %v2210
        %v2619 = vpack.c.b16 %v2227, %v2219
        %v2620 = vpack.c.b16 %v2228, %v2220
        %v2621 = vpack.c.b16 %v2229, %v2221
        %v2622 = vpack.c.b16 %v2230, %v2222
        %v2623 = vpack.c.b16 %v2231, %v2223
        %v2624 = vpack.c.b16 %v2232, %v2224
        %v2625 = vpack.c.b16 %v2233, %v2225
        %v2626 = vpack.c.b16 %v2234, %v2226
        %v2627 = vpack.c.b16 %v2243, %v2235
        %v2628 = vpack.c.b16 %v2244, %v2236
        %v2629 = vpack.c.b16 %v2245, %v2237
        %v2630 = vpack.c.b16 %v2246, %v2238
        %v2631 = vpack.c.b16 %v2247, %v2239
        %v2632 = vpack.c.b16 %v2248, %v2240
        %v2633 = vpack.c.b16 %v2249, %v2241
        %v2634 = vpack.c.b16 %v2250, %v2242
        %v2635 = vpack.c.b16 %v2259, %v2251
        %v2636 = vpack.c.b16 %v2260, %v2252
        %v2637 = vpack.c.b16 %v2261, %v2253
        %v2638 = vpack.c.b16 %v2262, %v2254
        %v2639 = vpack.c.b16 %v2263, %v2255
        %v2640 = vpack.c.b16 %v2264, %v2256
        %v2641 = vpack.c.b16 %v2265, %v2257
        %v2642 = vpack.c.b16 %v2266, %v2258
        %v2643 = vpack.c.b16 %v2275, %v2267
        %v2644 = vpack.c.b16 %v2276, %v2268
        %v2645 = vpack.c.b16 %v2277, %v2269
        %v2646 = vpack.c.b16 %v2278, %v2270
        %v2647 = vpack.c.b16 %v2279, %v2271
        %v2648 = vpack.c.b16 %v2280, %v2272
        %v2649 = vpack.c.b16 %v2281, %v2273
        %v2650 = vpack.c.b16 %v2282, %v2274
        %v2651 = vpack.c.b16 %v2291, %v2283
        %v2652 = vpack.c.b16 %v2292, %v2284
        %v2653 = vpack.c.b16 %v2293, %v2285
        %v2654 = vpack.c.b16 %v2294, %v2286
        %v2655 = vpack.c.b16 %v2295, %v2287
        %v2656 = vpack.c.b16 %v2296, %v2288
        %v2657 = vpack.c.b16 %v2297, %v2289
        %v2658 = vpack.c.b16 %v2298, %v2290
        %v2659 = vpack.c.b16 %v2307, %v2299
        %v2660 = vpack.c.b16 %v2308, %v2300
        %v2661 = vpack.c.b16 %v2309, %v2301
        %v2662 = vpack.c.b16 %v2310, %v2302
        %v2663 = vpack.c.b16 %v2311, %v2303
        %v2664 = vpack.c.b16 %v2312, %v2304
        %v2665 = vpack.c.b16 %v2313, %v2305
        %v2666 = vpack.c.b16 %v2314, %v2306
        %v2667 = vpack.c.b16 %v2323, %v2315
        %v2668 = vpack.c.b16 %v2324, %v2316
        %v2669 = vpack.c.b16 %v2325, %v2317
        %v2670 = vpack.c.b16 %v2326, %v2318
        %v2671 = vpack.c.b16 %v2327, %v2319
        %v2672 = vpack.c.b16 %v2328, %v2320
        %v2673 = vpack.c.b16 %v2329, %v2321
        %v2674 = vpack.c.b16 %v2330, %v2322
        %v2675 = vpack.c.b16 %v2339, %v2331
        %v2676 = vpack.c.b16 %v2340, %v2332
        %v2677 = vpack.c.b16 %v2341, %v2333
        %v2678 = vpack.c.b16 %v2342, %v2334
        %v2679 = vpack.c.b16 %v2343, %v2335
        %v2680 = vpack.c.b16 %v2344, %v2336
        %v2681 = vpack.c.b16 %v2345, %v2337
        %v2682 = vpack.c.b16 %v2346, %v2338
        %v2683 = vpack.c.b16 %v2355, %v2347
        %v2684 = vpack.c.b16 %v2356, %v2348
        %v2685 = vpack.c.b16 %v2357, %v2349
        %v2686 = vpack.c.b16 %v2358, %v2350
        %v2687 = vpack.c.b16 %v2359, %v2351
        %v2688 = vpack.c.b16 %v2360, %v2352
        %v2689 = vpack.c.b16 %v2361, %v2353
        %v2690 = vpack.c.b16 %v2362, %v2354
        %v2691 = vpack.c.b16 %v2371, %v2363
        %v2692 = vpack.c.b16 %v2372, %v2364
        %v2693 = vpack.c.b16 %v2373, %v2365
        %v2694 = vpack.c.b16 %v2374, %v2366
        %v2695 = vpack.c.b16 %v2375, %v2367
        %v2696 = vpack.c.b16 %v2376, %v2368
        %v2697 = vpack.c.b16 %v2377, %v2369
        %v2698 = vpack.c.b16 %v2378, %v2370
        %v2699 = vpack.c.b16 %v2387, %v2379
        %v2700 = vpack.c.b16 %v2388, %v2380
        %v2701 = vpack.c.b16 %v2389, %v2381
        %v2702 = vpack.c.b16 %v2390, %v2382
        %v2703 = vpack.c.b16 %v2391, %v2383
        %v2704 = vpack.c.b16 %v2392, %v2384
        %v2705 = vpack.c.b16 %v2393, %v2385
        %v2706 = vpack.c.b16 %v2394, %v2386
        %v2707 = vpack.c.b16 %v2403, %v2395
        %v2708 = vpack.c.b16 %v2404, %v2396
        %v2709 = vpack.c.b16 %v2405, %v2397
        %v2710 = vpack.c.b16 %v2406, %v2398
        %v2711 = vpack.c.b16 %v2407, %v2399
        %v2712 = vpack.c.b16 %v2408, %v2400
        %v2713 = vpack.c.b16 %v2409, %v2401
        %v2714 = vpack.c.b16 %v2410, %v2402
        %v2715 = vpack.c.b16 %v2419, %v2411
        %v2716 = vpack.c.b16 %v2420, %v2412
        %v2717 = vpack.c.b16 %v2421, %v2413
        %v2718 = vpack.c.b16 %v2422, %v2414
        %v2719 = vpack.c.b16 %v2423, %v2415
        %v2720 = vpack.c.b16 %v2424, %v2416
        %v2721 = vpack.c.b16 %v2425, %v2417
        %v2722 = vpack.c.b16 %v2426, %v2418
        %v2723 = vpack.c.b16 %v2435, %v2427
        %v2724 = vpack.c.b16 %v2436, %v2428
        %v2725 = vpack.c.b16 %v2437, %v2429
        %v2726 = vpack.c.b16 %v2438, %v2430
        %v2727 = vpack.c.b16 %v2439, %v2431
        %v2728 = vpack.c.b16 %v2440, %v2432
        %v2729 = vpack.c.b16 %v2441, %v2433
        %v2730 = vpack.c.b16 %v2442, %v2434
        %v2731 = vpack.c.b16 %v2451, %v2443
        %v2732 = vpack.c.b16 %v2452, %v2444
        %v2733 = vpack.c.b16 %v2453, %v2445
        %v2734 = vpack.c.b16 %v2454, %v2446
        %v2735 = vpack.c.b16 %v2455, %v2447
        %v2736 = vpack.c.b16 %v2456, %v2448
        %v2737 = vpack.c.b16 %v2457, %v2449
        %v2738 = vpack.c.b16 %v2458, %v2450
        %v2739 = vpack.c.b16 %v2467, %v2459
        %v2740 = vpack.c.b16 %v2468, %v2460
        %v2741 = vpack.c.b16 %v2469, %v2461
        %v2742 = vpack.c.b16 %v2470, %v2462
        %v2743 = vpack.c.b16 %v2471, %v2463
        %v2744 = vpack.c.b16 %v2472, %v2464
        %v2745 = vpack.c.b16 %v2473, %v2465
        %v2746 = vpack.c.b16 %v2474, %v2466
        %v2747 = vpack.c.b16 %v2483, %v2475
        %v2748 = vpack.c.b16 %v2484, %v2476
        %v2749 = vpack.c.b16 %v2485, %v2477
        %v2750 = vpack.c.b16 %v2486, %v2478
        %v2751 = vpack.c.b16 %v2487, %v2479
        %v2752 = vpack.c.b16 %v2488, %v2480
        %v2753 = vpack.c.b16 %v2489, %v2481
        %v2754 = vpack.c.b16 %v2490, %v2482
        %v2755 = vpack.c.b16 %v2499, %v2491
        %v2756 = vpack.c.b16 %v2500, %v2492
        %v2757 = vpack.c.b16 %v2501, %v2493
        %v2758 = vpack.c.b16 %v2502, %v2494
        %v2759 = vpack.c.b16 %v2503, %v2495
        %v2760 = vpack.c.b16 %v2504, %v2496
        %v2761 = vpack.c.b16 %v2505, %v2497
        %v2762 = vpack.c.b16 %v2506, %v2498
        %3019 = vmatpush.bf16.msra.mxu0 %v2563
        %3020 = vmatpush.bf16.msra.mxu0 %v2555
        %3021 = vmatpush.bf16.msra.mxu0 %v2547
        %3022 = vmatpush.bf16.msra.mxu0 %v2539
        %3023 = vmatpush.bf16.msra.mxu0 %v2531
        %3024 = vmatpush.bf16.msra.mxu0 %v2523
        %3025 = vmatpush.bf16.msra.mxu0 %v2515
        %3026 = vmatpush.bf16.msra.mxu0 %v2507
        %3027 = vmatmul.bf16.gmra.mxu0 %v1461
        %v3028 = vpop.f32.mrf.mxu0
        %v3029 = vadd.f32 %v1723, %v3028
        %v3030 = vpop.f32.mrf.mxu0
        %3031 = vdwg.mxu0
        %3032 = vmatpush.bf16.msra.mxu0 %v2627
        %3033 = vmatpush.bf16.msra.mxu0 %v2619
        %3034 = vmatpush.bf16.msra.mxu0 %v2611
        %3035 = vmatpush.bf16.msra.mxu0 %v2603
        %3036 = vmatpush.bf16.msra.mxu0 %v2595
        %3037 = vmatpush.bf16.msra.mxu0 %v2587
        %3038 = vmatpush.bf16.msra.mxu0 %v2579
        %3039 = vmatpush.bf16.msra.mxu0 %v2571
        %3040 = vmatmul.bf16.gmra.mxu0 %v1462
        %v3041 = vpop.f32.mrf.mxu0
        %v3042 = vadd.f32 %v3029, %v3041
        %v3043 = vpop.f32.mrf.mxu0
        %3044 = vdwg.mxu0
        %3045 = vmatpush.bf16.msra.mxu0 %v2691
        %3046 = vmatpush.bf16.msra.mxu0 %v2683
        %3047 = vmatpush.bf16.msra.mxu0 %v2675
        %3048 = vmatpush.bf16.msra.mxu0 %v2667
        %3049 = vmatpush.bf16.msra.mxu0 %v2659
        %3050 = vmatpush.bf16.msra.mxu0 %v2651
        %3051 = vmatpush.bf16.msra.mxu0 %v2643
        %3052 = vmatpush.bf16.msra.mxu0 %v2635
        %3053 = vmatmul.bf16.gmra.mxu0 %v1463
        %v3054 = vpop.f32.mrf.mxu0
        %v3055 = vadd.f32 %v3042, %v3054
        %v3056 = vpop.f32.mrf.mxu0
        %3057 = vdwg.mxu0
        %3058 = vmatpush.bf16.msra.mxu0 %v2755
        %3059 = vmatpush.bf16.msra.mxu0 %v2747
        %3060 = vmatpush.bf16.msra.mxu0 %v2739
        %3061 = vmatpush.bf16.msra.mxu0 %v2731
        %3062 = vmatpush.bf16.msra.mxu0 %v2723
        %3063 = vmatpush.bf16.msra.mxu0 %v2715
        %3064 = vmatpush.bf16.msra.mxu0 %v2707
        %3065 = vmatpush.bf16.msra.mxu0 %v2699
        %3066 = vmatmul.bf16.gmra.mxu0 %v1464
        %v3067 = vpop.f32.mrf.mxu0
        %v3068 = vadd.f32 %v3055, %v3067
        %v3069 = vpop.f32.mrf.mxu0
        %3070 = vdwg.mxu0
        %3071 = vmatpush.bf16.msra.mxu0 %v2564
        %3072 = vmatpush.bf16.msra.mxu0 %v2556
        %3073 = vmatpush.bf16.msra.mxu0 %v2548
        %3074 = vmatpush.bf16.msra.mxu0 %v2540
        %3075 = vmatpush.bf16.msra.mxu0 %v2532
        %3076 = vmatpush.bf16.msra.mxu0 %v2524
        %3077 = vmatpush.bf16.msra.mxu0 %v2516
        %3078 = vmatpush.bf16.msra.mxu0 %v2508
        %3079 = vmatmul.bf16.gmra.mxu0 %v1461
        %v3080 = vpop.f32.mrf.mxu0
        %v3081 = vadd.f32 %v1724, %v3080
        %v3082 = vpop.f32.mrf.mxu0
        %3083 = vdwg.mxu0
        %3084 = vmatpush.bf16.msra.mxu0 %v2628
        %3085 = vmatpush.bf16.msra.mxu0 %v2620
        %3086 = vmatpush.bf16.msra.mxu0 %v2612
        %3087 = vmatpush.bf16.msra.mxu0 %v2604
        %3088 = vmatpush.bf16.msra.mxu0 %v2596
        %3089 = vmatpush.bf16.msra.mxu0 %v2588
        %3090 = vmatpush.bf16.msra.mxu0 %v2580
        %3091 = vmatpush.bf16.msra.mxu0 %v2572
        %3092 = vmatmul.bf16.gmra.mxu0 %v1462
        %v3093 = vpop.f32.mrf.mxu0
        %v3094 = vadd.f32 %v3081, %v3093
        %v3095 = vpop.f32.mrf.mxu0
        %3096 = vdwg.mxu0
        %3097 = vmatpush.bf16.msra.mxu0 %v2692
        %3098 = vmatpush.bf16.msra.mxu0 %v2684
        %3099 = vmatpush.bf16.msra.mxu0 %v2676
        %3100 = vmatpush.bf16.msra.mxu0 %v2668
        %3101 = vmatpush.bf16.msra.mxu0 %v2660
        %3102 = vmatpush.bf16.msra.mxu0 %v2652
        %3103 = vmatpush.bf16.msra.mxu0 %v2644
        %3104 = vmatpush.bf16.msra.mxu0 %v2636
        %3105 = vmatmul.bf16.gmra.mxu0 %v1463
        %v3106 = vpop.f32.mrf.mxu0
        %v3107 = vadd.f32 %v3094, %v3106
        %v3108 = vpop.f32.mrf.mxu0
        %3109 = vdwg.mxu0
        %3110 = vmatpush.bf16.msra.mxu0 %v2756
        %3111 = vmatpush.bf16.msra.mxu0 %v2748
        %3112 = vmatpush.bf16.msra.mxu0 %v2740
        %3113 = vmatpush.bf16.msra.mxu0 %v2732
        %3114 = vmatpush.bf16.msra.mxu0 %v2724
        %3115 = vmatpush.bf16.msra.mxu0 %v2716
        %3116 = vmatpush.bf16.msra.mxu0 %v2708
        %3117 = vmatpush.bf16.msra.mxu0 %v2700
        %3118 = vmatmul.bf16.gmra.mxu0 %v1464
        %v3119 = vpop.f32.mrf.mxu0
        %v3120 = vadd.f32 %v3107, %v3119
        %v3121 = vpop.f32.mrf.mxu0
        %3122 = vdwg.mxu0
        %3123 = vmatpush.bf16.msra.mxu0 %v2565
        %3124 = vmatpush.bf16.msra.mxu0 %v2557
        %3125 = vmatpush.bf16.msra.mxu0 %v2549
        %3126 = vmatpush.bf16.msra.mxu0 %v2541
        %3127 = vmatpush.bf16.msra.mxu0 %v2533
        %3128 = vmatpush.bf16.msra.mxu0 %v2525
        %3129 = vmatpush.bf16.msra.mxu0 %v2517
        %3130 = vmatpush.bf16.msra.mxu0 %v2509
        %3131 = vmatmul.bf16.gmra.mxu0 %v1461
        %v3132 = vpop.f32.mrf.mxu0
        %v3133 = vadd.f32 %v1725, %v3132
        %v3134 = vpop.f32.mrf.mxu0
        %3135 = vdwg.mxu0
        %3136 = vmatpush.bf16.msra.mxu0 %v2629
        %3137 = vmatpush.bf16.msra.mxu0 %v2621
        %3138 = vmatpush.bf16.msra.mxu0 %v2613
        %3139 = vmatpush.bf16.msra.mxu0 %v2605
        %3140 = vmatpush.bf16.msra.mxu0 %v2597
        %3141 = vmatpush.bf16.msra.mxu0 %v2589
        %3142 = vmatpush.bf16.msra.mxu0 %v2581
        %3143 = vmatpush.bf16.msra.mxu0 %v2573
        %3144 = vmatmul.bf16.gmra.mxu0 %v1462
        %v3145 = vpop.f32.mrf.mxu0
        %v3146 = vadd.f32 %v3133, %v3145
        %v3147 = vpop.f32.mrf.mxu0
        %3148 = vdwg.mxu0
        %3149 = vmatpush.bf16.msra.mxu0 %v2693
        %3150 = vmatpush.bf16.msra.mxu0 %v2685
        %3151 = vmatpush.bf16.msra.mxu0 %v2677
        %3152 = vmatpush.bf16.msra.mxu0 %v2669
        %3153 = vmatpush.bf16.msra.mxu0 %v2661
        %3154 = vmatpush.bf16.msra.mxu0 %v2653
        %3155 = vmatpush.bf16.msra.mxu0 %v2645
        %3156 = vmatpush.bf16.msra.mxu0 %v2637
        %3157 = vmatmul.bf16.gmra.mxu0 %v1463
        %v3158 = vpop.f32.mrf.mxu0
        %v3159 = vadd.f32 %v3146, %v3158
        %v3160 = vpop.f32.mrf.mxu0
        %3161 = vdwg.mxu0
        %3162 = vmatpush.bf16.msra.mxu0 %v2757
        %3163 = vmatpush.bf16.msra.mxu0 %v2749
        %3164 = vmatpush.bf16.msra.mxu0 %v2741
        %3165 = vmatpush.bf16.msra.mxu0 %v2733
        %3166 = vmatpush.bf16.msra.mxu0 %v2725
        %3167 = vmatpush.bf16.msra.mxu0 %v2717
        %3168 = vmatpush.bf16.msra.mxu0 %v2709
        %3169 = vmatpush.bf16.msra.mxu0 %v2701
        %3170 = vmatmul.bf16.gmra.mxu0 %v1464
        %v3171 = vpop.f32.mrf.mxu0
        %v3172 = vadd.f32 %v3159, %v3171
        %v3173 = vpop.f32.mrf.mxu0
        %3174 = vdwg.mxu0
        %3175 = vmatpush.bf16.msra.mxu0 %v2566
        %3176 = vmatpush.bf16.msra.mxu0 %v2558
        %3177 = vmatpush.bf16.msra.mxu0 %v2550
        %3178 = vmatpush.bf16.msra.mxu0 %v2542
        %3179 = vmatpush.bf16.msra.mxu0 %v2534
        %3180 = vmatpush.bf16.msra.mxu0 %v2526
        %3181 = vmatpush.bf16.msra.mxu0 %v2518
        %3182 = vmatpush.bf16.msra.mxu0 %v2510
        %3183 = vmatmul.bf16.gmra.mxu0 %v1461
        %v3184 = vpop.f32.mrf.mxu0
        %v3185 = vadd.f32 %v1726, %v3184
        %v3186 = vpop.f32.mrf.mxu0
        %3187 = vdwg.mxu0
        %3188 = vmatpush.bf16.msra.mxu0 %v2630
        %3189 = vmatpush.bf16.msra.mxu0 %v2622
        %3190 = vmatpush.bf16.msra.mxu0 %v2614
        %3191 = vmatpush.bf16.msra.mxu0 %v2606
        %3192 = vmatpush.bf16.msra.mxu0 %v2598
        %3193 = vmatpush.bf16.msra.mxu0 %v2590
        %3194 = vmatpush.bf16.msra.mxu0 %v2582
        %3195 = vmatpush.bf16.msra.mxu0 %v2574
        %3196 = vmatmul.bf16.gmra.mxu0 %v1462
        %v3197 = vpop.f32.mrf.mxu0
        %v3198 = vadd.f32 %v3185, %v3197
        %v3199 = vpop.f32.mrf.mxu0
        %3200 = vdwg.mxu0
        %3201 = vmatpush.bf16.msra.mxu0 %v2694
        %3202 = vmatpush.bf16.msra.mxu0 %v2686
        %3203 = vmatpush.bf16.msra.mxu0 %v2678
        %3204 = vmatpush.bf16.msra.mxu0 %v2670
        %3205 = vmatpush.bf16.msra.mxu0 %v2662
        %3206 = vmatpush.bf16.msra.mxu0 %v2654
        %3207 = vmatpush.bf16.msra.mxu0 %v2646
        %3208 = vmatpush.bf16.msra.mxu0 %v2638
        %3209 = vmatmul.bf16.gmra.mxu0 %v1463
        %v3210 = vpop.f32.mrf.mxu0
        %v3211 = vadd.f32 %v3198, %v3210
        %v3212 = vpop.f32.mrf.mxu0
        %3213 = vdwg.mxu0
        %3214 = vmatpush.bf16.msra.mxu0 %v2758
        %3215 = vmatpush.bf16.msra.mxu0 %v2750
        %3216 = vmatpush.bf16.msra.mxu0 %v2742
        %3217 = vmatpush.bf16.msra.mxu0 %v2734
        %3218 = vmatpush.bf16.msra.mxu0 %v2726
        %3219 = vmatpush.bf16.msra.mxu0 %v2718
        %3220 = vmatpush.bf16.msra.mxu0 %v2710
        %3221 = vmatpush.bf16.msra.mxu0 %v2702
        %3222 = vmatmul.bf16.gmra.mxu0 %v1464
        %v3223 = vpop.f32.mrf.mxu0
        %v3224 = vadd.f32 %v3211, %v3223
        %v3225 = vpop.f32.mrf.mxu0
        %3226 = vdwg.mxu0
        %3227 = vmatpush.bf16.msra.mxu0 %v2567
        %3228 = vmatpush.bf16.msra.mxu0 %v2559
        %3229 = vmatpush.bf16.msra.mxu0 %v2551
        %3230 = vmatpush.bf16.msra.mxu0 %v2543
        %3231 = vmatpush.bf16.msra.mxu0 %v2535
        %3232 = vmatpush.bf16.msra.mxu0 %v2527
        %3233 = vmatpush.bf16.msra.mxu0 %v2519
        %3234 = vmatpush.bf16.msra.mxu0 %v2511
        %3235 = vmatmul.bf16.gmra.mxu0 %v1461
        %v3236 = vpop.f32.mrf.mxu0
        %v3237 = vadd.f32 %v1727, %v3236
        %v3238 = vpop.f32.mrf.mxu0
        %3239 = vdwg.mxu0
        %3240 = vmatpush.bf16.msra.mxu0 %v2631
        %3241 = vmatpush.bf16.msra.mxu0 %v2623
        %3242 = vmatpush.bf16.msra.mxu0 %v2615
        %3243 = vmatpush.bf16.msra.mxu0 %v2607
        %3244 = vmatpush.bf16.msra.mxu0 %v2599
        %3245 = vmatpush.bf16.msra.mxu0 %v2591
        %3246 = vmatpush.bf16.msra.mxu0 %v2583
        %3247 = vmatpush.bf16.msra.mxu0 %v2575
        %3248 = vmatmul.bf16.gmra.mxu0 %v1462
        %v3249 = vpop.f32.mrf.mxu0
        %v3250 = vadd.f32 %v3237, %v3249
        %v3251 = vpop.f32.mrf.mxu0
        %3252 = vdwg.mxu0
        %3253 = vmatpush.bf16.msra.mxu0 %v2695
        %3254 = vmatpush.bf16.msra.mxu0 %v2687
        %3255 = vmatpush.bf16.msra.mxu0 %v2679
        %3256 = vmatpush.bf16.msra.mxu0 %v2671
        %3257 = vmatpush.bf16.msra.mxu0 %v2663
        %3258 = vmatpush.bf16.msra.mxu0 %v2655
        %3259 = vmatpush.bf16.msra.mxu0 %v2647
        %3260 = vmatpush.bf16.msra.mxu0 %v2639
        %3261 = vmatmul.bf16.gmra.mxu0 %v1463
        %v3262 = vpop.f32.mrf.mxu0
        %v3263 = vadd.f32 %v3250, %v3262
        %v3264 = vpop.f32.mrf.mxu0
        %3265 = vdwg.mxu0
        %3266 = vmatpush.bf16.msra.mxu0 %v2759
        %3267 = vmatpush.bf16.msra.mxu0 %v2751
        %3268 = vmatpush.bf16.msra.mxu0 %v2743
        %3269 = vmatpush.bf16.msra.mxu0 %v2735
        %3270 = vmatpush.bf16.msra.mxu0 %v2727
        %3271 = vmatpush.bf16.msra.mxu0 %v2719
        %3272 = vmatpush.bf16.msra.mxu0 %v2711
        %3273 = vmatpush.bf16.msra.mxu0 %v2703
        %3274 = vmatmul.bf16.gmra.mxu0 %v1464
        %v3275 = vpop.f32.mrf.mxu0
        %v3276 = vadd.f32 %v3263, %v3275
        %v3277 = vpop.f32.mrf.mxu0
        %3278 = vdwg.mxu0
        %3279 = vmatpush.bf16.msra.mxu0 %v2568
        %3280 = vmatpush.bf16.msra.mxu0 %v2560
        %3281 = vmatpush.bf16.msra.mxu0 %v2552
        %3282 = vmatpush.bf16.msra.mxu0 %v2544
        %3283 = vmatpush.bf16.msra.mxu0 %v2536
        %3284 = vmatpush.bf16.msra.mxu0 %v2528
        %3285 = vmatpush.bf16.msra.mxu0 %v2520
        %3286 = vmatpush.bf16.msra.mxu0 %v2512
        %3287 = vmatmul.bf16.gmra.mxu0 %v1461
        %v3288 = vpop.f32.mrf.mxu0
        %v3289 = vadd.f32 %v1728, %v3288
        %v3290 = vpop.f32.mrf.mxu0
        %3291 = vdwg.mxu0
        %3292 = vmatpush.bf16.msra.mxu0 %v2632
        %3293 = vmatpush.bf16.msra.mxu0 %v2624
        %3294 = vmatpush.bf16.msra.mxu0 %v2616
        %3295 = vmatpush.bf16.msra.mxu0 %v2608
        %3296 = vmatpush.bf16.msra.mxu0 %v2600
        %3297 = vmatpush.bf16.msra.mxu0 %v2592
        %3298 = vmatpush.bf16.msra.mxu0 %v2584
        %3299 = vmatpush.bf16.msra.mxu0 %v2576
        %3300 = vmatmul.bf16.gmra.mxu0 %v1462
        %v3301 = vpop.f32.mrf.mxu0
        %v3302 = vadd.f32 %v3289, %v3301
        %v3303 = vpop.f32.mrf.mxu0
        %3304 = vdwg.mxu0
        %3305 = vmatpush.bf16.msra.mxu0 %v2696
        %3306 = vmatpush.bf16.msra.mxu0 %v2688
        %3307 = vmatpush.bf16.msra.mxu0 %v2680
        %3308 = vmatpush.bf16.msra.mxu0 %v2672
        %3309 = vmatpush.bf16.msra.mxu0 %v2664
        %3310 = vmatpush.bf16.msra.mxu0 %v2656
        %3311 = vmatpush.bf16.msra.mxu0 %v2648
        %3312 = vmatpush.bf16.msra.mxu0 %v2640
        %3313 = vmatmul.bf16.gmra.mxu0 %v1463
        %v3314 = vpop.f32.mrf.mxu0
        %v3315 = vadd.f32 %v3302, %v3314
        %v3316 = vpop.f32.mrf.mxu0
        %3317 = vdwg.mxu0
        %3318 = vmatpush.bf16.msra.mxu0 %v2760
        %3319 = vmatpush.bf16.msra.mxu0 %v2752
        %3320 = vmatpush.bf16.msra.mxu0 %v2744
        %3321 = vmatpush.bf16.msra.mxu0 %v2736
        %3322 = vmatpush.bf16.msra.mxu0 %v2728
        %3323 = vmatpush.bf16.msra.mxu0 %v2720
        %3324 = vmatpush.bf16.msra.mxu0 %v2712
        %3325 = vmatpush.bf16.msra.mxu0 %v2704
        %3326 = vmatmul.bf16.gmra.mxu0 %v1464
        %v3327 = vpop.f32.mrf.mxu0
        %v3328 = vadd.f32 %v3315, %v3327
        %v3329 = vpop.f32.mrf.mxu0
        %3330 = vdwg.mxu0
        %3331 = vmatpush.bf16.msra.mxu0 %v2569
        %3332 = vmatpush.bf16.msra.mxu0 %v2561
        %3333 = vmatpush.bf16.msra.mxu0 %v2553
        %3334 = vmatpush.bf16.msra.mxu0 %v2545
        %3335 = vmatpush.bf16.msra.mxu0 %v2537
        %3336 = vmatpush.bf16.msra.mxu0 %v2529
        %3337 = vmatpush.bf16.msra.mxu0 %v2521
        %3338 = vmatpush.bf16.msra.mxu0 %v2513
        %3339 = vmatmul.bf16.gmra.mxu0 %v1461
        %v3340 = vpop.f32.mrf.mxu0
        %v3341 = vadd.f32 %v1729, %v3340
        %v3342 = vpop.f32.mrf.mxu0
        %3343 = vdwg.mxu0
        %3344 = vmatpush.bf16.msra.mxu0 %v2633
        %3345 = vmatpush.bf16.msra.mxu0 %v2625
        %3346 = vmatpush.bf16.msra.mxu0 %v2617
        %3347 = vmatpush.bf16.msra.mxu0 %v2609
        %3348 = vmatpush.bf16.msra.mxu0 %v2601
        %3349 = vmatpush.bf16.msra.mxu0 %v2593
        %3350 = vmatpush.bf16.msra.mxu0 %v2585
        %3351 = vmatpush.bf16.msra.mxu0 %v2577
        %3352 = vmatmul.bf16.gmra.mxu0 %v1462
        %v3353 = vpop.f32.mrf.mxu0
        %v3354 = vadd.f32 %v3341, %v3353
        %v3355 = vpop.f32.mrf.mxu0
        %3356 = vdwg.mxu0
        %3357 = vmatpush.bf16.msra.mxu0 %v2697
        %3358 = vmatpush.bf16.msra.mxu0 %v2689
        %3359 = vmatpush.bf16.msra.mxu0 %v2681
        %3360 = vmatpush.bf16.msra.mxu0 %v2673
        %3361 = vmatpush.bf16.msra.mxu0 %v2665
        %3362 = vmatpush.bf16.msra.mxu0 %v2657
        %3363 = vmatpush.bf16.msra.mxu0 %v2649
        %3364 = vmatpush.bf16.msra.mxu0 %v2641
        %3365 = vmatmul.bf16.gmra.mxu0 %v1463
        %v3366 = vpop.f32.mrf.mxu0
        %v3367 = vadd.f32 %v3354, %v3366
        %v3368 = vpop.f32.mrf.mxu0
        %3369 = vdwg.mxu0
        %3370 = vmatpush.bf16.msra.mxu0 %v2761
        %3371 = vmatpush.bf16.msra.mxu0 %v2753
        %3372 = vmatpush.bf16.msra.mxu0 %v2745
        %3373 = vmatpush.bf16.msra.mxu0 %v2737
        %3374 = vmatpush.bf16.msra.mxu0 %v2729
        %3375 = vmatpush.bf16.msra.mxu0 %v2721
        %3376 = vmatpush.bf16.msra.mxu0 %v2713
        %3377 = vmatpush.bf16.msra.mxu0 %v2705
        %3378 = vmatmul.bf16.gmra.mxu0 %v1464
        %v3379 = vpop.f32.mrf.mxu0
        %v3380 = vadd.f32 %v3367, %v3379
        %v3381 = vpop.f32.mrf.mxu0
        %3382 = vdwg.mxu0
        %3383 = vmatpush.bf16.msra.mxu0 %v2570
        %3384 = vmatpush.bf16.msra.mxu0 %v2562
        %3385 = vmatpush.bf16.msra.mxu0 %v2554
        %3386 = vmatpush.bf16.msra.mxu0 %v2546
        %3387 = vmatpush.bf16.msra.mxu0 %v2538
        %3388 = vmatpush.bf16.msra.mxu0 %v2530
        %3389 = vmatpush.bf16.msra.mxu0 %v2522
        %3390 = vmatpush.bf16.msra.mxu0 %v2514
        %3391 = vmatmul.bf16.gmra.mxu0 %v1461
        %v3392 = vpop.f32.mrf.mxu0
        %v3393 = vadd.f32 %v1730, %v3392
        %v3394 = vpop.f32.mrf.mxu0
        %3395 = vdwg.mxu0
        %3396 = vmatpush.bf16.msra.mxu0 %v2634
        %3397 = vmatpush.bf16.msra.mxu0 %v2626
        %3398 = vmatpush.bf16.msra.mxu0 %v2618
        %3399 = vmatpush.bf16.msra.mxu0 %v2610
        %3400 = vmatpush.bf16.msra.mxu0 %v2602
        %3401 = vmatpush.bf16.msra.mxu0 %v2594
        %3402 = vmatpush.bf16.msra.mxu0 %v2586
        %3403 = vmatpush.bf16.msra.mxu0 %v2578
        %3404 = vmatmul.bf16.gmra.mxu0 %v1462
        %v3405 = vpop.f32.mrf.mxu0
        %v3406 = vadd.f32 %v3393, %v3405
        %v3407 = vpop.f32.mrf.mxu0
        %3408 = vdwg.mxu0
        %3409 = vmatpush.bf16.msra.mxu0 %v2698
        %3410 = vmatpush.bf16.msra.mxu0 %v2690
        %3411 = vmatpush.bf16.msra.mxu0 %v2682
        %3412 = vmatpush.bf16.msra.mxu0 %v2674
        %3413 = vmatpush.bf16.msra.mxu0 %v2666
        %3414 = vmatpush.bf16.msra.mxu0 %v2658
        %3415 = vmatpush.bf16.msra.mxu0 %v2650
        %3416 = vmatpush.bf16.msra.mxu0 %v2642
        %3417 = vmatmul.bf16.gmra.mxu0 %v1463
        %v3418 = vpop.f32.mrf.mxu0
        %v3419 = vadd.f32 %v3406, %v3418
        %v3420 = vpop.f32.mrf.mxu0
        %3421 = vdwg.mxu0
        %3422 = vmatpush.bf16.msra.mxu0 %v2762
        %3423 = vmatpush.bf16.msra.mxu0 %v2754
        %3424 = vmatpush.bf16.msra.mxu0 %v2746
        %3425 = vmatpush.bf16.msra.mxu0 %v2738
        %3426 = vmatpush.bf16.msra.mxu0 %v2730
        %3427 = vmatpush.bf16.msra.mxu0 %v2722
        %3428 = vmatpush.bf16.msra.mxu0 %v2714
        %3429 = vmatpush.bf16.msra.mxu0 %v2706
        %3430 = vmatmul.bf16.gmra.mxu0 %v1464
        %v3431 = vpop.f32.mrf.mxu0
        %v3432 = vadd.f32 %v3419, %v3431
        %v3433 = vpop.f32.mrf.mxu0
        %3434 = vdwg.mxu0
        %v3435 = vmax.f32 %v3068, 0.0
        %v3436 = vmax.f32 %v3120, 0.0
        %v3437 = vmax.f32 %v3172, 0.0
        %v3438 = vmax.f32 %v3224, 0.0
        %v3439 = vmax.f32 %v3276, 0.0
        %v3440 = vmax.f32 %v3328, 0.0
        %v3441 = vmax.f32 %v3380, 0.0
        %v3442 = vmax.f32 %v3432, 0.0
        %v3443 = vpack.c.bf16 %v3435, %v3435
        %v3444 = vpack.c.bf16 %v3436, %v3436
        %v3445 = vpack.c.bf16 %v3437, %v3437
        %v3446 = vpack.c.bf16 %v3438, %v3438
        %v3447 = vpack.c.bf16 %v3439, %v3439
        %v3448 = vpack.c.bf16 %v3440, %v3440
        %v3449 = vpack.c.bf16 %v3441, %v3441
        %v3450 = vpack.c.bf16 %v3442, %v3442
        %v3451 = vld [vmem:[#allocation16] sm:$0xff]
        %v3452 = vld [vmem:[#allocation16 + $0x8] sm:$0xff]
        %v3453 = vld [vmem:[#allocation16 + $0x10] sm:$0xff]
        %v3454 = vld [vmem:[#allocation16 + $0x18] sm:$0xff]
        %v3455 = vld [vmem:[#allocation16 + $0x20] sm:$0xff]
        %v3456 = vld [vmem:[#allocation16 + $0x28] sm:$0xff]
        %v3457 = vld [vmem:[#allocation16 + $0x30] sm:$0xff]
        %v3458 = vld [vmem:[#allocation16 + $0x38] sm:$0xff]
        %v3459 = vld [vmem:[#allocation16 + $0x40] sm:$0xff]
        %v3460 = vld [vmem:[#allocation16 + $0x48] sm:$0xff]
        %v3461 = vld [vmem:[#allocation16 + $0x50] sm:$0xff]
        %v3462 = vld [vmem:[#allocation16 + $0x58] sm:$0xff]
        %v3463 = vld [vmem:[#allocation16 + $0x60] sm:$0xff]
        %v3464 = vld [vmem:[#allocation16 + $0x68] sm:$0xff]
        %v3465 = vld [vmem:[#allocation16 + $0x70] sm:$0xff]
        %v3466 = vld [vmem:[#allocation16 + $0x78] sm:$0xff]
        %v3467 = vld [vmem:[#allocation16 + $0x80] sm:$0xff]
        %v3468 = vld [vmem:[#allocation16 + $0x88] sm:$0xff]
        %v3469 = vld [vmem:[#allocation16 + $0x90] sm:$0xff]
        %v3470 = vld [vmem:[#allocation16 + $0x98] sm:$0xff]
        %v3471 = vld [vmem:[#allocation16 + $0xa0] sm:$0xff]
        %v3472 = vld [vmem:[#allocation16 + $0xa8] sm:$0xff]
        %v3473 = vld [vmem:[#allocation16 + $0xb0] sm:$0xff]
        %v3474 = vld [vmem:[#allocation16 + $0xb8] sm:$0xff]
        %v3475 = vld [vmem:[#allocation16 + $0xc0] sm:$0xff]
        %v3476 = vld [vmem:[#allocation16 + $0xc8] sm:$0xff]
        %v3477 = vld [vmem:[#allocation16 + $0xd0] sm:$0xff]
        %v3478 = vld [vmem:[#allocation16 + $0xd8] sm:$0xff]
        %v3479 = vld [vmem:[#allocation16 + $0xe0] sm:$0xff]
        %v3480 = vld [vmem:[#allocation16 + $0xe8] sm:$0xff]
        %v3481 = vld [vmem:[#allocation16 + $0xf0] sm:$0xff]
        %v3482 = vld [vmem:[#allocation16 + $0xf8] sm:$0xff]
        %v3483 = vld [vmem:[#allocation16 + $0x100] sm:$0xff]
        %v3484 = vld [vmem:[#allocation16 + $0x108] sm:$0xff]
        %v3485 = vld [vmem:[#allocation16 + $0x110] sm:$0xff]
        %v3486 = vld [vmem:[#allocation16 + $0x118] sm:$0xff]
        %v3487 = vld [vmem:[#allocation16 + $0x120] sm:$0xff]
        %v3488 = vld [vmem:[#allocation16 + $0x128] sm:$0xff]
        %v3489 = vld [vmem:[#allocation16 + $0x130] sm:$0xff]
        %v3490 = vld [vmem:[#allocation16 + $0x138] sm:$0xff]
        %v3491 = vld [vmem:[#allocation16 + $0x140] sm:$0xff]
        %v3492 = vld [vmem:[#allocation16 + $0x148] sm:$0xff]
        %v3493 = vld [vmem:[#allocation16 + $0x150] sm:$0xff]
        %v3494 = vld [vmem:[#allocation16 + $0x158] sm:$0xff]
        %v3495 = vld [vmem:[#allocation16 + $0x160] sm:$0xff]
        %v3496 = vld [vmem:[#allocation16 + $0x168] sm:$0xff]
        %v3497 = vld [vmem:[#allocation16 + $0x170] sm:$0xff]
        %v3498 = vld [vmem:[#allocation16 + $0x178] sm:$0xff]
        %v3499 = vld [vmem:[#allocation16 + $0x180] sm:$0xff]
        %v3500 = vld [vmem:[#allocation16 + $0x188] sm:$0xff]
        %v3501 = vld [vmem:[#allocation16 + $0x190] sm:$0xff]
        %v3502 = vld [vmem:[#allocation16 + $0x198] sm:$0xff]
        %v3503 = vld [vmem:[#allocation16 + $0x1a0] sm:$0xff]
        %v3504 = vld [vmem:[#allocation16 + $0x1a8] sm:$0xff]
        %v3505 = vld [vmem:[#allocation16 + $0x1b0] sm:$0xff]
        %v3506 = vld [vmem:[#allocation16 + $0x1b8] sm:$0xff]
        %v3507 = vld [vmem:[#allocation16 + $0x1c0] sm:$0xff]
        %v3508 = vld [vmem:[#allocation16 + $0x1c8] sm:$0xff]
        %v3509 = vld [vmem:[#allocation16 + $0x1d0] sm:$0xff]
        %v3510 = vld [vmem:[#allocation16 + $0x1d8] sm:$0xff]
        %v3511 = vld [vmem:[#allocation16 + $0x1e0] sm:$0xff]
        %v3512 = vld [vmem:[#allocation16 + $0x1e8] sm:$0xff]
        %v3513 = vld [vmem:[#allocation16 + $0x1f0] sm:$0xff]
        %v3514 = vld [vmem:[#allocation16 + $0x1f8] sm:$0xff]
        %v3515 = vld [vmem:[#allocation16 + $0x200] sm:$0xff]
        %v3516 = vld [vmem:[#allocation16 + $0x208] sm:$0xff]
        %v3517 = vld [vmem:[#allocation16 + $0x210] sm:$0xff]
        %v3518 = vld [vmem:[#allocation16 + $0x218] sm:$0xff]
        %v3519 = vld [vmem:[#allocation16 + $0x220] sm:$0xff]
        %v3520 = vld [vmem:[#allocation16 + $0x228] sm:$0xff]
        %v3521 = vld [vmem:[#allocation16 + $0x230] sm:$0xff]
        %v3522 = vld [vmem:[#allocation16 + $0x238] sm:$0xff]
        %v3523 = vld [vmem:[#allocation16 + $0x240] sm:$0xff]
        %v3524 = vld [vmem:[#allocation16 + $0x248] sm:$0xff]
        %v3525 = vld [vmem:[#allocation16 + $0x250] sm:$0xff]
        %v3526 = vld [vmem:[#allocation16 + $0x258] sm:$0xff]
        %v3527 = vld [vmem:[#allocation16 + $0x260] sm:$0xff]
        %v3528 = vld [vmem:[#allocation16 + $0x268] sm:$0xff]
        %v3529 = vld [vmem:[#allocation16 + $0x270] sm:$0xff]
        %v3530 = vld [vmem:[#allocation16 + $0x278] sm:$0xff]
        %v3531 = vld [vmem:[#allocation16 + $0x280] sm:$0xff]
        %v3532 = vld [vmem:[#allocation16 + $0x288] sm:$0xff]
        %v3533 = vld [vmem:[#allocation16 + $0x290] sm:$0xff]
        %v3534 = vld [vmem:[#allocation16 + $0x298] sm:$0xff]
        %v3535 = vld [vmem:[#allocation16 + $0x2a0] sm:$0xff]
        %v3536 = vld [vmem:[#allocation16 + $0x2a8] sm:$0xff]
        %v3537 = vld [vmem:[#allocation16 + $0x2b0] sm:$0xff]
        %v3538 = vld [vmem:[#allocation16 + $0x2b8] sm:$0xff]
        %v3539 = vld [vmem:[#allocation16 + $0x2c0] sm:$0xff]
        %v3540 = vld [vmem:[#allocation16 + $0x2c8] sm:$0xff]
        %v3541 = vld [vmem:[#allocation16 + $0x2d0] sm:$0xff]
        %v3542 = vld [vmem:[#allocation16 + $0x2d8] sm:$0xff]
        %v3543 = vld [vmem:[#allocation16 + $0x2e0] sm:$0xff]
        %v3544 = vld [vmem:[#allocation16 + $0x2e8] sm:$0xff]
        %v3545 = vld [vmem:[#allocation16 + $0x2f0] sm:$0xff]
        %v3546 = vld [vmem:[#allocation16 + $0x2f8] sm:$0xff]
        %v3547 = vld [vmem:[#allocation16 + $0x300] sm:$0xff]
        %v3548 = vld [vmem:[#allocation16 + $0x308] sm:$0xff]
        %v3549 = vld [vmem:[#allocation16 + $0x310] sm:$0xff]
        %v3550 = vld [vmem:[#allocation16 + $0x318] sm:$0xff]
        %v3551 = vld [vmem:[#allocation16 + $0x320] sm:$0xff]
        %v3552 = vld [vmem:[#allocation16 + $0x328] sm:$0xff]
        %v3553 = vld [vmem:[#allocation16 + $0x330] sm:$0xff]
        %v3554 = vld [vmem:[#allocation16 + $0x338] sm:$0xff]
        %v3555 = vld [vmem:[#allocation16 + $0x340] sm:$0xff]
        %v3556 = vld [vmem:[#allocation16 + $0x348] sm:$0xff]
        %v3557 = vld [vmem:[#allocation16 + $0x350] sm:$0xff]
        %v3558 = vld [vmem:[#allocation16 + $0x358] sm:$0xff]
        %v3559 = vld [vmem:[#allocation16 + $0x360] sm:$0xff]
        %v3560 = vld [vmem:[#allocation16 + $0x368] sm:$0xff]
        %v3561 = vld [vmem:[#allocation16 + $0x370] sm:$0xff]
        %v3562 = vld [vmem:[#allocation16 + $0x378] sm:$0xff]
        %v3563 = vld [vmem:[#allocation16 + $0x380] sm:$0xff]
        %v3564 = vld [vmem:[#allocation16 + $0x388] sm:$0xff]
        %v3565 = vld [vmem:[#allocation16 + $0x390] sm:$0xff]
        %v3566 = vld [vmem:[#allocation16 + $0x398] sm:$0xff]
        %v3567 = vld [vmem:[#allocation16 + $0x3a0] sm:$0xff]
        %v3568 = vld [vmem:[#allocation16 + $0x3a8] sm:$0xff]
        %v3569 = vld [vmem:[#allocation16 + $0x3b0] sm:$0xff]
        %v3570 = vld [vmem:[#allocation16 + $0x3b8] sm:$0xff]
        %v3571 = vld [vmem:[#allocation16 + $0x3c0] sm:$0xff]
        %v3572 = vld [vmem:[#allocation16 + $0x3c8] sm:$0xff]
        %v3573 = vld [vmem:[#allocation16 + $0x3d0] sm:$0xff]
        %v3574 = vld [vmem:[#allocation16 + $0x3d8] sm:$0xff]
        %v3575 = vld [vmem:[#allocation16 + $0x3e0] sm:$0xff]
        %v3576 = vld [vmem:[#allocation16 + $0x3e8] sm:$0xff]
        %v3577 = vld [vmem:[#allocation16 + $0x3f0] sm:$0xff]
        %v3578 = vld [vmem:[#allocation16 + $0x3f8] sm:$0xff]
        %v3579 = vld [vmem:[#allocation16 + $0x400] sm:$0xff]
        %v3580 = vld [vmem:[#allocation16 + $0x408] sm:$0xff]
        %v3581 = vld [vmem:[#allocation16 + $0x410] sm:$0xff]
        %v3582 = vld [vmem:[#allocation16 + $0x418] sm:$0xff]
        %v3583 = vld [vmem:[#allocation16 + $0x420] sm:$0xff]
        %v3584 = vld [vmem:[#allocation16 + $0x428] sm:$0xff]
        %v3585 = vld [vmem:[#allocation16 + $0x430] sm:$0xff]
        %v3586 = vld [vmem:[#allocation16 + $0x438] sm:$0xff]
        %v3587 = vld [vmem:[#allocation16 + $0x440] sm:$0xff]
        %v3588 = vld [vmem:[#allocation16 + $0x448] sm:$0xff]
        %v3589 = vld [vmem:[#allocation16 + $0x450] sm:$0xff]
        %v3590 = vld [vmem:[#allocation16 + $0x458] sm:$0xff]
        %v3591 = vld [vmem:[#allocation16 + $0x460] sm:$0xff]
        %v3592 = vld [vmem:[#allocation16 + $0x468] sm:$0xff]
        %v3593 = vld [vmem:[#allocation16 + $0x470] sm:$0xff]
        %v3594 = vld [vmem:[#allocation16 + $0x478] sm:$0xff]
        %v3595 = vld [vmem:[#allocation16 + $0x480] sm:$0xff]
        %v3596 = vld [vmem:[#allocation16 + $0x488] sm:$0xff]
        %v3597 = vld [vmem:[#allocation16 + $0x490] sm:$0xff]
        %v3598 = vld [vmem:[#allocation16 + $0x498] sm:$0xff]
        %v3599 = vld [vmem:[#allocation16 + $0x4a0] sm:$0xff]
        %v3600 = vld [vmem:[#allocation16 + $0x4a8] sm:$0xff]
        %v3601 = vld [vmem:[#allocation16 + $0x4b0] sm:$0xff]
        %v3602 = vld [vmem:[#allocation16 + $0x4b8] sm:$0xff]
        %v3603 = vld [vmem:[#allocation16 + $0x4c0] sm:$0xff]
        %v3604 = vld [vmem:[#allocation16 + $0x4c8] sm:$0xff]
        %v3605 = vld [vmem:[#allocation16 + $0x4d0] sm:$0xff]
        %v3606 = vld [vmem:[#allocation16 + $0x4d8] sm:$0xff]
        %v3607 = vld [vmem:[#allocation16 + $0x4e0] sm:$0xff]
        %v3608 = vld [vmem:[#allocation16 + $0x4e8] sm:$0xff]
        %v3609 = vld [vmem:[#allocation16 + $0x4f0] sm:$0xff]
        %v3610 = vld [vmem:[#allocation16 + $0x4f8] sm:$0xff]
        %v3611 = vld [vmem:[#allocation16 + $0x500] sm:$0xff]
        %v3612 = vld [vmem:[#allocation16 + $0x508] sm:$0xff]
        %v3613 = vld [vmem:[#allocation16 + $0x510] sm:$0xff]
        %v3614 = vld [vmem:[#allocation16 + $0x518] sm:$0xff]
        %v3615 = vld [vmem:[#allocation16 + $0x520] sm:$0xff]
        %v3616 = vld [vmem:[#allocation16 + $0x528] sm:$0xff]
        %v3617 = vld [vmem:[#allocation16 + $0x530] sm:$0xff]
        %v3618 = vld [vmem:[#allocation16 + $0x538] sm:$0xff]
        %v3619 = vld [vmem:[#allocation16 + $0x540] sm:$0xff]
        %v3620 = vld [vmem:[#allocation16 + $0x548] sm:$0xff]
        %v3621 = vld [vmem:[#allocation16 + $0x550] sm:$0xff]
        %v3622 = vld [vmem:[#allocation16 + $0x558] sm:$0xff]
        %v3623 = vld [vmem:[#allocation16 + $0x560] sm:$0xff]
        %v3624 = vld [vmem:[#allocation16 + $0x568] sm:$0xff]
        %v3625 = vld [vmem:[#allocation16 + $0x570] sm:$0xff]
        %v3626 = vld [vmem:[#allocation16 + $0x578] sm:$0xff]
        %v3627 = vld [vmem:[#allocation16 + $0x580] sm:$0xff]
        %v3628 = vld [vmem:[#allocation16 + $0x588] sm:$0xff]
        %v3629 = vld [vmem:[#allocation16 + $0x590] sm:$0xff]
        %v3630 = vld [vmem:[#allocation16 + $0x598] sm:$0xff]
        %v3631 = vld [vmem:[#allocation16 + $0x5a0] sm:$0xff]
        %v3632 = vld [vmem:[#allocation16 + $0x5a8] sm:$0xff]
        %v3633 = vld [vmem:[#allocation16 + $0x5b0] sm:$0xff]
        %v3634 = vld [vmem:[#allocation16 + $0x5b8] sm:$0xff]
        %v3635 = vld [vmem:[#allocation16 + $0x5c0] sm:$0xff]
        %v3636 = vld [vmem:[#allocation16 + $0x5c8] sm:$0xff]
        %v3637 = vld [vmem:[#allocation16 + $0x5d0] sm:$0xff]
        %v3638 = vld [vmem:[#allocation16 + $0x5d8] sm:$0xff]
        %v3639 = vld [vmem:[#allocation16 + $0x5e0] sm:$0xff]
        %v3640 = vld [vmem:[#allocation16 + $0x5e8] sm:$0xff]
        %v3641 = vld [vmem:[#allocation16 + $0x5f0] sm:$0xff]
        %v3642 = vld [vmem:[#allocation16 + $0x5f8] sm:$0xff]
        %v3643 = vld [vmem:[#allocation16 + $0x600] sm:$0xff]
        %v3644 = vld [vmem:[#allocation16 + $0x608] sm:$0xff]
        %v3645 = vld [vmem:[#allocation16 + $0x610] sm:$0xff]
        %v3646 = vld [vmem:[#allocation16 + $0x618] sm:$0xff]
        %v3647 = vld [vmem:[#allocation16 + $0x620] sm:$0xff]
        %v3648 = vld [vmem:[#allocation16 + $0x628] sm:$0xff]
        %v3649 = vld [vmem:[#allocation16 + $0x630] sm:$0xff]
        %v3650 = vld [vmem:[#allocation16 + $0x638] sm:$0xff]
        %v3651 = vld [vmem:[#allocation16 + $0x640] sm:$0xff]
        %v3652 = vld [vmem:[#allocation16 + $0x648] sm:$0xff]
        %v3653 = vld [vmem:[#allocation16 + $0x650] sm:$0xff]
        %v3654 = vld [vmem:[#allocation16 + $0x658] sm:$0xff]
        %v3655 = vld [vmem:[#allocation16 + $0x660] sm:$0xff]
        %v3656 = vld [vmem:[#allocation16 + $0x668] sm:$0xff]
        %v3657 = vld [vmem:[#allocation16 + $0x670] sm:$0xff]
        %v3658 = vld [vmem:[#allocation16 + $0x678] sm:$0xff]
        %v3659 = vld [vmem:[#allocation16 + $0x680] sm:$0xff]
        %v3660 = vld [vmem:[#allocation16 + $0x688] sm:$0xff]
        %v3661 = vld [vmem:[#allocation16 + $0x690] sm:$0xff]
        %v3662 = vld [vmem:[#allocation16 + $0x698] sm:$0xff]
        %v3663 = vld [vmem:[#allocation16 + $0x6a0] sm:$0xff]
        %v3664 = vld [vmem:[#allocation16 + $0x6a8] sm:$0xff]
        %v3665 = vld [vmem:[#allocation16 + $0x6b0] sm:$0xff]
        %v3666 = vld [vmem:[#allocation16 + $0x6b8] sm:$0xff]
        %v3667 = vld [vmem:[#allocation16 + $0x6c0] sm:$0xff]
        %v3668 = vld [vmem:[#allocation16 + $0x6c8] sm:$0xff]
        %v3669 = vld [vmem:[#allocation16 + $0x6d0] sm:$0xff]
        %v3670 = vld [vmem:[#allocation16 + $0x6d8] sm:$0xff]
        %v3671 = vld [vmem:[#allocation16 + $0x6e0] sm:$0xff]
        %v3672 = vld [vmem:[#allocation16 + $0x6e8] sm:$0xff]
        %v3673 = vld [vmem:[#allocation16 + $0x6f0] sm:$0xff]
        %v3674 = vld [vmem:[#allocation16 + $0x6f8] sm:$0xff]
        %v3675 = vld [vmem:[#allocation16 + $0x700] sm:$0xff]
        %v3676 = vld [vmem:[#allocation16 + $0x708] sm:$0xff]
        %v3677 = vld [vmem:[#allocation16 + $0x710] sm:$0xff]
        %v3678 = vld [vmem:[#allocation16 + $0x718] sm:$0xff]
        %v3679 = vld [vmem:[#allocation16 + $0x720] sm:$0xff]
        %v3680 = vld [vmem:[#allocation16 + $0x728] sm:$0xff]
        %v3681 = vld [vmem:[#allocation16 + $0x730] sm:$0xff]
        %v3682 = vld [vmem:[#allocation16 + $0x738] sm:$0xff]
        %v3683 = vld [vmem:[#allocation16 + $0x740] sm:$0xff]
        %v3684 = vld [vmem:[#allocation16 + $0x748] sm:$0xff]
        %v3685 = vld [vmem:[#allocation16 + $0x750] sm:$0xff]
        %v3686 = vld [vmem:[#allocation16 + $0x758] sm:$0xff]
        %v3687 = vld [vmem:[#allocation16 + $0x760] sm:$0xff]
        %v3688 = vld [vmem:[#allocation16 + $0x768] sm:$0xff]
        %v3689 = vld [vmem:[#allocation16 + $0x770] sm:$0xff]
        %v3690 = vld [vmem:[#allocation16 + $0x778] sm:$0xff]
        %v3691 = vld [vmem:[#allocation16 + $0x780] sm:$0xff]
        %v3692 = vld [vmem:[#allocation16 + $0x788] sm:$0xff]
        %v3693 = vld [vmem:[#allocation16 + $0x790] sm:$0xff]
        %v3694 = vld [vmem:[#allocation16 + $0x798] sm:$0xff]
        %v3695 = vld [vmem:[#allocation16 + $0x7a0] sm:$0xff]
        %v3696 = vld [vmem:[#allocation16 + $0x7a8] sm:$0xff]
        %v3697 = vld [vmem:[#allocation16 + $0x7b0] sm:$0xff]
        %v3698 = vld [vmem:[#allocation16 + $0x7b8] sm:$0xff]
        %v3699 = vld [vmem:[#allocation16 + $0x7c0] sm:$0xff]
        %v3700 = vld [vmem:[#allocation16 + $0x7c8] sm:$0xff]
        %v3701 = vld [vmem:[#allocation16 + $0x7d0] sm:$0xff]
        %v3702 = vld [vmem:[#allocation16 + $0x7d8] sm:$0xff]
        %v3703 = vld [vmem:[#allocation16 + $0x7e0] sm:$0xff]
        %v3704 = vld [vmem:[#allocation16 + $0x7e8] sm:$0xff]
        %v3705 = vld [vmem:[#allocation16 + $0x7f0] sm:$0xff]
        %v3706 = vld [vmem:[#allocation16 + $0x7f8] sm:$0xff]
        %v3707 = vld [vmem:[%s10] sm:$0xf]
        %v3709 = vperm.slane %v3707, 0
        %v3710 = vperm.slane %v3707, 1
        %v3711 = vperm.slane %v3707, 2
        %v3712 = vperm.slane %v3707, 3
        %v3973 = vunpack.c.l.b16 %v3451
        %v3974 = vunpack.c.h.b16 %v3451
        %v3975 = vunpack.c.l.b16 %v3452
        %v3976 = vunpack.c.h.b16 %v3452
        %v3977 = vunpack.c.l.b16 %v3453
        %v3978 = vunpack.c.h.b16 %v3453
        %v3979 = vunpack.c.l.b16 %v3454
        %v3980 = vunpack.c.h.b16 %v3454
        %v3981 = vunpack.c.l.b16 %v3455
        %v3982 = vunpack.c.h.b16 %v3455
        %v3983 = vunpack.c.l.b16 %v3456
        %v3984 = vunpack.c.h.b16 %v3456
        %v3985 = vunpack.c.l.b16 %v3457
        %v3986 = vunpack.c.h.b16 %v3457
        %v3987 = vunpack.c.l.b16 %v3458
        %v3988 = vunpack.c.h.b16 %v3458
        %v3989 = vunpack.c.l.b16 %v3459
        %v3990 = vunpack.c.h.b16 %v3459
        %v3991 = vunpack.c.l.b16 %v3460
        %v3992 = vunpack.c.h.b16 %v3460
        %v3993 = vunpack.c.l.b16 %v3461
        %v3994 = vunpack.c.h.b16 %v3461
        %v3995 = vunpack.c.l.b16 %v3462
        %v3996 = vunpack.c.h.b16 %v3462
        %v3997 = vunpack.c.l.b16 %v3463
        %v3998 = vunpack.c.h.b16 %v3463
        %v3999 = vunpack.c.l.b16 %v3464
        %v4000 = vunpack.c.h.b16 %v3464
        %v4001 = vunpack.c.l.b16 %v3465
        %v4002 = vunpack.c.h.b16 %v3465
        %v4003 = vunpack.c.l.b16 %v3466
        %v4004 = vunpack.c.h.b16 %v3466
        %v4005 = vunpack.c.l.b16 %v3467
        %v4006 = vunpack.c.h.b16 %v3467
        %v4007 = vunpack.c.l.b16 %v3468
        %v4008 = vunpack.c.h.b16 %v3468
        %v4009 = vunpack.c.l.b16 %v3469
        %v4010 = vunpack.c.h.b16 %v3469
        %v4011 = vunpack.c.l.b16 %v3470
        %v4012 = vunpack.c.h.b16 %v3470
        %v4013 = vunpack.c.l.b16 %v3471
        %v4014 = vunpack.c.h.b16 %v3471
        %v4015 = vunpack.c.l.b16 %v3472
        %v4016 = vunpack.c.h.b16 %v3472
        %v4017 = vunpack.c.l.b16 %v3473
        %v4018 = vunpack.c.h.b16 %v3473
        %v4019 = vunpack.c.l.b16 %v3474
        %v4020 = vunpack.c.h.b16 %v3474
        %v4021 = vunpack.c.l.b16 %v3475
        %v4022 = vunpack.c.h.b16 %v3475
        %v4023 = vunpack.c.l.b16 %v3476
        %v4024 = vunpack.c.h.b16 %v3476
        %v4025 = vunpack.c.l.b16 %v3477
        %v4026 = vunpack.c.h.b16 %v3477
        %v4027 = vunpack.c.l.b16 %v3478
        %v4028 = vunpack.c.h.b16 %v3478
        %v4029 = vunpack.c.l.b16 %v3479
        %v4030 = vunpack.c.h.b16 %v3479
        %v4031 = vunpack.c.l.b16 %v3480
        %v4032 = vunpack.c.h.b16 %v3480
        %v4033 = vunpack.c.l.b16 %v3481
        %v4034 = vunpack.c.h.b16 %v3481
        %v4035 = vunpack.c.l.b16 %v3482
        %v4036 = vunpack.c.h.b16 %v3482
        %v4037 = vunpack.c.l.b16 %v3483
        %v4038 = vunpack.c.h.b16 %v3483
        %v4039 = vunpack.c.l.b16 %v3484
        %v4040 = vunpack.c.h.b16 %v3484
        %v4041 = vunpack.c.l.b16 %v3485
        %v4042 = vunpack.c.h.b16 %v3485
        %v4043 = vunpack.c.l.b16 %v3486
        %v4044 = vunpack.c.h.b16 %v3486
        %v4045 = vunpack.c.l.b16 %v3487
        %v4046 = vunpack.c.h.b16 %v3487
        %v4047 = vunpack.c.l.b16 %v3488
        %v4048 = vunpack.c.h.b16 %v3488
        %v4049 = vunpack.c.l.b16 %v3489
        %v4050 = vunpack.c.h.b16 %v3489
        %v4051 = vunpack.c.l.b16 %v3490
        %v4052 = vunpack.c.h.b16 %v3490
        %v4053 = vunpack.c.l.b16 %v3491
        %v4054 = vunpack.c.h.b16 %v3491
        %v4055 = vunpack.c.l.b16 %v3492
        %v4056 = vunpack.c.h.b16 %v3492
        %v4057 = vunpack.c.l.b16 %v3493
        %v4058 = vunpack.c.h.b16 %v3493
        %v4059 = vunpack.c.l.b16 %v3494
        %v4060 = vunpack.c.h.b16 %v3494
        %v4061 = vunpack.c.l.b16 %v3495
        %v4062 = vunpack.c.h.b16 %v3495
        %v4063 = vunpack.c.l.b16 %v3496
        %v4064 = vunpack.c.h.b16 %v3496
        %v4065 = vunpack.c.l.b16 %v3497
        %v4066 = vunpack.c.h.b16 %v3497
        %v4067 = vunpack.c.l.b16 %v3498
        %v4068 = vunpack.c.h.b16 %v3498
        %v4069 = vunpack.c.l.b16 %v3499
        %v4070 = vunpack.c.h.b16 %v3499
        %v4071 = vunpack.c.l.b16 %v3500
        %v4072 = vunpack.c.h.b16 %v3500
        %v4073 = vunpack.c.l.b16 %v3501
        %v4074 = vunpack.c.h.b16 %v3501
        %v4075 = vunpack.c.l.b16 %v3502
        %v4076 = vunpack.c.h.b16 %v3502
        %v4077 = vunpack.c.l.b16 %v3503
        %v4078 = vunpack.c.h.b16 %v3503
        %v4079 = vunpack.c.l.b16 %v3504
        %v4080 = vunpack.c.h.b16 %v3504
        %v4081 = vunpack.c.l.b16 %v3505
        %v4082 = vunpack.c.h.b16 %v3505
        %v4083 = vunpack.c.l.b16 %v3506
        %v4084 = vunpack.c.h.b16 %v3506
        %v4085 = vunpack.c.l.b16 %v3507
        %v4086 = vunpack.c.h.b16 %v3507
        %v4087 = vunpack.c.l.b16 %v3508
        %v4088 = vunpack.c.h.b16 %v3508
        %v4089 = vunpack.c.l.b16 %v3509
        %v4090 = vunpack.c.h.b16 %v3509
        %v4091 = vunpack.c.l.b16 %v3510
        %v4092 = vunpack.c.h.b16 %v3510
        %v4093 = vunpack.c.l.b16 %v3511
        %v4094 = vunpack.c.h.b16 %v3511
        %v4095 = vunpack.c.l.b16 %v3512
        %v4096 = vunpack.c.h.b16 %v3512
        %v4097 = vunpack.c.l.b16 %v3513
        %v4098 = vunpack.c.h.b16 %v3513
        %v4099 = vunpack.c.l.b16 %v3514
        %v4100 = vunpack.c.h.b16 %v3514
        %v4101 = vunpack.c.l.b16 %v3515
        %v4102 = vunpack.c.h.b16 %v3515
        %v4103 = vunpack.c.l.b16 %v3516
        %v4104 = vunpack.c.h.b16 %v3516
        %v4105 = vunpack.c.l.b16 %v3517
        %v4106 = vunpack.c.h.b16 %v3517
        %v4107 = vunpack.c.l.b16 %v3518
        %v4108 = vunpack.c.h.b16 %v3518
        %v4109 = vunpack.c.l.b16 %v3519
        %v4110 = vunpack.c.h.b16 %v3519
        %v4111 = vunpack.c.l.b16 %v3520
        %v4112 = vunpack.c.h.b16 %v3520
        %v4113 = vunpack.c.l.b16 %v3521
        %v4114 = vunpack.c.h.b16 %v3521
        %v4115 = vunpack.c.l.b16 %v3522
        %v4116 = vunpack.c.h.b16 %v3522
        %v4117 = vunpack.c.l.b16 %v3523
        %v4118 = vunpack.c.h.b16 %v3523
        %v4119 = vunpack.c.l.b16 %v3524
        %v4120 = vunpack.c.h.b16 %v3524
        %v4121 = vunpack.c.l.b16 %v3525
        %v4122 = vunpack.c.h.b16 %v3525
        %v4123 = vunpack.c.l.b16 %v3526
        %v4124 = vunpack.c.h.b16 %v3526
        %v4125 = vunpack.c.l.b16 %v3527
        %v4126 = vunpack.c.h.b16 %v3527
        %v4127 = vunpack.c.l.b16 %v3528
        %v4128 = vunpack.c.h.b16 %v3528
        %v4129 = vunpack.c.l.b16 %v3529
        %v4130 = vunpack.c.h.b16 %v3529
        %v4131 = vunpack.c.l.b16 %v3530
        %v4132 = vunpack.c.h.b16 %v3530
        %v4133 = vunpack.c.l.b16 %v3531
        %v4134 = vunpack.c.h.b16 %v3531
        %v4135 = vunpack.c.l.b16 %v3532
        %v4136 = vunpack.c.h.b16 %v3532
        %v4137 = vunpack.c.l.b16 %v3533
        %v4138 = vunpack.c.h.b16 %v3533
        %v4139 = vunpack.c.l.b16 %v3534
        %v4140 = vunpack.c.h.b16 %v3534
        %v4141 = vunpack.c.l.b16 %v3535
        %v4142 = vunpack.c.h.b16 %v3535
        %v4143 = vunpack.c.l.b16 %v3536
        %v4144 = vunpack.c.h.b16 %v3536
        %v4145 = vunpack.c.l.b16 %v3537
        %v4146 = vunpack.c.h.b16 %v3537
        %v4147 = vunpack.c.l.b16 %v3538
        %v4148 = vunpack.c.h.b16 %v3538
        %v4149 = vunpack.c.l.b16 %v3539
        %v4150 = vunpack.c.h.b16 %v3539
        %v4151 = vunpack.c.l.b16 %v3540
        %v4152 = vunpack.c.h.b16 %v3540
        %v4153 = vunpack.c.l.b16 %v3541
        %v4154 = vunpack.c.h.b16 %v3541
        %v4155 = vunpack.c.l.b16 %v3542
        %v4156 = vunpack.c.h.b16 %v3542
        %v4157 = vunpack.c.l.b16 %v3543
        %v4158 = vunpack.c.h.b16 %v3543
        %v4159 = vunpack.c.l.b16 %v3544
        %v4160 = vunpack.c.h.b16 %v3544
        %v4161 = vunpack.c.l.b16 %v3545
        %v4162 = vunpack.c.h.b16 %v3545
        %v4163 = vunpack.c.l.b16 %v3546
        %v4164 = vunpack.c.h.b16 %v3546
        %v4165 = vunpack.c.l.b16 %v3547
        %v4166 = vunpack.c.h.b16 %v3547
        %v4167 = vunpack.c.l.b16 %v3548
        %v4168 = vunpack.c.h.b16 %v3548
        %v4169 = vunpack.c.l.b16 %v3549
        %v4170 = vunpack.c.h.b16 %v3549
        %v4171 = vunpack.c.l.b16 %v3550
        %v4172 = vunpack.c.h.b16 %v3550
        %v4173 = vunpack.c.l.b16 %v3551
        %v4174 = vunpack.c.h.b16 %v3551
        %v4175 = vunpack.c.l.b16 %v3552
        %v4176 = vunpack.c.h.b16 %v3552
        %v4177 = vunpack.c.l.b16 %v3553
        %v4178 = vunpack.c.h.b16 %v3553
        %v4179 = vunpack.c.l.b16 %v3554
        %v4180 = vunpack.c.h.b16 %v3554
        %v4181 = vunpack.c.l.b16 %v3555
        %v4182 = vunpack.c.h.b16 %v3555
        %v4183 = vunpack.c.l.b16 %v3556
        %v4184 = vunpack.c.h.b16 %v3556
        %v4185 = vunpack.c.l.b16 %v3557
        %v4186 = vunpack.c.h.b16 %v3557
        %v4187 = vunpack.c.l.b16 %v3558
        %v4188 = vunpack.c.h.b16 %v3558
        %v4189 = vunpack.c.l.b16 %v3559
        %v4190 = vunpack.c.h.b16 %v3559
        %v4191 = vunpack.c.l.b16 %v3560
        %v4192 = vunpack.c.h.b16 %v3560
        %v4193 = vunpack.c.l.b16 %v3561
        %v4194 = vunpack.c.h.b16 %v3561
        %v4195 = vunpack.c.l.b16 %v3562
        %v4196 = vunpack.c.h.b16 %v3562
        %v4197 = vunpack.c.l.b16 %v3563
        %v4198 = vunpack.c.h.b16 %v3563
        %v4199 = vunpack.c.l.b16 %v3564
        %v4200 = vunpack.c.h.b16 %v3564
        %v4201 = vunpack.c.l.b16 %v3565
        %v4202 = vunpack.c.h.b16 %v3565
        %v4203 = vunpack.c.l.b16 %v3566
        %v4204 = vunpack.c.h.b16 %v3566
        %v4205 = vunpack.c.l.b16 %v3567
        %v4206 = vunpack.c.h.b16 %v3567
        %v4207 = vunpack.c.l.b16 %v3568
        %v4208 = vunpack.c.h.b16 %v3568
        %v4209 = vunpack.c.l.b16 %v3569
        %v4210 = vunpack.c.h.b16 %v3569
        %v4211 = vunpack.c.l.b16 %v3570
        %v4212 = vunpack.c.h.b16 %v3570
        %v4213 = vunpack.c.l.b16 %v3571
        %v4214 = vunpack.c.h.b16 %v3571
        %v4215 = vunpack.c.l.b16 %v3572
        %v4216 = vunpack.c.h.b16 %v3572
        %v4217 = vunpack.c.l.b16 %v3573
        %v4218 = vunpack.c.h.b16 %v3573
        %v4219 = vunpack.c.l.b16 %v3574
        %v4220 = vunpack.c.h.b16 %v3574
        %v4221 = vunpack.c.l.b16 %v3575
        %v4222 = vunpack.c.h.b16 %v3575
        %v4223 = vunpack.c.l.b16 %v3576
        %v4224 = vunpack.c.h.b16 %v3576
        %v4225 = vunpack.c.l.b16 %v3577
        %v4226 = vunpack.c.h.b16 %v3577
        %v4227 = vunpack.c.l.b16 %v3578
        %v4228 = vunpack.c.h.b16 %v3578
        %v4229 = vunpack.c.l.b16 %v3579
        %v4230 = vunpack.c.h.b16 %v3579
        %v4231 = vunpack.c.l.b16 %v3580
        %v4232 = vunpack.c.h.b16 %v3580
        %v4233 = vunpack.c.l.b16 %v3581
        %v4234 = vunpack.c.h.b16 %v3581
        %v4235 = vunpack.c.l.b16 %v3582
        %v4236 = vunpack.c.h.b16 %v3582
        %v4237 = vunpack.c.l.b16 %v3583
        %v4238 = vunpack.c.h.b16 %v3583
        %v4239 = vunpack.c.l.b16 %v3584
        %v4240 = vunpack.c.h.b16 %v3584
        %v4241 = vunpack.c.l.b16 %v3585
        %v4242 = vunpack.c.h.b16 %v3585
        %v4243 = vunpack.c.l.b16 %v3586
        %v4244 = vunpack.c.h.b16 %v3586
        %v4245 = vunpack.c.l.b16 %v3587
        %v4246 = vunpack.c.h.b16 %v3587
        %v4247 = vunpack.c.l.b16 %v3588
        %v4248 = vunpack.c.h.b16 %v3588
        %v4249 = vunpack.c.l.b16 %v3589
        %v4250 = vunpack.c.h.b16 %v3589
        %v4251 = vunpack.c.l.b16 %v3590
        %v4252 = vunpack.c.h.b16 %v3590
        %v4253 = vunpack.c.l.b16 %v3591
        %v4254 = vunpack.c.h.b16 %v3591
        %v4255 = vunpack.c.l.b16 %v3592
        %v4256 = vunpack.c.h.b16 %v3592
        %v4257 = vunpack.c.l.b16 %v3593
        %v4258 = vunpack.c.h.b16 %v3593
        %v4259 = vunpack.c.l.b16 %v3594
        %v4260 = vunpack.c.h.b16 %v3594
        %v4261 = vunpack.c.l.b16 %v3595
        %v4262 = vunpack.c.h.b16 %v3595
        %v4263 = vunpack.c.l.b16 %v3596
        %v4264 = vunpack.c.h.b16 %v3596
        %v4265 = vunpack.c.l.b16 %v3597
        %v4266 = vunpack.c.h.b16 %v3597
        %v4267 = vunpack.c.l.b16 %v3598
        %v4268 = vunpack.c.h.b16 %v3598
        %v4269 = vunpack.c.l.b16 %v3599
        %v4270 = vunpack.c.h.b16 %v3599
        %v4271 = vunpack.c.l.b16 %v3600
        %v4272 = vunpack.c.h.b16 %v3600
        %v4273 = vunpack.c.l.b16 %v3601
        %v4274 = vunpack.c.h.b16 %v3601
        %v4275 = vunpack.c.l.b16 %v3602
        %v4276 = vunpack.c.h.b16 %v3602
        %v4277 = vunpack.c.l.b16 %v3603
        %v4278 = vunpack.c.h.b16 %v3603
        %v4279 = vunpack.c.l.b16 %v3604
        %v4280 = vunpack.c.h.b16 %v3604
        %v4281 = vunpack.c.l.b16 %v3605
        %v4282 = vunpack.c.h.b16 %v3605
        %v4283 = vunpack.c.l.b16 %v3606
        %v4284 = vunpack.c.h.b16 %v3606
        %v4285 = vunpack.c.l.b16 %v3607
        %v4286 = vunpack.c.h.b16 %v3607
        %v4287 = vunpack.c.l.b16 %v3608
        %v4288 = vunpack.c.h.b16 %v3608
        %v4289 = vunpack.c.l.b16 %v3609
        %v4290 = vunpack.c.h.b16 %v3609
        %v4291 = vunpack.c.l.b16 %v3610
        %v4292 = vunpack.c.h.b16 %v3610
        %v4293 = vunpack.c.l.b16 %v3611
        %v4294 = vunpack.c.h.b16 %v3611
        %v4295 = vunpack.c.l.b16 %v3612
        %v4296 = vunpack.c.h.b16 %v3612
        %v4297 = vunpack.c.l.b16 %v3613
        %v4298 = vunpack.c.h.b16 %v3613
        %v4299 = vunpack.c.l.b16 %v3614
        %v4300 = vunpack.c.h.b16 %v3614
        %v4301 = vunpack.c.l.b16 %v3615
        %v4302 = vunpack.c.h.b16 %v3615
        %v4303 = vunpack.c.l.b16 %v3616
        %v4304 = vunpack.c.h.b16 %v3616
        %v4305 = vunpack.c.l.b16 %v3617
        %v4306 = vunpack.c.h.b16 %v3617
        %v4307 = vunpack.c.l.b16 %v3618
        %v4308 = vunpack.c.h.b16 %v3618
        %v4309 = vunpack.c.l.b16 %v3619
        %v4310 = vunpack.c.h.b16 %v3619
        %v4311 = vunpack.c.l.b16 %v3620
        %v4312 = vunpack.c.h.b16 %v3620
        %v4313 = vunpack.c.l.b16 %v3621
        %v4314 = vunpack.c.h.b16 %v3621
        %v4315 = vunpack.c.l.b16 %v3622
        %v4316 = vunpack.c.h.b16 %v3622
        %v4317 = vunpack.c.l.b16 %v3623
        %v4318 = vunpack.c.h.b16 %v3623
        %v4319 = vunpack.c.l.b16 %v3624
        %v4320 = vunpack.c.h.b16 %v3624
        %v4321 = vunpack.c.l.b16 %v3625
        %v4322 = vunpack.c.h.b16 %v3625
        %v4323 = vunpack.c.l.b16 %v3626
        %v4324 = vunpack.c.h.b16 %v3626
        %v4325 = vunpack.c.l.b16 %v3627
        %v4326 = vunpack.c.h.b16 %v3627
        %v4327 = vunpack.c.l.b16 %v3628
        %v4328 = vunpack.c.h.b16 %v3628
        %v4329 = vunpack.c.l.b16 %v3629
        %v4330 = vunpack.c.h.b16 %v3629
        %v4331 = vunpack.c.l.b16 %v3630
        %v4332 = vunpack.c.h.b16 %v3630
        %v4333 = vunpack.c.l.b16 %v3631
        %v4334 = vunpack.c.h.b16 %v3631
        %v4335 = vunpack.c.l.b16 %v3632
        %v4336 = vunpack.c.h.b16 %v3632
        %v4337 = vunpack.c.l.b16 %v3633
        %v4338 = vunpack.c.h.b16 %v3633
        %v4339 = vunpack.c.l.b16 %v3634
        %v4340 = vunpack.c.h.b16 %v3634
        %v4341 = vunpack.c.l.b16 %v3635
        %v4342 = vunpack.c.h.b16 %v3635
        %v4343 = vunpack.c.l.b16 %v3636
        %v4344 = vunpack.c.h.b16 %v3636
        %v4345 = vunpack.c.l.b16 %v3637
        %v4346 = vunpack.c.h.b16 %v3637
        %v4347 = vunpack.c.l.b16 %v3638
        %v4348 = vunpack.c.h.b16 %v3638
        %v4349 = vunpack.c.l.b16 %v3639
        %v4350 = vunpack.c.h.b16 %v3639
        %v4351 = vunpack.c.l.b16 %v3640
        %v4352 = vunpack.c.h.b16 %v3640
        %v4353 = vunpack.c.l.b16 %v3641
        %v4354 = vunpack.c.h.b16 %v3641
        %v4355 = vunpack.c.l.b16 %v3642
        %v4356 = vunpack.c.h.b16 %v3642
        %v4357 = vunpack.c.l.b16 %v3643
        %v4358 = vunpack.c.h.b16 %v3643
        %v4359 = vunpack.c.l.b16 %v3644
        %v4360 = vunpack.c.h.b16 %v3644
        %v4361 = vunpack.c.l.b16 %v3645
        %v4362 = vunpack.c.h.b16 %v3645
        %v4363 = vunpack.c.l.b16 %v3646
        %v4364 = vunpack.c.h.b16 %v3646
        %v4365 = vunpack.c.l.b16 %v3647
        %v4366 = vunpack.c.h.b16 %v3647
        %v4367 = vunpack.c.l.b16 %v3648
        %v4368 = vunpack.c.h.b16 %v3648
        %v4369 = vunpack.c.l.b16 %v3649
        %v4370 = vunpack.c.h.b16 %v3649
        %v4371 = vunpack.c.l.b16 %v3650
        %v4372 = vunpack.c.h.b16 %v3650
        %v4373 = vunpack.c.l.b16 %v3651
        %v4374 = vunpack.c.h.b16 %v3651
        %v4375 = vunpack.c.l.b16 %v3652
        %v4376 = vunpack.c.h.b16 %v3652
        %v4377 = vunpack.c.l.b16 %v3653
        %v4378 = vunpack.c.h.b16 %v3653
        %v4379 = vunpack.c.l.b16 %v3654
        %v4380 = vunpack.c.h.b16 %v3654
        %v4381 = vunpack.c.l.b16 %v3655
        %v4382 = vunpack.c.h.b16 %v3655
        %v4383 = vunpack.c.l.b16 %v3656
        %v4384 = vunpack.c.h.b16 %v3656
        %v4385 = vunpack.c.l.b16 %v3657
        %v4386 = vunpack.c.h.b16 %v3657
        %v4387 = vunpack.c.l.b16 %v3658
        %v4388 = vunpack.c.h.b16 %v3658
        %v4389 = vunpack.c.l.b16 %v3659
        %v4390 = vunpack.c.h.b16 %v3659
        %v4391 = vunpack.c.l.b16 %v3660
        %v4392 = vunpack.c.h.b16 %v3660
        %v4393 = vunpack.c.l.b16 %v3661
        %v4394 = vunpack.c.h.b16 %v3661
        %v4395 = vunpack.c.l.b16 %v3662
        %v4396 = vunpack.c.h.b16 %v3662
        %v4397 = vunpack.c.l.b16 %v3663
        %v4398 = vunpack.c.h.b16 %v3663
        %v4399 = vunpack.c.l.b16 %v3664
        %v4400 = vunpack.c.h.b16 %v3664
        %v4401 = vunpack.c.l.b16 %v3665
        %v4402 = vunpack.c.h.b16 %v3665
        %v4403 = vunpack.c.l.b16 %v3666
        %v4404 = vunpack.c.h.b16 %v3666
        %v4405 = vunpack.c.l.b16 %v3667
        %v4406 = vunpack.c.h.b16 %v3667
        %v4407 = vunpack.c.l.b16 %v3668
        %v4408 = vunpack.c.h.b16 %v3668
        %v4409 = vunpack.c.l.b16 %v3669
        %v4410 = vunpack.c.h.b16 %v3669
        %v4411 = vunpack.c.l.b16 %v3670
        %v4412 = vunpack.c.h.b16 %v3670
        %v4413 = vunpack.c.l.b16 %v3671
        %v4414 = vunpack.c.h.b16 %v3671
        %v4415 = vunpack.c.l.b16 %v3672
        %v4416 = vunpack.c.h.b16 %v3672
        %v4417 = vunpack.c.l.b16 %v3673
        %v4418 = vunpack.c.h.b16 %v3673
        %v4419 = vunpack.c.l.b16 %v3674
        %v4420 = vunpack.c.h.b16 %v3674
        %v4421 = vunpack.c.l.b16 %v3675
        %v4422 = vunpack.c.h.b16 %v3675
        %v4423 = vunpack.c.l.b16 %v3676
        %v4424 = vunpack.c.h.b16 %v3676
        %v4425 = vunpack.c.l.b16 %v3677
        %v4426 = vunpack.c.h.b16 %v3677
        %v4427 = vunpack.c.l.b16 %v3678
        %v4428 = vunpack.c.h.b16 %v3678
        %v4429 = vunpack.c.l.b16 %v3679
        %v4430 = vunpack.c.h.b16 %v3679
        %v4431 = vunpack.c.l.b16 %v3680
        %v4432 = vunpack.c.h.b16 %v3680
        %v4433 = vunpack.c.l.b16 %v3681
        %v4434 = vunpack.c.h.b16 %v3681
        %v4435 = vunpack.c.l.b16 %v3682
        %v4436 = vunpack.c.h.b16 %v3682
        %v4437 = vunpack.c.l.b16 %v3683
        %v4438 = vunpack.c.h.b16 %v3683
        %v4439 = vunpack.c.l.b16 %v3684
        %v4440 = vunpack.c.h.b16 %v3684
        %v4441 = vunpack.c.l.b16 %v3685
        %v4442 = vunpack.c.h.b16 %v3685
        %v4443 = vunpack.c.l.b16 %v3686
        %v4444 = vunpack.c.h.b16 %v3686
        %v4445 = vunpack.c.l.b16 %v3687
        %v4446 = vunpack.c.h.b16 %v3687
        %v4447 = vunpack.c.l.b16 %v3688
        %v4448 = vunpack.c.h.b16 %v3688
        %v4449 = vunpack.c.l.b16 %v3689
        %v4450 = vunpack.c.h.b16 %v3689
        %v4451 = vunpack.c.l.b16 %v3690
        %v4452 = vunpack.c.h.b16 %v3690
        %v4453 = vunpack.c.l.b16 %v3691
        %v4454 = vunpack.c.h.b16 %v3691
        %v4455 = vunpack.c.l.b16 %v3692
        %v4456 = vunpack.c.h.b16 %v3692
        %v4457 = vunpack.c.l.b16 %v3693
        %v4458 = vunpack.c.h.b16 %v3693
        %v4459 = vunpack.c.l.b16 %v3694
        %v4460 = vunpack.c.h.b16 %v3694
        %v4461 = vunpack.c.l.b16 %v3695
        %v4462 = vunpack.c.h.b16 %v3695
        %v4463 = vunpack.c.l.b16 %v3696
        %v4464 = vunpack.c.h.b16 %v3696
        %v4465 = vunpack.c.l.b16 %v3697
        %v4466 = vunpack.c.h.b16 %v3697
        %v4467 = vunpack.c.l.b16 %v3698
        %v4468 = vunpack.c.h.b16 %v3698
        %v4469 = vunpack.c.l.b16 %v3699
        %v4470 = vunpack.c.h.b16 %v3699
        %v4471 = vunpack.c.l.b16 %v3700
        %v4472 = vunpack.c.h.b16 %v3700
        %v4473 = vunpack.c.l.b16 %v3701
        %v4474 = vunpack.c.h.b16 %v3701
        %v4475 = vunpack.c.l.b16 %v3702
        %v4476 = vunpack.c.h.b16 %v3702
        %v4477 = vunpack.c.l.b16 %v3703
        %v4478 = vunpack.c.h.b16 %v3703
        %v4479 = vunpack.c.l.b16 %v3704
        %v4480 = vunpack.c.h.b16 %v3704
        %v4481 = vunpack.c.l.b16 %v3705
        %v4482 = vunpack.c.h.b16 %v3705
        %v4483 = vunpack.c.l.b16 %v3706
        %v4484 = vunpack.c.h.b16 %v3706
        %v4485 = vpack.c.b16 %v3977, %v3973
        %v4486 = vpack.c.b16 %v3978, %v3974
        %v4487 = vpack.c.b16 %v3979, %v3975
        %v4488 = vpack.c.b16 %v3980, %v3976
        %v4489 = vpack.c.b16 %v3985, %v3981
        %v4490 = vpack.c.b16 %v3986, %v3982
        %v4491 = vpack.c.b16 %v3987, %v3983
        %v4492 = vpack.c.b16 %v3988, %v3984
        %v4493 = vpack.c.b16 %v3993, %v3989
        %v4494 = vpack.c.b16 %v3994, %v3990
        %v4495 = vpack.c.b16 %v3995, %v3991
        %v4496 = vpack.c.b16 %v3996, %v3992
        %v4497 = vpack.c.b16 %v4001, %v3997
        %v4498 = vpack.c.b16 %v4002, %v3998
        %v4499 = vpack.c.b16 %v4003, %v3999
        %v4500 = vpack.c.b16 %v4004, %v4000
        %v4501 = vpack.c.b16 %v4009, %v4005
        %v4502 = vpack.c.b16 %v4010, %v4006
        %v4503 = vpack.c.b16 %v4011, %v4007
        %v4504 = vpack.c.b16 %v4012, %v4008
        %v4505 = vpack.c.b16 %v4017, %v4013
        %v4506 = vpack.c.b16 %v4018, %v4014
        %v4507 = vpack.c.b16 %v4019, %v4015
        %v4508 = vpack.c.b16 %v4020, %v4016
        %v4509 = vpack.c.b16 %v4025, %v4021
        %v4510 = vpack.c.b16 %v4026, %v4022
        %v4511 = vpack.c.b16 %v4027, %v4023
        %v4512 = vpack.c.b16 %v4028, %v4024
        %v4513 = vpack.c.b16 %v4033, %v4029
        %v4514 = vpack.c.b16 %v4034, %v4030
        %v4515 = vpack.c.b16 %v4035, %v4031
        %v4516 = vpack.c.b16 %v4036, %v4032
        %v4517 = vpack.c.b16 %v4041, %v4037
        %v4518 = vpack.c.b16 %v4042, %v4038
        %v4519 = vpack.c.b16 %v4043, %v4039
        %v4520 = vpack.c.b16 %v4044, %v4040
        %v4521 = vpack.c.b16 %v4049, %v4045
        %v4522 = vpack.c.b16 %v4050, %v4046
        %v4523 = vpack.c.b16 %v4051, %v4047
        %v4524 = vpack.c.b16 %v4052, %v4048
        %v4525 = vpack.c.b16 %v4057, %v4053
        %v4526 = vpack.c.b16 %v4058, %v4054
        %v4527 = vpack.c.b16 %v4059, %v4055
        %v4528 = vpack.c.b16 %v4060, %v4056
        %v4529 = vpack.c.b16 %v4065, %v4061
        %v4530 = vpack.c.b16 %v4066, %v4062
        %v4531 = vpack.c.b16 %v4067, %v4063
        %v4532 = vpack.c.b16 %v4068, %v4064
        %v4533 = vpack.c.b16 %v4073, %v4069
        %v4534 = vpack.c.b16 %v4074, %v4070
        %v4535 = vpack.c.b16 %v4075, %v4071
        %v4536 = vpack.c.b16 %v4076, %v4072
        %v4537 = vpack.c.b16 %v4081, %v4077
        %v4538 = vpack.c.b16 %v4082, %v4078
        %v4539 = vpack.c.b16 %v4083, %v4079
        %v4540 = vpack.c.b16 %v4084, %v4080
        %v4541 = vpack.c.b16 %v4089, %v4085
        %v4542 = vpack.c.b16 %v4090, %v4086
        %v4543 = vpack.c.b16 %v4091, %v4087
        %v4544 = vpack.c.b16 %v4092, %v4088
        %v4545 = vpack.c.b16 %v4097, %v4093
        %v4546 = vpack.c.b16 %v4098, %v4094
        %v4547 = vpack.c.b16 %v4099, %v4095
        %v4548 = vpack.c.b16 %v4100, %v4096
        %v4549 = vpack.c.b16 %v4105, %v4101
        %v4550 = vpack.c.b16 %v4106, %v4102
        %v4551 = vpack.c.b16 %v4107, %v4103
        %v4552 = vpack.c.b16 %v4108, %v4104
        %v4553 = vpack.c.b16 %v4113, %v4109
        %v4554 = vpack.c.b16 %v4114, %v4110
        %v4555 = vpack.c.b16 %v4115, %v4111
        %v4556 = vpack.c.b16 %v4116, %v4112
        %v4557 = vpack.c.b16 %v4121, %v4117
        %v4558 = vpack.c.b16 %v4122, %v4118
        %v4559 = vpack.c.b16 %v4123, %v4119
        %v4560 = vpack.c.b16 %v4124, %v4120
        %v4561 = vpack.c.b16 %v4129, %v4125
        %v4562 = vpack.c.b16 %v4130, %v4126
        %v4563 = vpack.c.b16 %v4131, %v4127
        %v4564 = vpack.c.b16 %v4132, %v4128
        %v4565 = vpack.c.b16 %v4137, %v4133
        %v4566 = vpack.c.b16 %v4138, %v4134
        %v4567 = vpack.c.b16 %v4139, %v4135
        %v4568 = vpack.c.b16 %v4140, %v4136
        %v4569 = vpack.c.b16 %v4145, %v4141
        %v4570 = vpack.c.b16 %v4146, %v4142
        %v4571 = vpack.c.b16 %v4147, %v4143
        %v4572 = vpack.c.b16 %v4148, %v4144
        %v4573 = vpack.c.b16 %v4153, %v4149
        %v4574 = vpack.c.b16 %v4154, %v4150
        %v4575 = vpack.c.b16 %v4155, %v4151
        %v4576 = vpack.c.b16 %v4156, %v4152
        %v4577 = vpack.c.b16 %v4161, %v4157
        %v4578 = vpack.c.b16 %v4162, %v4158
        %v4579 = vpack.c.b16 %v4163, %v4159
        %v4580 = vpack.c.b16 %v4164, %v4160
        %v4581 = vpack.c.b16 %v4169, %v4165
        %v4582 = vpack.c.b16 %v4170, %v4166
        %v4583 = vpack.c.b16 %v4171, %v4167
        %v4584 = vpack.c.b16 %v4172, %v4168
        %v4585 = vpack.c.b16 %v4177, %v4173
        %v4586 = vpack.c.b16 %v4178, %v4174
        %v4587 = vpack.c.b16 %v4179, %v4175
        %v4588 = vpack.c.b16 %v4180, %v4176
        %v4589 = vpack.c.b16 %v4185, %v4181
        %v4590 = vpack.c.b16 %v4186, %v4182
        %v4591 = vpack.c.b16 %v4187, %v4183
        %v4592 = vpack.c.b16 %v4188, %v4184
        %v4593 = vpack.c.b16 %v4193, %v4189
        %v4594 = vpack.c.b16 %v4194, %v4190
        %v4595 = vpack.c.b16 %v4195, %v4191
        %v4596 = vpack.c.b16 %v4196, %v4192
        %v4597 = vpack.c.b16 %v4201, %v4197
        %v4598 = vpack.c.b16 %v4202, %v4198
        %v4599 = vpack.c.b16 %v4203, %v4199
        %v4600 = vpack.c.b16 %v4204, %v4200
        %v4601 = vpack.c.b16 %v4209, %v4205
        %v4602 = vpack.c.b16 %v4210, %v4206
        %v4603 = vpack.c.b16 %v4211, %v4207
        %v4604 = vpack.c.b16 %v4212, %v4208
        %v4605 = vpack.c.b16 %v4217, %v4213
        %v4606 = vpack.c.b16 %v4218, %v4214
        %v4607 = vpack.c.b16 %v4219, %v4215
        %v4608 = vpack.c.b16 %v4220, %v4216
        %v4609 = vpack.c.b16 %v4225, %v4221
        %v4610 = vpack.c.b16 %v4226, %v4222
        %v4611 = vpack.c.b16 %v4227, %v4223
        %v4612 = vpack.c.b16 %v4228, %v4224
        %v4613 = vpack.c.b16 %v4233, %v4229
        %v4614 = vpack.c.b16 %v4234, %v4230
        %v4615 = vpack.c.b16 %v4235, %v4231
        %v4616 = vpack.c.b16 %v4236, %v4232
        %v4617 = vpack.c.b16 %v4241, %v4237
        %v4618 = vpack.c.b16 %v4242, %v4238
        %v4619 = vpack.c.b16 %v4243, %v4239
        %v4620 = vpack.c.b16 %v4244, %v4240
        %v4621 = vpack.c.b16 %v4249, %v4245
        %v4622 = vpack.c.b16 %v4250, %v4246
        %v4623 = vpack.c.b16 %v4251, %v4247
        %v4624 = vpack.c.b16 %v4252, %v4248
        %v4625 = vpack.c.b16 %v4257, %v4253
        %v4626 = vpack.c.b16 %v4258, %v4254
        %v4627 = vpack.c.b16 %v4259, %v4255
        %v4628 = vpack.c.b16 %v4260, %v4256
        %v4629 = vpack.c.b16 %v4265, %v4261
        %v4630 = vpack.c.b16 %v4266, %v4262
        %v4631 = vpack.c.b16 %v4267, %v4263
        %v4632 = vpack.c.b16 %v4268, %v4264
        %v4633 = vpack.c.b16 %v4273, %v4269
        %v4634 = vpack.c.b16 %v4274, %v4270
        %v4635 = vpack.c.b16 %v4275, %v4271
        %v4636 = vpack.c.b16 %v4276, %v4272
        %v4637 = vpack.c.b16 %v4281, %v4277
        %v4638 = vpack.c.b16 %v4282, %v4278
        %v4639 = vpack.c.b16 %v4283, %v4279
        %v4640 = vpack.c.b16 %v4284, %v4280
        %v4641 = vpack.c.b16 %v4289, %v4285
        %v4642 = vpack.c.b16 %v4290, %v4286
        %v4643 = vpack.c.b16 %v4291, %v4287
        %v4644 = vpack.c.b16 %v4292, %v4288
        %v4645 = vpack.c.b16 %v4297, %v4293
        %v4646 = vpack.c.b16 %v4298, %v4294
        %v4647 = vpack.c.b16 %v4299, %v4295
        %v4648 = vpack.c.b16 %v4300, %v4296
        %v4649 = vpack.c.b16 %v4305, %v4301
        %v4650 = vpack.c.b16 %v4306, %v4302
        %v4651 = vpack.c.b16 %v4307, %v4303
        %v4652 = vpack.c.b16 %v4308, %v4304
        %v4653 = vpack.c.b16 %v4313, %v4309
        %v4654 = vpack.c.b16 %v4314, %v4310
        %v4655 = vpack.c.b16 %v4315, %v4311
        %v4656 = vpack.c.b16 %v4316, %v4312
        %v4657 = vpack.c.b16 %v4321, %v4317
        %v4658 = vpack.c.b16 %v4322, %v4318
        %v4659 = vpack.c.b16 %v4323, %v4319
        %v4660 = vpack.c.b16 %v4324, %v4320
        %v4661 = vpack.c.b16 %v4329, %v4325
        %v4662 = vpack.c.b16 %v4330, %v4326
        %v4663 = vpack.c.b16 %v4331, %v4327
        %v4664 = vpack.c.b16 %v4332, %v4328
        %v4665 = vpack.c.b16 %v4337, %v4333
        %v4666 = vpack.c.b16 %v4338, %v4334
        %v4667 = vpack.c.b16 %v4339, %v4335
        %v4668 = vpack.c.b16 %v4340, %v4336
        %v4669 = vpack.c.b16 %v4345, %v4341
        %v4670 = vpack.c.b16 %v4346, %v4342
        %v4671 = vpack.c.b16 %v4347, %v4343
        %v4672 = vpack.c.b16 %v4348, %v4344
        %v4673 = vpack.c.b16 %v4353, %v4349
        %v4674 = vpack.c.b16 %v4354, %v4350
        %v4675 = vpack.c.b16 %v4355, %v4351
        %v4676 = vpack.c.b16 %v4356, %v4352
        %v4677 = vpack.c.b16 %v4361, %v4357
        %v4678 = vpack.c.b16 %v4362, %v4358
        %v4679 = vpack.c.b16 %v4363, %v4359
        %v4680 = vpack.c.b16 %v4364, %v4360
        %v4681 = vpack.c.b16 %v4369, %v4365
        %v4682 = vpack.c.b16 %v4370, %v4366
        %v4683 = vpack.c.b16 %v4371, %v4367
        %v4684 = vpack.c.b16 %v4372, %v4368
        %v4685 = vpack.c.b16 %v4377, %v4373
        %v4686 = vpack.c.b16 %v4378, %v4374
        %v4687 = vpack.c.b16 %v4379, %v4375
        %v4688 = vpack.c.b16 %v4380, %v4376
        %v4689 = vpack.c.b16 %v4385, %v4381
        %v4690 = vpack.c.b16 %v4386, %v4382
        %v4691 = vpack.c.b16 %v4387, %v4383
        %v4692 = vpack.c.b16 %v4388, %v4384
        %v4693 = vpack.c.b16 %v4393, %v4389
        %v4694 = vpack.c.b16 %v4394, %v4390
        %v4695 = vpack.c.b16 %v4395, %v4391
        %v4696 = vpack.c.b16 %v4396, %v4392
        %v4697 = vpack.c.b16 %v4401, %v4397
        %v4698 = vpack.c.b16 %v4402, %v4398
        %v4699 = vpack.c.b16 %v4403, %v4399
        %v4700 = vpack.c.b16 %v4404, %v4400
        %v4701 = vpack.c.b16 %v4409, %v4405
        %v4702 = vpack.c.b16 %v4410, %v4406
        %v4703 = vpack.c.b16 %v4411, %v4407
        %v4704 = vpack.c.b16 %v4412, %v4408
        %v4705 = vpack.c.b16 %v4417, %v4413
        %v4706 = vpack.c.b16 %v4418, %v4414
        %v4707 = vpack.c.b16 %v4419, %v4415
        %v4708 = vpack.c.b16 %v4420, %v4416
        %v4709 = vpack.c.b16 %v4425, %v4421
        %v4710 = vpack.c.b16 %v4426, %v4422
        %v4711 = vpack.c.b16 %v4427, %v4423
        %v4712 = vpack.c.b16 %v4428, %v4424
        %v4713 = vpack.c.b16 %v4433, %v4429
        %v4714 = vpack.c.b16 %v4434, %v4430
        %v4715 = vpack.c.b16 %v4435, %v4431
        %v4716 = vpack.c.b16 %v4436, %v4432
        %v4717 = vpack.c.b16 %v4441, %v4437
        %v4718 = vpack.c.b16 %v4442, %v4438
        %v4719 = vpack.c.b16 %v4443, %v4439
        %v4720 = vpack.c.b16 %v4444, %v4440
        %v4721 = vpack.c.b16 %v4449, %v4445
        %v4722 = vpack.c.b16 %v4450, %v4446
        %v4723 = vpack.c.b16 %v4451, %v4447
        %v4724 = vpack.c.b16 %v4452, %v4448
        %v4725 = vpack.c.b16 %v4457, %v4453
        %v4726 = vpack.c.b16 %v4458, %v4454
        %v4727 = vpack.c.b16 %v4459, %v4455
        %v4728 = vpack.c.b16 %v4460, %v4456
        %v4729 = vpack.c.b16 %v4465, %v4461
        %v4730 = vpack.c.b16 %v4466, %v4462
        %v4731 = vpack.c.b16 %v4467, %v4463
        %v4732 = vpack.c.b16 %v4468, %v4464
        %v4733 = vpack.c.b16 %v4473, %v4469
        %v4734 = vpack.c.b16 %v4474, %v4470
        %v4735 = vpack.c.b16 %v4475, %v4471
        %v4736 = vpack.c.b16 %v4476, %v4472
        %v4737 = vpack.c.b16 %v4481, %v4477
        %v4738 = vpack.c.b16 %v4482, %v4478
        %v4739 = vpack.c.b16 %v4483, %v4479
        %v4740 = vpack.c.b16 %v4484, %v4480
        %4997 = vmatpush.bf16.msra.mxu0 %v4513
        %4998 = vmatpush.bf16.msra.mxu0 %v4509
        %4999 = vmatpush.bf16.msra.mxu0 %v4505
        %5000 = vmatpush.bf16.msra.mxu0 %v4501
        %5001 = vmatpush.bf16.msra.mxu0 %v4497
        %5002 = vmatpush.bf16.msra.mxu0 %v4493
        %5003 = vmatpush.bf16.msra.mxu0 %v4489
        %5004 = vmatpush.bf16.msra.mxu0 %v4485
        %5005 = vmatmul.bf16.gmra.mxu0 %v3443
        %v5006 = vpop.f32.mrf.mxu0
        %v5007 = vadd.f32 %v3709, %v5006
        %v5008 = vpop.f32.mrf.mxu0
        %5009 = vdwg.mxu0
        %5010 = vmatpush.bf16.msra.mxu0 %v4545
        %5011 = vmatpush.bf16.msra.mxu0 %v4541
        %5012 = vmatpush.bf16.msra.mxu0 %v4537
        %5013 = vmatpush.bf16.msra.mxu0 %v4533
        %5014 = vmatpush.bf16.msra.mxu0 %v4529
        %5015 = vmatpush.bf16.msra.mxu0 %v4525
        %5016 = vmatpush.bf16.msra.mxu0 %v4521
        %5017 = vmatpush.bf16.msra.mxu0 %v4517
        %5018 = vmatmul.bf16.gmra.mxu0 %v3444
        %v5019 = vpop.f32.mrf.mxu0
        %v5020 = vadd.f32 %v5007, %v5019
        %v5021 = vpop.f32.mrf.mxu0
        %5022 = vdwg.mxu0
        %5023 = vmatpush.bf16.msra.mxu0 %v4577
        %5024 = vmatpush.bf16.msra.mxu0 %v4573
        %5025 = vmatpush.bf16.msra.mxu0 %v4569
        %5026 = vmatpush.bf16.msra.mxu0 %v4565
        %5027 = vmatpush.bf16.msra.mxu0 %v4561
        %5028 = vmatpush.bf16.msra.mxu0 %v4557
        %5029 = vmatpush.bf16.msra.mxu0 %v4553
        %5030 = vmatpush.bf16.msra.mxu0 %v4549
        %5031 = vmatmul.bf16.gmra.mxu0 %v3445
        %v5032 = vpop.f32.mrf.mxu0
        %v5033 = vadd.f32 %v5020, %v5032
        %v5034 = vpop.f32.mrf.mxu0
        %5035 = vdwg.mxu0
        %5036 = vmatpush.bf16.msra.mxu0 %v4609
        %5037 = vmatpush.bf16.msra.mxu0 %v4605
        %5038 = vmatpush.bf16.msra.mxu0 %v4601
        %5039 = vmatpush.bf16.msra.mxu0 %v4597
        %5040 = vmatpush.bf16.msra.mxu0 %v4593
        %5041 = vmatpush.bf16.msra.mxu0 %v4589
        %5042 = vmatpush.bf16.msra.mxu0 %v4585
        %5043 = vmatpush.bf16.msra.mxu0 %v4581
        %5044 = vmatmul.bf16.gmra.mxu0 %v3446
        %v5045 = vpop.f32.mrf.mxu0
        %v5046 = vadd.f32 %v5033, %v5045
        %v5047 = vpop.f32.mrf.mxu0
        %5048 = vdwg.mxu0
        %5049 = vmatpush.bf16.msra.mxu0 %v4641
        %5050 = vmatpush.bf16.msra.mxu0 %v4637
        %5051 = vmatpush.bf16.msra.mxu0 %v4633
        %5052 = vmatpush.bf16.msra.mxu0 %v4629
        %5053 = vmatpush.bf16.msra.mxu0 %v4625
        %5054 = vmatpush.bf16.msra.mxu0 %v4621
        %5055 = vmatpush.bf16.msra.mxu0 %v4617
        %5056 = vmatpush.bf16.msra.mxu0 %v4613
        %5057 = vmatmul.bf16.gmra.mxu0 %v3447
        %v5058 = vpop.f32.mrf.mxu0
        %v5059 = vadd.f32 %v5046, %v5058
        %v5060 = vpop.f32.mrf.mxu0
        %5061 = vdwg.mxu0
        %5062 = vmatpush.bf16.msra.mxu0 %v4673
        %5063 = vmatpush.bf16.msra.mxu0 %v4669
        %5064 = vmatpush.bf16.msra.mxu0 %v4665
        %5065 = vmatpush.bf16.msra.mxu0 %v4661
        %5066 = vmatpush.bf16.msra.mxu0 %v4657
        %5067 = vmatpush.bf16.msra.mxu0 %v4653
        %5068 = vmatpush.bf16.msra.mxu0 %v4649
        %5069 = vmatpush.bf16.msra.mxu0 %v4645
        %5070 = vmatmul.bf16.gmra.mxu0 %v3448
        %v5071 = vpop.f32.mrf.mxu0
        %v5072 = vadd.f32 %v5059, %v5071
        %v5073 = vpop.f32.mrf.mxu0
        %5074 = vdwg.mxu0
        %5075 = vmatpush.bf16.msra.mxu0 %v4705
        %5076 = vmatpush.bf16.msra.mxu0 %v4701
        %5077 = vmatpush.bf16.msra.mxu0 %v4697
        %5078 = vmatpush.bf16.msra.mxu0 %v4693
        %5079 = vmatpush.bf16.msra.mxu0 %v4689
        %5080 = vmatpush.bf16.msra.mxu0 %v4685
        %5081 = vmatpush.bf16.msra.mxu0 %v4681
        %5082 = vmatpush.bf16.msra.mxu0 %v4677
        %5083 = vmatmul.bf16.gmra.mxu0 %v3449
        %v5084 = vpop.f32.mrf.mxu0
        %v5085 = vadd.f32 %v5072, %v5084
        %v5086 = vpop.f32.mrf.mxu0
        %5087 = vdwg.mxu0
        %5088 = vmatpush.bf16.msra.mxu0 %v4737
        %5089 = vmatpush.bf16.msra.mxu0 %v4733
        %5090 = vmatpush.bf16.msra.mxu0 %v4729
        %5091 = vmatpush.bf16.msra.mxu0 %v4725
        %5092 = vmatpush.bf16.msra.mxu0 %v4721
        %5093 = vmatpush.bf16.msra.mxu0 %v4717
        %5094 = vmatpush.bf16.msra.mxu0 %v4713
        %5095 = vmatpush.bf16.msra.mxu0 %v4709
        %5096 = vmatmul.bf16.gmra.mxu0 %v3450
        %v5097 = vpop.f32.mrf.mxu0
        %v5098 = vadd.f32 %v5085, %v5097
        %v5099 = vpop.f32.mrf.mxu0
        %5100 = vdwg.mxu0
        %5101 = vmatpush.bf16.msra.mxu0 %v4514
        %5102 = vmatpush.bf16.msra.mxu0 %v4510
        %5103 = vmatpush.bf16.msra.mxu0 %v4506
        %5104 = vmatpush.bf16.msra.mxu0 %v4502
        %5105 = vmatpush.bf16.msra.mxu0 %v4498
        %5106 = vmatpush.bf16.msra.mxu0 %v4494
        %5107 = vmatpush.bf16.msra.mxu0 %v4490
        %5108 = vmatpush.bf16.msra.mxu0 %v4486
        %5109 = vmatmul.bf16.gmra.mxu0 %v3443
        %v5110 = vpop.f32.mrf.mxu0
        %v5111 = vadd.f32 %v3710, %v5110
        %v5112 = vpop.f32.mrf.mxu0
        %5113 = vdwg.mxu0
        %5114 = vmatpush.bf16.msra.mxu0 %v4546
        %5115 = vmatpush.bf16.msra.mxu0 %v4542
        %5116 = vmatpush.bf16.msra.mxu0 %v4538
        %5117 = vmatpush.bf16.msra.mxu0 %v4534
        %5118 = vmatpush.bf16.msra.mxu0 %v4530
        %5119 = vmatpush.bf16.msra.mxu0 %v4526
        %5120 = vmatpush.bf16.msra.mxu0 %v4522
        %5121 = vmatpush.bf16.msra.mxu0 %v4518
        %5122 = vmatmul.bf16.gmra.mxu0 %v3444
        %v5123 = vpop.f32.mrf.mxu0
        %v5124 = vadd.f32 %v5111, %v5123
        %v5125 = vpop.f32.mrf.mxu0
        %5126 = vdwg.mxu0
        %5127 = vmatpush.bf16.msra.mxu0 %v4578
        %5128 = vmatpush.bf16.msra.mxu0 %v4574
        %5129 = vmatpush.bf16.msra.mxu0 %v4570
        %5130 = vmatpush.bf16.msra.mxu0 %v4566
        %5131 = vmatpush.bf16.msra.mxu0 %v4562
        %5132 = vmatpush.bf16.msra.mxu0 %v4558
        %5133 = vmatpush.bf16.msra.mxu0 %v4554
        %5134 = vmatpush.bf16.msra.mxu0 %v4550
        %5135 = vmatmul.bf16.gmra.mxu0 %v3445
        %v5136 = vpop.f32.mrf.mxu0
        %v5137 = vadd.f32 %v5124, %v5136
        %v5138 = vpop.f32.mrf.mxu0
        %5139 = vdwg.mxu0
        %5140 = vmatpush.bf16.msra.mxu0 %v4610
        %5141 = vmatpush.bf16.msra.mxu0 %v4606
        %5142 = vmatpush.bf16.msra.mxu0 %v4602
        %5143 = vmatpush.bf16.msra.mxu0 %v4598
        %5144 = vmatpush.bf16.msra.mxu0 %v4594
        %5145 = vmatpush.bf16.msra.mxu0 %v4590
        %5146 = vmatpush.bf16.msra.mxu0 %v4586
        %5147 = vmatpush.bf16.msra.mxu0 %v4582
        %5148 = vmatmul.bf16.gmra.mxu0 %v3446
        %v5149 = vpop.f32.mrf.mxu0
        %v5150 = vadd.f32 %v5137, %v5149
        %v5151 = vpop.f32.mrf.mxu0
        %5152 = vdwg.mxu0
        %5153 = vmatpush.bf16.msra.mxu0 %v4642
        %5154 = vmatpush.bf16.msra.mxu0 %v4638
        %5155 = vmatpush.bf16.msra.mxu0 %v4634
        %5156 = vmatpush.bf16.msra.mxu0 %v4630
        %5157 = vmatpush.bf16.msra.mxu0 %v4626
        %5158 = vmatpush.bf16.msra.mxu0 %v4622
        %5159 = vmatpush.bf16.msra.mxu0 %v4618
        %5160 = vmatpush.bf16.msra.mxu0 %v4614
        %5161 = vmatmul.bf16.gmra.mxu0 %v3447
        %v5162 = vpop.f32.mrf.mxu0
        %v5163 = vadd.f32 %v5150, %v5162
        %v5164 = vpop.f32.mrf.mxu0
        %5165 = vdwg.mxu0
        %5166 = vmatpush.bf16.msra.mxu0 %v4674
        %5167 = vmatpush.bf16.msra.mxu0 %v4670
        %5168 = vmatpush.bf16.msra.mxu0 %v4666
        %5169 = vmatpush.bf16.msra.mxu0 %v4662
        %5170 = vmatpush.bf16.msra.mxu0 %v4658
        %5171 = vmatpush.bf16.msra.mxu0 %v4654
        %5172 = vmatpush.bf16.msra.mxu0 %v4650
        %5173 = vmatpush.bf16.msra.mxu0 %v4646
        %5174 = vmatmul.bf16.gmra.mxu0 %v3448
        %v5175 = vpop.f32.mrf.mxu0
        %v5176 = vadd.f32 %v5163, %v5175
        %v5177 = vpop.f32.mrf.mxu0
        %5178 = vdwg.mxu0
        %5179 = vmatpush.bf16.msra.mxu0 %v4706
        %5180 = vmatpush.bf16.msra.mxu0 %v4702
        %5181 = vmatpush.bf16.msra.mxu0 %v4698
        %5182 = vmatpush.bf16.msra.mxu0 %v4694
        %5183 = vmatpush.bf16.msra.mxu0 %v4690
        %5184 = vmatpush.bf16.msra.mxu0 %v4686
        %5185 = vmatpush.bf16.msra.mxu0 %v4682
        %5186 = vmatpush.bf16.msra.mxu0 %v4678
        %5187 = vmatmul.bf16.gmra.mxu0 %v3449
        %v5188 = vpop.f32.mrf.mxu0
        %v5189 = vadd.f32 %v5176, %v5188
        %v5190 = vpop.f32.mrf.mxu0
        %5191 = vdwg.mxu0
        %5192 = vmatpush.bf16.msra.mxu0 %v4738
        %5193 = vmatpush.bf16.msra.mxu0 %v4734
        %5194 = vmatpush.bf16.msra.mxu0 %v4730
        %5195 = vmatpush.bf16.msra.mxu0 %v4726
        %5196 = vmatpush.bf16.msra.mxu0 %v4722
        %5197 = vmatpush.bf16.msra.mxu0 %v4718
        %5198 = vmatpush.bf16.msra.mxu0 %v4714
        %5199 = vmatpush.bf16.msra.mxu0 %v4710
        %5200 = vmatmul.bf16.gmra.mxu0 %v3450
        %v5201 = vpop.f32.mrf.mxu0
        %v5202 = vadd.f32 %v5189, %v5201
        %v5203 = vpop.f32.mrf.mxu0
        %5204 = vdwg.mxu0
        %5205 = vmatpush.bf16.msra.mxu0 %v4515
        %5206 = vmatpush.bf16.msra.mxu0 %v4511
        %5207 = vmatpush.bf16.msra.mxu0 %v4507
        %5208 = vmatpush.bf16.msra.mxu0 %v4503
        %5209 = vmatpush.bf16.msra.mxu0 %v4499
        %5210 = vmatpush.bf16.msra.mxu0 %v4495
        %5211 = vmatpush.bf16.msra.mxu0 %v4491
        %5212 = vmatpush.bf16.msra.mxu0 %v4487
        %5213 = vmatmul.bf16.gmra.mxu0 %v3443
        %v5214 = vpop.f32.mrf.mxu0
        %v5215 = vadd.f32 %v3711, %v5214
        %v5216 = vpop.f32.mrf.mxu0
        %5217 = vdwg.mxu0
        %5218 = vmatpush.bf16.msra.mxu0 %v4547
        %5219 = vmatpush.bf16.msra.mxu0 %v4543
        %5220 = vmatpush.bf16.msra.mxu0 %v4539
        %5221 = vmatpush.bf16.msra.mxu0 %v4535
        %5222 = vmatpush.bf16.msra.mxu0 %v4531
        %5223 = vmatpush.bf16.msra.mxu0 %v4527
        %5224 = vmatpush.bf16.msra.mxu0 %v4523
        %5225 = vmatpush.bf16.msra.mxu0 %v4519
        %5226 = vmatmul.bf16.gmra.mxu0 %v3444
        %v5227 = vpop.f32.mrf.mxu0
        %v5228 = vadd.f32 %v5215, %v5227
        %v5229 = vpop.f32.mrf.mxu0
        %5230 = vdwg.mxu0
        %5231 = vmatpush.bf16.msra.mxu0 %v4579
        %5232 = vmatpush.bf16.msra.mxu0 %v4575
        %5233 = vmatpush.bf16.msra.mxu0 %v4571
        %5234 = vmatpush.bf16.msra.mxu0 %v4567
        %5235 = vmatpush.bf16.msra.mxu0 %v4563
        %5236 = vmatpush.bf16.msra.mxu0 %v4559
        %5237 = vmatpush.bf16.msra.mxu0 %v4555
        %5238 = vmatpush.bf16.msra.mxu0 %v4551
        %5239 = vmatmul.bf16.gmra.mxu0 %v3445
        %v5240 = vpop.f32.mrf.mxu0
        %v5241 = vadd.f32 %v5228, %v5240
        %v5242 = vpop.f32.mrf.mxu0
        %5243 = vdwg.mxu0
        %5244 = vmatpush.bf16.msra.mxu0 %v4611
        %5245 = vmatpush.bf16.msra.mxu0 %v4607
        %5246 = vmatpush.bf16.msra.mxu0 %v4603
        %5247 = vmatpush.bf16.msra.mxu0 %v4599
        %5248 = vmatpush.bf16.msra.mxu0 %v4595
        %5249 = vmatpush.bf16.msra.mxu0 %v4591
        %5250 = vmatpush.bf16.msra.mxu0 %v4587
        %5251 = vmatpush.bf16.msra.mxu0 %v4583
        %5252 = vmatmul.bf16.gmra.mxu0 %v3446
        %v5253 = vpop.f32.mrf.mxu0
        %v5254 = vadd.f32 %v5241, %v5253
        %v5255 = vpop.f32.mrf.mxu0
        %5256 = vdwg.mxu0
        %5257 = vmatpush.bf16.msra.mxu0 %v4643
        %5258 = vmatpush.bf16.msra.mxu0 %v4639
        %5259 = vmatpush.bf16.msra.mxu0 %v4635
        %5260 = vmatpush.bf16.msra.mxu0 %v4631
        %5261 = vmatpush.bf16.msra.mxu0 %v4627
        %5262 = vmatpush.bf16.msra.mxu0 %v4623
        %5263 = vmatpush.bf16.msra.mxu0 %v4619
        %5264 = vmatpush.bf16.msra.mxu0 %v4615
        %5265 = vmatmul.bf16.gmra.mxu0 %v3447
        %v5266 = vpop.f32.mrf.mxu0
        %v5267 = vadd.f32 %v5254, %v5266
        %v5268 = vpop.f32.mrf.mxu0
        %5269 = vdwg.mxu0
        %5270 = vmatpush.bf16.msra.mxu0 %v4675
        %5271 = vmatpush.bf16.msra.mxu0 %v4671
        %5272 = vmatpush.bf16.msra.mxu0 %v4667
        %5273 = vmatpush.bf16.msra.mxu0 %v4663
        %5274 = vmatpush.bf16.msra.mxu0 %v4659
        %5275 = vmatpush.bf16.msra.mxu0 %v4655
        %5276 = vmatpush.bf16.msra.mxu0 %v4651
        %5277 = vmatpush.bf16.msra.mxu0 %v4647
        %5278 = vmatmul.bf16.gmra.mxu0 %v3448
        %v5279 = vpop.f32.mrf.mxu0
        %v5280 = vadd.f32 %v5267, %v5279
        %v5281 = vpop.f32.mrf.mxu0
        %5282 = vdwg.mxu0
        %5283 = vmatpush.bf16.msra.mxu0 %v4707
        %5284 = vmatpush.bf16.msra.mxu0 %v4703
        %5285 = vmatpush.bf16.msra.mxu0 %v4699
        %5286 = vmatpush.bf16.msra.mxu0 %v4695
        %5287 = vmatpush.bf16.msra.mxu0 %v4691
        %5288 = vmatpush.bf16.msra.mxu0 %v4687
        %5289 = vmatpush.bf16.msra.mxu0 %v4683
        %5290 = vmatpush.bf16.msra.mxu0 %v4679
        %5291 = vmatmul.bf16.gmra.mxu0 %v3449
        %v5292 = vpop.f32.mrf.mxu0
        %v5293 = vadd.f32 %v5280, %v5292
        %v5294 = vpop.f32.mrf.mxu0
        %5295 = vdwg.mxu0
        %5296 = vmatpush.bf16.msra.mxu0 %v4739
        %5297 = vmatpush.bf16.msra.mxu0 %v4735
        %5298 = vmatpush.bf16.msra.mxu0 %v4731
        %5299 = vmatpush.bf16.msra.mxu0 %v4727
        %5300 = vmatpush.bf16.msra.mxu0 %v4723
        %5301 = vmatpush.bf16.msra.mxu0 %v4719
        %5302 = vmatpush.bf16.msra.mxu0 %v4715
        %5303 = vmatpush.bf16.msra.mxu0 %v4711
        %5304 = vmatmul.bf16.gmra.mxu0 %v3450
        %v5305 = vpop.f32.mrf.mxu0
        %v5306 = vadd.f32 %v5293, %v5305
        %v5307 = vpop.f32.mrf.mxu0
        %5308 = vdwg.mxu0
        %5309 = vmatpush.bf16.msra.mxu0 %v4516
        %5310 = vmatpush.bf16.msra.mxu0 %v4512
        %5311 = vmatpush.bf16.msra.mxu0 %v4508
        %5312 = vmatpush.bf16.msra.mxu0 %v4504
        %5313 = vmatpush.bf16.msra.mxu0 %v4500
        %5314 = vmatpush.bf16.msra.mxu0 %v4496
        %5315 = vmatpush.bf16.msra.mxu0 %v4492
        %5316 = vmatpush.bf16.msra.mxu0 %v4488
        %5317 = vmatmul.bf16.gmra.mxu0 %v3443
        %v5318 = vpop.f32.mrf.mxu0
        %v5319 = vadd.f32 %v3712, %v5318
        %v5320 = vpop.f32.mrf.mxu0
        %5321 = vdwg.mxu0
        %5322 = vmatpush.bf16.msra.mxu0 %v4548
        %5323 = vmatpush.bf16.msra.mxu0 %v4544
        %5324 = vmatpush.bf16.msra.mxu0 %v4540
        %5325 = vmatpush.bf16.msra.mxu0 %v4536
        %5326 = vmatpush.bf16.msra.mxu0 %v4532
        %5327 = vmatpush.bf16.msra.mxu0 %v4528
        %5328 = vmatpush.bf16.msra.mxu0 %v4524
        %5329 = vmatpush.bf16.msra.mxu0 %v4520
        %5330 = vmatmul.bf16.gmra.mxu0 %v3444
        %v5331 = vpop.f32.mrf.mxu0
        %v5332 = vadd.f32 %v5319, %v5331
        %v5333 = vpop.f32.mrf.mxu0
        %5334 = vdwg.mxu0
        %5335 = vmatpush.bf16.msra.mxu0 %v4580
        %5336 = vmatpush.bf16.msra.mxu0 %v4576
        %5337 = vmatpush.bf16.msra.mxu0 %v4572
        %5338 = vmatpush.bf16.msra.mxu0 %v4568
        %5339 = vmatpush.bf16.msra.mxu0 %v4564
        %5340 = vmatpush.bf16.msra.mxu0 %v4560
        %5341 = vmatpush.bf16.msra.mxu0 %v4556
        %5342 = vmatpush.bf16.msra.mxu0 %v4552
        %5343 = vmatmul.bf16.gmra.mxu0 %v3445
        %v5344 = vpop.f32.mrf.mxu0
        %v5345 = vadd.f32 %v5332, %v5344
        %v5346 = vpop.f32.mrf.mxu0
        %5347 = vdwg.mxu0
        %5348 = vmatpush.bf16.msra.mxu0 %v4612
        %5349 = vmatpush.bf16.msra.mxu0 %v4608
        %5350 = vmatpush.bf16.msra.mxu0 %v4604
        %5351 = vmatpush.bf16.msra.mxu0 %v4600
        %5352 = vmatpush.bf16.msra.mxu0 %v4596
        %5353 = vmatpush.bf16.msra.mxu0 %v4592
        %5354 = vmatpush.bf16.msra.mxu0 %v4588
        %5355 = vmatpush.bf16.msra.mxu0 %v4584
        %5356 = vmatmul.bf16.gmra.mxu0 %v3446
        %v5357 = vpop.f32.mrf.mxu0
        %v5358 = vadd.f32 %v5345, %v5357
        %v5359 = vpop.f32.mrf.mxu0
        %5360 = vdwg.mxu0
        %5361 = vmatpush.bf16.msra.mxu0 %v4644
        %5362 = vmatpush.bf16.msra.mxu0 %v4640
        %5363 = vmatpush.bf16.msra.mxu0 %v4636
        %5364 = vmatpush.bf16.msra.mxu0 %v4632
        %5365 = vmatpush.bf16.msra.mxu0 %v4628
        %5366 = vmatpush.bf16.msra.mxu0 %v4624
        %5367 = vmatpush.bf16.msra.mxu0 %v4620
        %5368 = vmatpush.bf16.msra.mxu0 %v4616
        %5369 = vmatmul.bf16.gmra.mxu0 %v3447
        %v5370 = vpop.f32.mrf.mxu0
        %v5371 = vadd.f32 %v5358, %v5370
        %v5372 = vpop.f32.mrf.mxu0
        %5373 = vdwg.mxu0
        %5374 = vmatpush.bf16.msra.mxu0 %v4676
        %5375 = vmatpush.bf16.msra.mxu0 %v4672
        %5376 = vmatpush.bf16.msra.mxu0 %v4668
        %5377 = vmatpush.bf16.msra.mxu0 %v4664
        %5378 = vmatpush.bf16.msra.mxu0 %v4660
        %5379 = vmatpush.bf16.msra.mxu0 %v4656
        %5380 = vmatpush.bf16.msra.mxu0 %v4652
        %5381 = vmatpush.bf16.msra.mxu0 %v4648
        %5382 = vmatmul.bf16.gmra.mxu0 %v3448
        %v5383 = vpop.f32.mrf.mxu0
        %v5384 = vadd.f32 %v5371, %v5383
        %v5385 = vpop.f32.mrf.mxu0
        %5386 = vdwg.mxu0
        %5387 = vmatpush.bf16.msra.mxu0 %v4708
        %5388 = vmatpush.bf16.msra.mxu0 %v4704
        %5389 = vmatpush.bf16.msra.mxu0 %v4700
        %5390 = vmatpush.bf16.msra.mxu0 %v4696
        %5391 = vmatpush.bf16.msra.mxu0 %v4692
        %5392 = vmatpush.bf16.msra.mxu0 %v4688
        %5393 = vmatpush.bf16.msra.mxu0 %v4684
        %5394 = vmatpush.bf16.msra.mxu0 %v4680
        %5395 = vmatmul.bf16.gmra.mxu0 %v3449
        %v5396 = vpop.f32.mrf.mxu0
        %v5397 = vadd.f32 %v5384, %v5396
        %v5398 = vpop.f32.mrf.mxu0
        %5399 = vdwg.mxu0
        %5400 = vmatpush.bf16.msra.mxu0 %v4740
        %5401 = vmatpush.bf16.msra.mxu0 %v4736
        %5402 = vmatpush.bf16.msra.mxu0 %v4732
        %5403 = vmatpush.bf16.msra.mxu0 %v4728
        %5404 = vmatpush.bf16.msra.mxu0 %v4724
        %5405 = vmatpush.bf16.msra.mxu0 %v4720
        %5406 = vmatpush.bf16.msra.mxu0 %v4716
        %5407 = vmatpush.bf16.msra.mxu0 %v4712
        %5408 = vmatmul.bf16.gmra.mxu0 %v3450
        %v5409 = vpop.f32.mrf.mxu0
        %v5410 = vadd.f32 %v5397, %v5409
        %v5411 = vpop.f32.mrf.mxu0
        %5412 = vdwg.mxu0
        %v5413 = vmax.f32 %v5098, 0.0
        %v5414 = vmax.f32 %v5202, 0.0
        %v5415 = vmax.f32 %v5306, 0.0
        %v5416 = vmax.f32 %v5410, 0.0
        %v5417 = vpack.c.bf16 %v5413, %v5413
        %v5418 = vpack.c.bf16 %v5414, %v5414
        %v5419 = vpack.c.bf16 %v5415, %v5415
        %v5420 = vpack.c.bf16 %v5416, %v5416
        %v5421 = vld [vmem:[#allocation17] sm:$0xff]
        %v5422 = vld [vmem:[#allocation17 + $0x8] sm:$0xff]
        %v5423 = vld [vmem:[#allocation17 + $0x10] sm:$0xff]
        %v5424 = vld [vmem:[#allocation17 + $0x18] sm:$0xff]
        %v5425 = vld [vmem:[#allocation17 + $0x20] sm:$0xff]
        %v5426 = vld [vmem:[#allocation17 + $0x28] sm:$0xff]
        %v5427 = vld [vmem:[#allocation17 + $0x30] sm:$0xff]
        %v5428 = vld [vmem:[#allocation17 + $0x38] sm:$0xff]
        %v5429 = vld [vmem:[#allocation17 + $0x40] sm:$0xff]
        %v5430 = vld [vmem:[#allocation17 + $0x48] sm:$0xff]
        %v5431 = vld [vmem:[#allocation17 + $0x50] sm:$0xff]
        %v5432 = vld [vmem:[#allocation17 + $0x58] sm:$0xff]
        %v5433 = vld [vmem:[#allocation17 + $0x60] sm:$0xff]
        %v5434 = vld [vmem:[#allocation17 + $0x68] sm:$0xff]
        %v5435 = vld [vmem:[#allocation17 + $0x70] sm:$0xff]
        %v5436 = vld [vmem:[#allocation17 + $0x78] sm:$0xff]
        %v5437 = vld [vmem:[#allocation17 + $0x80] sm:$0xff]
        %v5438 = vld [vmem:[#allocation17 + $0x88] sm:$0xff]
        %v5439 = vld [vmem:[#allocation17 + $0x90] sm:$0xff]
        %v5440 = vld [vmem:[#allocation17 + $0x98] sm:$0xff]
        %v5441 = vld [vmem:[#allocation17 + $0xa0] sm:$0xff]
        %v5442 = vld [vmem:[#allocation17 + $0xa8] sm:$0xff]
        %v5443 = vld [vmem:[#allocation17 + $0xb0] sm:$0xff]
        %v5444 = vld [vmem:[#allocation17 + $0xb8] sm:$0xff]
        %v5445 = vld [vmem:[#allocation17 + $0xc0] sm:$0xff]
        %v5446 = vld [vmem:[#allocation17 + $0xc8] sm:$0xff]
        %v5447 = vld [vmem:[#allocation17 + $0xd0] sm:$0xff]
        %v5448 = vld [vmem:[#allocation17 + $0xd8] sm:$0xff]
        %v5449 = vld [vmem:[#allocation17 + $0xe0] sm:$0xff]
        %v5450 = vld [vmem:[#allocation17 + $0xe8] sm:$0xff]
        %v5451 = vld [vmem:[#allocation17 + $0xf0] sm:$0xff]
        %v5452 = vld [vmem:[#allocation17 + $0xf8] sm:$0xff]
        %v5453 = vld [vmem:[#allocation17 + $0x100] sm:$0xff]
        %v5454 = vld [vmem:[#allocation17 + $0x108] sm:$0xff]
        %v5455 = vld [vmem:[#allocation17 + $0x110] sm:$0xff]
        %v5456 = vld [vmem:[#allocation17 + $0x118] sm:$0xff]
        %v5457 = vld [vmem:[#allocation17 + $0x120] sm:$0xff]
        %v5458 = vld [vmem:[#allocation17 + $0x128] sm:$0xff]
        %v5459 = vld [vmem:[#allocation17 + $0x130] sm:$0xff]
        %v5460 = vld [vmem:[#allocation17 + $0x138] sm:$0xff]
        %v5461 = vld [vmem:[#allocation17 + $0x140] sm:$0xff]
        %v5462 = vld [vmem:[#allocation17 + $0x148] sm:$0xff]
        %v5463 = vld [vmem:[#allocation17 + $0x150] sm:$0xff]
        %v5464 = vld [vmem:[#allocation17 + $0x158] sm:$0xff]
        %v5465 = vld [vmem:[#allocation17 + $0x160] sm:$0xff]
        %v5466 = vld [vmem:[#allocation17 + $0x168] sm:$0xff]
        %v5467 = vld [vmem:[#allocation17 + $0x170] sm:$0xff]
        %v5468 = vld [vmem:[#allocation17 + $0x178] sm:$0xff]
        %v5469 = vld [vmem:[#allocation17 + $0x180] sm:$0xff]
        %v5470 = vld [vmem:[#allocation17 + $0x188] sm:$0xff]
        %v5471 = vld [vmem:[#allocation17 + $0x190] sm:$0xff]
        %v5472 = vld [vmem:[#allocation17 + $0x198] sm:$0xff]
        %v5473 = vld [vmem:[#allocation17 + $0x1a0] sm:$0xff]
        %v5474 = vld [vmem:[#allocation17 + $0x1a8] sm:$0xff]
        %v5475 = vld [vmem:[#allocation17 + $0x1b0] sm:$0xff]
        %v5476 = vld [vmem:[#allocation17 + $0x1b8] sm:$0xff]
        %v5477 = vld [vmem:[#allocation17 + $0x1c0] sm:$0xff]
        %v5478 = vld [vmem:[#allocation17 + $0x1c8] sm:$0xff]
        %v5479 = vld [vmem:[#allocation17 + $0x1d0] sm:$0xff]
        %v5480 = vld [vmem:[#allocation17 + $0x1d8] sm:$0xff]
        %v5481 = vld [vmem:[#allocation17 + $0x1e0] sm:$0xff]
        %v5482 = vld [vmem:[#allocation17 + $0x1e8] sm:$0xff]
        %v5483 = vld [vmem:[#allocation17 + $0x1f0] sm:$0xff]
        %v5484 = vld [vmem:[#allocation17 + $0x1f8] sm:$0xff]
        %v5485 = vld [vmem:[%s12] sm:$0x3]
        %v5487 = vperm.slane %v5485, 0
        %v5488 = vperm.slane %v5485, 1
        %v5555 = vunpack.c.l.b16 %v5421
        %v5556 = vunpack.c.h.b16 %v5421
        %v5557 = vunpack.c.l.b16 %v5422
        %v5558 = vunpack.c.h.b16 %v5422
        %v5559 = vunpack.c.l.b16 %v5423
        %v5560 = vunpack.c.h.b16 %v5423
        %v5561 = vunpack.c.l.b16 %v5424
        %v5562 = vunpack.c.h.b16 %v5424
        %v5563 = vunpack.c.l.b16 %v5425
        %v5564 = vunpack.c.h.b16 %v5425
        %v5565 = vunpack.c.l.b16 %v5426
        %v5566 = vunpack.c.h.b16 %v5426
        %v5567 = vunpack.c.l.b16 %v5427
        %v5568 = vunpack.c.h.b16 %v5427
        %v5569 = vunpack.c.l.b16 %v5428
        %v5570 = vunpack.c.h.b16 %v5428
        %v5571 = vunpack.c.l.b16 %v5429
        %v5572 = vunpack.c.h.b16 %v5429
        %v5573 = vunpack.c.l.b16 %v5430
        %v5574 = vunpack.c.h.b16 %v5430
        %v5575 = vunpack.c.l.b16 %v5431
        %v5576 = vunpack.c.h.b16 %v5431
        %v5577 = vunpack.c.l.b16 %v5432
        %v5578 = vunpack.c.h.b16 %v5432
        %v5579 = vunpack.c.l.b16 %v5433
        %v5580 = vunpack.c.h.b16 %v5433
        %v5581 = vunpack.c.l.b16 %v5434
        %v5582 = vunpack.c.h.b16 %v5434
        %v5583 = vunpack.c.l.b16 %v5435
        %v5584 = vunpack.c.h.b16 %v5435
        %v5585 = vunpack.c.l.b16 %v5436
        %v5586 = vunpack.c.h.b16 %v5436
        %v5587 = vunpack.c.l.b16 %v5437
        %v5588 = vunpack.c.h.b16 %v5437
        %v5589 = vunpack.c.l.b16 %v5438
        %v5590 = vunpack.c.h.b16 %v5438
        %v5591 = vunpack.c.l.b16 %v5439
        %v5592 = vunpack.c.h.b16 %v5439
        %v5593 = vunpack.c.l.b16 %v5440
        %v5594 = vunpack.c.h.b16 %v5440
        %v5595 = vunpack.c.l.b16 %v5441
        %v5596 = vunpack.c.h.b16 %v5441
        %v5597 = vunpack.c.l.b16 %v5442
        %v5598 = vunpack.c.h.b16 %v5442
        %v5599 = vunpack.c.l.b16 %v5443
        %v5600 = vunpack.c.h.b16 %v5443
        %v5601 = vunpack.c.l.b16 %v5444
        %v5602 = vunpack.c.h.b16 %v5444
        %v5603 = vunpack.c.l.b16 %v5445
        %v5604 = vunpack.c.h.b16 %v5445
        %v5605 = vunpack.c.l.b16 %v5446
        %v5606 = vunpack.c.h.b16 %v5446
        %v5607 = vunpack.c.l.b16 %v5447
        %v5608 = vunpack.c.h.b16 %v5447
        %v5609 = vunpack.c.l.b16 %v5448
        %v5610 = vunpack.c.h.b16 %v5448
        %v5611 = vunpack.c.l.b16 %v5449
        %v5612 = vunpack.c.h.b16 %v5449
        %v5613 = vunpack.c.l.b16 %v5450
        %v5614 = vunpack.c.h.b16 %v5450
        %v5615 = vunpack.c.l.b16 %v5451
        %v5616 = vunpack.c.h.b16 %v5451
        %v5617 = vunpack.c.l.b16 %v5452
        %v5618 = vunpack.c.h.b16 %v5452
        %v5619 = vunpack.c.l.b16 %v5453
        %v5620 = vunpack.c.h.b16 %v5453
        %v5621 = vunpack.c.l.b16 %v5454
        %v5622 = vunpack.c.h.b16 %v5454
        %v5623 = vunpack.c.l.b16 %v5455
        %v5624 = vunpack.c.h.b16 %v5455
        %v5625 = vunpack.c.l.b16 %v5456
        %v5626 = vunpack.c.h.b16 %v5456
        %v5627 = vunpack.c.l.b16 %v5457
        %v5628 = vunpack.c.h.b16 %v5457
        %v5629 = vunpack.c.l.b16 %v5458
        %v5630 = vunpack.c.h.b16 %v5458
        %v5631 = vunpack.c.l.b16 %v5459
        %v5632 = vunpack.c.h.b16 %v5459
        %v5633 = vunpack.c.l.b16 %v5460
        %v5634 = vunpack.c.h.b16 %v5460
        %v5635 = vunpack.c.l.b16 %v5461
        %v5636 = vunpack.c.h.b16 %v5461
        %v5637 = vunpack.c.l.b16 %v5462
        %v5638 = vunpack.c.h.b16 %v5462
        %v5639 = vunpack.c.l.b16 %v5463
        %v5640 = vunpack.c.h.b16 %v5463
        %v5641 = vunpack.c.l.b16 %v5464
        %v5642 = vunpack.c.h.b16 %v5464
        %v5643 = vunpack.c.l.b16 %v5465
        %v5644 = vunpack.c.h.b16 %v5465
        %v5645 = vunpack.c.l.b16 %v5466
        %v5646 = vunpack.c.h.b16 %v5466
        %v5647 = vunpack.c.l.b16 %v5467
        %v5648 = vunpack.c.h.b16 %v5467
        %v5649 = vunpack.c.l.b16 %v5468
        %v5650 = vunpack.c.h.b16 %v5468
        %v5651 = vunpack.c.l.b16 %v5469
        %v5652 = vunpack.c.h.b16 %v5469
        %v5653 = vunpack.c.l.b16 %v5470
        %v5654 = vunpack.c.h.b16 %v5470
        %v5655 = vunpack.c.l.b16 %v5471
        %v5656 = vunpack.c.h.b16 %v5471
        %v5657 = vunpack.c.l.b16 %v5472
        %v5658 = vunpack.c.h.b16 %v5472
        %v5659 = vunpack.c.l.b16 %v5473
        %v5660 = vunpack.c.h.b16 %v5473
        %v5661 = vunpack.c.l.b16 %v5474
        %v5662 = vunpack.c.h.b16 %v5474
        %v5663 = vunpack.c.l.b16 %v5475
        %v5664 = vunpack.c.h.b16 %v5475
        %v5665 = vunpack.c.l.b16 %v5476
        %v5666 = vunpack.c.h.b16 %v5476
        %v5667 = vunpack.c.l.b16 %v5477
        %v5668 = vunpack.c.h.b16 %v5477
        %v5669 = vunpack.c.l.b16 %v5478
        %v5670 = vunpack.c.h.b16 %v5478
        %v5671 = vunpack.c.l.b16 %v5479
        %v5672 = vunpack.c.h.b16 %v5479
        %v5673 = vunpack.c.l.b16 %v5480
        %v5674 = vunpack.c.h.b16 %v5480
        %v5675 = vunpack.c.l.b16 %v5481
        %v5676 = vunpack.c.h.b16 %v5481
        %v5677 = vunpack.c.l.b16 %v5482
        %v5678 = vunpack.c.h.b16 %v5482
        %v5679 = vunpack.c.l.b16 %v5483
        %v5680 = vunpack.c.h.b16 %v5483
        %v5681 = vunpack.c.l.b16 %v5484
        %v5682 = vunpack.c.h.b16 %v5484
        %v5683 = vpack.c.b16 %v5557, %v5555
        %v5684 = vpack.c.b16 %v5558, %v5556
        %v5685 = vpack.c.b16 %v5561, %v5559
        %v5686 = vpack.c.b16 %v5562, %v5560
        %v5687 = vpack.c.b16 %v5565, %v5563
        %v5688 = vpack.c.b16 %v5566, %v5564
        %v5689 = vpack.c.b16 %v5569, %v5567
        %v5690 = vpack.c.b16 %v5570, %v5568
        %v5691 = vpack.c.b16 %v5573, %v5571
        %v5692 = vpack.c.b16 %v5574, %v5572
        %v5693 = vpack.c.b16 %v5577, %v5575
        %v5694 = vpack.c.b16 %v5578, %v5576
        %v5695 = vpack.c.b16 %v5581, %v5579
        %v5696 = vpack.c.b16 %v5582, %v5580
        %v5697 = vpack.c.b16 %v5585, %v5583
        %v5698 = vpack.c.b16 %v5586, %v5584
        %v5699 = vpack.c.b16 %v5589, %v5587
        %v5700 = vpack.c.b16 %v5590, %v5588
        %v5701 = vpack.c.b16 %v5593, %v5591
        %v5702 = vpack.c.b16 %v5594, %v5592
        %v5703 = vpack.c.b16 %v5597, %v5595
        %v5704 = vpack.c.b16 %v5598, %v5596
        %v5705 = vpack.c.b16 %v5601, %v5599
        %v5706 = vpack.c.b16 %v5602, %v5600
        %v5707 = vpack.c.b16 %v5605, %v5603
        %v5708 = vpack.c.b16 %v5606, %v5604
        %v5709 = vpack.c.b16 %v5609, %v5607
        %v5710 = vpack.c.b16 %v5610, %v5608
        %v5711 = vpack.c.b16 %v5613, %v5611
        %v5712 = vpack.c.b16 %v5614, %v5612
        %v5713 = vpack.c.b16 %v5617, %v5615
        %v5714 = vpack.c.b16 %v5618, %v5616
        %v5715 = vpack.c.b16 %v5621, %v5619
        %v5716 = vpack.c.b16 %v5622, %v5620
        %v5717 = vpack.c.b16 %v5625, %v5623
        %v5718 = vpack.c.b16 %v5626, %v5624
        %v5719 = vpack.c.b16 %v5629, %v5627
        %v5720 = vpack.c.b16 %v5630, %v5628
        %v5721 = vpack.c.b16 %v5633, %v5631
        %v5722 = vpack.c.b16 %v5634, %v5632
        %v5723 = vpack.c.b16 %v5637, %v5635
        %v5724 = vpack.c.b16 %v5638, %v5636
        %v5725 = vpack.c.b16 %v5641, %v5639
        %v5726 = vpack.c.b16 %v5642, %v5640
        %v5727 = vpack.c.b16 %v5645, %v5643
        %v5728 = vpack.c.b16 %v5646, %v5644
        %v5729 = vpack.c.b16 %v5649, %v5647
        %v5730 = vpack.c.b16 %v5650, %v5648
        %v5731 = vpack.c.b16 %v5653, %v5651
        %v5732 = vpack.c.b16 %v5654, %v5652
        %v5733 = vpack.c.b16 %v5657, %v5655
        %v5734 = vpack.c.b16 %v5658, %v5656
        %v5735 = vpack.c.b16 %v5661, %v5659
        %v5736 = vpack.c.b16 %v5662, %v5660
        %v5737 = vpack.c.b16 %v5665, %v5663
        %v5738 = vpack.c.b16 %v5666, %v5664
        %v5739 = vpack.c.b16 %v5669, %v5667
        %v5740 = vpack.c.b16 %v5670, %v5668
        %v5741 = vpack.c.b16 %v5673, %v5671
        %v5742 = vpack.c.b16 %v5674, %v5672
        %v5743 = vpack.c.b16 %v5677, %v5675
        %v5744 = vpack.c.b16 %v5678, %v5676
        %v5745 = vpack.c.b16 %v5681, %v5679
        %v5746 = vpack.c.b16 %v5682, %v5680
        %5811 = vmatpush.bf16.msra.mxu0 %v5697
        %5812 = vmatpush.bf16.msra.mxu0 %v5695
        %5813 = vmatpush.bf16.msra.mxu0 %v5693
        %5814 = vmatpush.bf16.msra.mxu0 %v5691
        %5815 = vmatpush.bf16.msra.mxu0 %v5689
        %5816 = vmatpush.bf16.msra.mxu0 %v5687
        %5817 = vmatpush.bf16.msra.mxu0 %v5685
        %5818 = vmatpush.bf16.msra.mxu0 %v5683
        %5819 = vmatmul.bf16.gmra.mxu0 %v5417
        %v5820 = vpop.f32.mrf.mxu0
        %v5821 = vadd.f32 %v5487, %v5820
        %v5822 = vpop.f32.mrf.mxu0
        %5823 = vdwg.mxu0
        %5824 = vmatpush.bf16.msra.mxu0 %v5713
        %5825 = vmatpush.bf16.msra.mxu0 %v5711
        %5826 = vmatpush.bf16.msra.mxu0 %v5709
        %5827 = vmatpush.bf16.msra.mxu0 %v5707
        %5828 = vmatpush.bf16.msra.mxu0 %v5705
        %5829 = vmatpush.bf16.msra.mxu0 %v5703
        %5830 = vmatpush.bf16.msra.mxu0 %v5701
        %5831 = vmatpush.bf16.msra.mxu0 %v5699
        %5832 = vmatmul.bf16.gmra.mxu0 %v5418
        %v5833 = vpop.f32.mrf.mxu0
        %v5834 = vadd.f32 %v5821, %v5833
        %v5835 = vpop.f32.mrf.mxu0
        %5836 = vdwg.mxu0
        %5837 = vmatpush.bf16.msra.mxu0 %v5729
        %5838 = vmatpush.bf16.msra.mxu0 %v5727
        %5839 = vmatpush.bf16.msra.mxu0 %v5725
        %5840 = vmatpush.bf16.msra.mxu0 %v5723
        %5841 = vmatpush.bf16.msra.mxu0 %v5721
        %5842 = vmatpush.bf16.msra.mxu0 %v5719
        %5843 = vmatpush.bf16.msra.mxu0 %v5717
        %5844 = vmatpush.bf16.msra.mxu0 %v5715
        %5845 = vmatmul.bf16.gmra.mxu0 %v5419
        %v5846 = vpop.f32.mrf.mxu0
        %v5847 = vadd.f32 %v5834, %v5846
        %v5848 = vpop.f32.mrf.mxu0
        %5849 = vdwg.mxu0
        %5850 = vmatpush.bf16.msra.mxu0 %v5745
        %5851 = vmatpush.bf16.msra.mxu0 %v5743
        %5852 = vmatpush.bf16.msra.mxu0 %v5741
        %5853 = vmatpush.bf16.msra.mxu0 %v5739
        %5854 = vmatpush.bf16.msra.mxu0 %v5737
        %5855 = vmatpush.bf16.msra.mxu0 %v5735
        %5856 = vmatpush.bf16.msra.mxu0 %v5733
        %5857 = vmatpush.bf16.msra.mxu0 %v5731
        %5858 = vmatmul.bf16.gmra.mxu0 %v5420
        %v5859 = vpop.f32.mrf.mxu0
        %v5860 = vadd.f32 %v5847, %v5859
        %v5861 = vpop.f32.mrf.mxu0
        %5862 = vdwg.mxu0
        %5863 = vmatpush.bf16.msra.mxu0 %v5698
        %5864 = vmatpush.bf16.msra.mxu0 %v5696
        %5865 = vmatpush.bf16.msra.mxu0 %v5694
        %5866 = vmatpush.bf16.msra.mxu0 %v5692
        %5867 = vmatpush.bf16.msra.mxu0 %v5690
        %5868 = vmatpush.bf16.msra.mxu0 %v5688
        %5869 = vmatpush.bf16.msra.mxu0 %v5686
        %5870 = vmatpush.bf16.msra.mxu0 %v5684
        %5871 = vmatmul.bf16.gmra.mxu0 %v5417
        %v5872 = vpop.f32.mrf.mxu0
        %v5873 = vadd.f32 %v5488, %v5872
        %v5874 = vpop.f32.mrf.mxu0
        %5875 = vdwg.mxu0
        %5876 = vmatpush.bf16.msra.mxu0 %v5714
        %5877 = vmatpush.bf16.msra.mxu0 %v5712
        %5878 = vmatpush.bf16.msra.mxu0 %v5710
        %5879 = vmatpush.bf16.msra.mxu0 %v5708
        %5880 = vmatpush.bf16.msra.mxu0 %v5706
        %5881 = vmatpush.bf16.msra.mxu0 %v5704
        %5882 = vmatpush.bf16.msra.mxu0 %v5702
        %5883 = vmatpush.bf16.msra.mxu0 %v5700
        %5884 = vmatmul.bf16.gmra.mxu0 %v5418
        %v5885 = vpop.f32.mrf.mxu0
        %v5886 = vadd.f32 %v5873, %v5885
        %v5887 = vpop.f32.mrf.mxu0
        %5888 = vdwg.mxu0
        %5889 = vmatpush.bf16.msra.mxu0 %v5730
        %5890 = vmatpush.bf16.msra.mxu0 %v5728
        %5891 = vmatpush.bf16.msra.mxu0 %v5726
        %5892 = vmatpush.bf16.msra.mxu0 %v5724
        %5893 = vmatpush.bf16.msra.mxu0 %v5722
        %5894 = vmatpush.bf16.msra.mxu0 %v5720
        %5895 = vmatpush.bf16.msra.mxu0 %v5718
        %5896 = vmatpush.bf16.msra.mxu0 %v5716
        %5897 = vmatmul.bf16.gmra.mxu0 %v5419
        %v5898 = vpop.f32.mrf.mxu0
        %v5899 = vadd.f32 %v5886, %v5898
        %v5900 = vpop.f32.mrf.mxu0
        %5901 = vdwg.mxu0
        %5902 = vmatpush.bf16.msra.mxu0 %v5746
        %5903 = vmatpush.bf16.msra.mxu0 %v5744
        %5904 = vmatpush.bf16.msra.mxu0 %v5742
        %5905 = vmatpush.bf16.msra.mxu0 %v5740
        %5906 = vmatpush.bf16.msra.mxu0 %v5738
        %5907 = vmatpush.bf16.msra.mxu0 %v5736
        %5908 = vmatpush.bf16.msra.mxu0 %v5734
        %5909 = vmatpush.bf16.msra.mxu0 %v5732
        %5910 = vmatmul.bf16.gmra.mxu0 %v5420
        %v5911 = vpop.f32.mrf.mxu0
        %v5912 = vadd.f32 %v5899, %v5911
        %v5913 = vpop.f32.mrf.mxu0
        %5914 = vdwg.mxu0
        %v5915 = vmax.f32 %v5860, 0.0
        %v5916 = vmax.f32 %v5912, 0.0
        %v5917 = vpack.c.bf16 %v5915, %v5915
        %v5918 = vpack.c.bf16 %v5916, %v5916
        %v5919 = vld [vmem:[#allocation19] sm:$0xf]
        %v5920 = vld [vmem:[#allocation19 + $0x4] sm:$0xf]
        %v5921 = vld [vmem:[#allocation19 + $0x8] sm:$0xf]
        %v5922 = vld [vmem:[#allocation19 + $0xc] sm:$0xf]
        %v5923 = vld [vmem:[#allocation19 + $0x10] sm:$0xf]
        %v5924 = vld [vmem:[#allocation19 + $0x14] sm:$0xf]
        %v5925 = vld [vmem:[#allocation19 + $0x18] sm:$0xf]
        %v5926 = vld [vmem:[#allocation19 + $0x1c] sm:$0xf]
        %v5927 = vld [vmem:[#allocation19 + $0x20] sm:$0xf]
        %v5928 = vld [vmem:[#allocation19 + $0x24] sm:$0xf]
        %v5929 = vld [vmem:[#allocation19 + $0x28] sm:$0xf]
        %v5930 = vld [vmem:[#allocation19 + $0x2c] sm:$0xf]
        %v5931 = vld [vmem:[#allocation19 + $0x30] sm:$0xf]
        %v5932 = vld [vmem:[#allocation19 + $0x34] sm:$0xf]
        %v5933 = vld [vmem:[#allocation19 + $0x38] sm:$0xf]
        %v5934 = vld [vmem:[#allocation19 + $0x3c] sm:$0xf]
        %v5935 = vld [vmem:[#allocation19 + $0x40] sm:$0xf]
        %v5936 = vld [vmem:[#allocation19 + $0x44] sm:$0xf]
        %v5937 = vld [vmem:[#allocation19 + $0x48] sm:$0xf]
        %v5938 = vld [vmem:[#allocation19 + $0x4c] sm:$0xf]
        %v5939 = vld [vmem:[#allocation19 + $0x50] sm:$0xf]
        %v5940 = vld [vmem:[#allocation19 + $0x54] sm:$0xf]
        %v5941 = vld [vmem:[#allocation19 + $0x58] sm:$0xf]
        %v5942 = vld [vmem:[#allocation19 + $0x5c] sm:$0xf]
        %v5943 = vld [vmem:[#allocation19 + $0x60] sm:$0xf]
        %v5944 = vld [vmem:[#allocation19 + $0x64] sm:$0xf]
        %v5945 = vld [vmem:[#allocation19 + $0x68] sm:$0xf]
        %v5946 = vld [vmem:[#allocation19 + $0x6c] sm:$0xf]
        %v5947 = vld [vmem:[#allocation19 + $0x70] sm:$0xf]
        %v5948 = vld [vmem:[#allocation19 + $0x74] sm:$0xf]
        %v5949 = vld [vmem:[#allocation19 + $0x78] sm:$0xf]
        %v5950 = vld [vmem:[#allocation19 + $0x7c] sm:$0xf]
        %v5951 = vld [vmem:[%s14] sm:$0x1]
        %v5953 = vperm.slane %v5951, 0
        %v5987 = vunpack.c.l.b16 %v5919
        %v5988 = vunpack.c.l.b16 %v5920
        %v5989 = vunpack.c.l.b16 %v5921
        %v5990 = vunpack.c.l.b16 %v5922
        %v5991 = vunpack.c.l.b16 %v5923
        %v5992 = vunpack.c.l.b16 %v5924
        %v5993 = vunpack.c.l.b16 %v5925
        %v5994 = vunpack.c.l.b16 %v5926
        %v5995 = vunpack.c.l.b16 %v5927
        %v5996 = vunpack.c.l.b16 %v5928
        %v5997 = vunpack.c.l.b16 %v5929
        %v5998 = vunpack.c.l.b16 %v5930
        %v5999 = vunpack.c.l.b16 %v5931
        %v6000 = vunpack.c.l.b16 %v5932
        %v6001 = vunpack.c.l.b16 %v5933
        %v6002 = vunpack.c.l.b16 %v5934
        %v6003 = vunpack.c.l.b16 %v5935
        %v6004 = vunpack.c.l.b16 %v5936
        %v6005 = vunpack.c.l.b16 %v5937
        %v6006 = vunpack.c.l.b16 %v5938
        %v6007 = vunpack.c.l.b16 %v5939
        %v6008 = vunpack.c.l.b16 %v5940
        %v6009 = vunpack.c.l.b16 %v5941
        %v6010 = vunpack.c.l.b16 %v5942
        %v6011 = vunpack.c.l.b16 %v5943
        %v6012 = vunpack.c.l.b16 %v5944
        %v6013 = vunpack.c.l.b16 %v5945
        %v6014 = vunpack.c.l.b16 %v5946
        %v6015 = vunpack.c.l.b16 %v5947
        %v6016 = vunpack.c.l.b16 %v5948
        %v6017 = vunpack.c.l.b16 %v5949
        %v6018 = vunpack.c.l.b16 %v5950
        %v6019 = vpack.c.b16 %v5988, %v5987
        %v6020 = vpack.c.b16 %v5990, %v5989
        %v6021 = vpack.c.b16 %v5992, %v5991
        %v6022 = vpack.c.b16 %v5994, %v5993
        %v6023 = vpack.c.b16 %v5996, %v5995
        %v6024 = vpack.c.b16 %v5998, %v5997
        %v6025 = vpack.c.b16 %v6000, %v5999
        %v6026 = vpack.c.b16 %v6002, %v6001
        %v6027 = vpack.c.b16 %v6004, %v6003
        %v6028 = vpack.c.b16 %v6006, %v6005
        %v6029 = vpack.c.b16 %v6008, %v6007
        %v6030 = vpack.c.b16 %v6010, %v6009
        %v6031 = vpack.c.b16 %v6012, %v6011
        %v6032 = vpack.c.b16 %v6014, %v6013
        %v6033 = vpack.c.b16 %v6016, %v6015
        %v6034 = vpack.c.b16 %v6018, %v6017
        %6051 = vmatpush.bf16.msra.mxu0 %v6026
        %6052 = vmatpush.bf16.msra.mxu0 %v6025
        %6053 = vmatpush.bf16.msra.mxu0 %v6024
        %6054 = vmatpush.bf16.msra.mxu0 %v6023
        %6055 = vmatpush.bf16.msra.mxu0 %v6022
        %6056 = vmatpush.bf16.msra.mxu0 %v6021
        %6057 = vmatpush.bf16.msra.mxu0 %v6020
        %6058 = vmatpush.bf16.msra.mxu0 %v6019
        %6059 = vmatmul.bf16.gmra.mxu0 %v5917
        %v6060 = vpop.f32.mrf.mxu0
        %v6061 = vadd.f32 %v5953, %v6060
        %v6062 = vpop.f32.mrf.mxu0
        %6063 = vdwg.mxu0
        %6064 = vmatpush.bf16.msra.mxu0 %v6034
        %6065 = vmatpush.bf16.msra.mxu0 %v6033
        %6066 = vmatpush.bf16.msra.mxu0 %v6032
        %6067 = vmatpush.bf16.msra.mxu0 %v6031
        %6068 = vmatpush.bf16.msra.mxu0 %v6030
        %6069 = vmatpush.bf16.msra.mxu0 %v6029
        %6070 = vmatpush.bf16.msra.mxu0 %v6028
        %6071 = vmatpush.bf16.msra.mxu0 %v6027
        %6072 = vmatmul.bf16.gmra.mxu0 %v5918
        %v6073 = vpop.f32.mrf.mxu0
        %v6074 = vadd.f32 %v6061, %v6073
        %v6075 = vpop.f32.mrf.mxu0
        %6076 = vdwg.mxu0
        %v6077 = vmax.f32 %v6074, 0.0
        %v6078 = vpack.c.bf16 %v6077, %v6077
        %v6079 = vld [vmem:[#allocation20] sm:$0xf]
        %v6080 = vld [vmem:[#allocation20 + $0x4] sm:$0xf]
        %v6081 = vld [vmem:[#allocation20 + $0x8] sm:$0xf]
        %v6082 = vld [vmem:[#allocation20 + $0xc] sm:$0xf]
        %v6083 = vld [vmem:[#allocation20 + $0x10] sm:$0xf]
        %v6084 = vld [vmem:[#allocation20 + $0x14] sm:$0xf]
        %v6085 = vld [vmem:[#allocation20 + $0x18] sm:$0xf]
        %v6086 = vld [vmem:[#allocation20 + $0x1c] sm:$0xf]
        %v6087 = vld [vmem:[#allocation20 + $0x20] sm:$0xf]
        %v6088 = vld [vmem:[#allocation20 + $0x24] sm:$0xf]
        %v6089 = vld [vmem:[#allocation20 + $0x28] sm:$0xf]
        %v6090 = vld [vmem:[#allocation20 + $0x2c] sm:$0xf]
        %v6091 = vld [vmem:[#allocation20 + $0x30] sm:$0xf]
        %v6092 = vld [vmem:[#allocation20 + $0x34] sm:$0xf]
        %v6093 = vld [vmem:[#allocation20 + $0x38] sm:$0xf]
        %v6094 = vld [vmem:[#allocation20 + $0x3c] sm:$0xf]
        %v6095 = vld [vmem:[%s16] sm:$0x1]
        %v6097 = vperm.slane %v6095, 0
        %v6115 = vunpack.c.l.b16 %v6079
        %v6116 = vunpack.c.l.b16 %v6080
        %v6117 = vunpack.c.l.b16 %v6081
        %v6118 = vunpack.c.l.b16 %v6082
        %v6119 = vunpack.c.l.b16 %v6083
        %v6120 = vunpack.c.l.b16 %v6084
        %v6121 = vunpack.c.l.b16 %v6085
        %v6122 = vunpack.c.l.b16 %v6086
        %v6123 = vunpack.c.l.b16 %v6087
        %v6124 = vunpack.c.l.b16 %v6088
        %v6125 = vunpack.c.l.b16 %v6089
        %v6126 = vunpack.c.l.b16 %v6090
        %v6127 = vunpack.c.l.b16 %v6091
        %v6128 = vunpack.c.l.b16 %v6092
        %v6129 = vunpack.c.l.b16 %v6093
        %v6130 = vunpack.c.l.b16 %v6094
        %v6131 = vpack.c.b16 %v6116, %v6115
        %v6132 = vpack.c.b16 %v6118, %v6117
        %v6133 = vpack.c.b16 %v6120, %v6119
        %v6134 = vpack.c.b16 %v6122, %v6121
        %v6135 = vpack.c.b16 %v6124, %v6123
        %v6136 = vpack.c.b16 %v6126, %v6125
        %v6137 = vpack.c.b16 %v6128, %v6127
        %v6138 = vpack.c.b16 %v6130, %v6129
        %6147 = vmatpush.bf16.msra.mxu0 %v6138
        %6148 = vmatpush.bf16.msra.mxu0 %v6137
        %6149 = vmatpush.bf16.msra.mxu0 %v6136
        %6150 = vmatpush.bf16.msra.mxu0 %v6135
        %6151 = vmatpush.bf16.msra.mxu0 %v6134
        %6152 = vmatpush.bf16.msra.mxu0 %v6133
        %6153 = vmatpush.bf16.msra.mxu0 %v6132
        %6154 = vmatpush.bf16.msra.mxu0 %v6131
        %6155 = vmatmul.bf16.gmra.mxu0 %v6078
        %v6156 = vpop.f32.mrf.mxu0
        %v6157 = vadd.f32 %v6097, %v6156
        %v6158 = vpop.f32.mrf.mxu0
        %6159 = vdwg.mxu0
        %6160 = vst [vmem:[%s741] sm:$0xff] %v6157
        %s6161 = sand.u32 %s410, 1
        %s6162 = scalar_lea.sflag [#allocation4], %s6161
        %s6163 = sand.u32 %s410, 1
        %s6164 = smul.addr %s6163, 8
        %s6165 = scalar_lea.vmem [#allocation22], %s6164
        // Predicated region
        $region137: #{_forward.1} parent=87 // pred_check
          %p6166 = pneg %p420
        $region138: #{_forward.1} parent=87 // pred_check_branch
          %6168 = sbr.rel (%p6166) target = $region140
        $region139: #{_forward.1} parent=87 // pred_region
          %6170 = vsyncadd %s6162, 0
          %s6171 = smul.addr %s40, 8
          %s6172 = scalar_lea.hbm %s17, %s6171
          %s6174 = sshll.u32 %s6165, 4
          %s6175 = int_to_ptr.vmem [resolvable:$true] %s6174
          %s6176 = sshll.u32 %s6172, 4
          %s6177 = int_to_ptr.hbm [resolvable:$true] %s6176
          %6179 = dma.vmem_to_hbm [thread:$0]  %s6175, 128, %s6177, %s6162
        $region140: #{_forward.1} parent=87 // pred_fallthru
          _
      $region88: #{_forward.1} parent=5 // pred_fallthru
        _
      %p6180 = scmp.le.s32.totalorder 2, %s35
      // Predicated region
      $region141: #{_forward.1} parent=5 // pred_check
        %p6181 = pneg %p6180
      $region142: #{_forward.1} parent=5 // pred_check_branch
        %6183 = sbr.rel (%p6181) target = $region144
      $region143: #{_forward.1} parent=5 // pred_region
        %s6184 = ssub.s32 %s35, 2
        // Predicated region
        $region145: #{_forward.1} parent=143 // pred_check
          %p6185 = pneg %p426
        $region146: #{_forward.1} parent=143 // pred_check_branch
          %6187 = sbr.rel (%p6185) target = $region148
        $region147: #{_forward.1} parent=143 // pred_region
          %s6188 = sand.u32 %s411, 1
          %s6189 = scalar_lea.sflag [#allocation4], %s6188
          %s6190 = sand.u32 %s411, 1
          %s6191 = smul.addr %s6190, 8
          %s6192 = scalar_lea.vmem [#allocation22], %s6191
          %6194 = dma.done %s6189, 128
        $region148: #{_forward.1} parent=143 // pred_fallthru
          _
      $region144: #{_forward.1} parent=5 // pred_fallthru
        _
    $region6: #{_forward.1} parent=1 // loop_footer
      %s39 = sadd.s32 1, %s35
    $region7: #{_forward.1} parent=1 // loop_footer_branch
      %34 = sbr.rel target = $region3
    $region8: #{_forward.1} parent=1 // loop_exit
      _
    %6195 = vsyncpa [#allocation3], 1
    %s6196 = scalar_lea.sflag [#allocation3], 1
    %6197 = vsyncpa %s6196, 1
    %6198 = vsyncpa [#allocation6], 1
    %6199 = vsyncpa [#allocation9], 1
    %6200 = vsyncpa [#allocation12], 1
    %6201 = vsyncpa [#allocation15], 1
    %6202 = vsyncpa [#allocation18], 1
    %6203 = vsyncpa [#allocation21], 1
    %6204 = vsyncpa [#allocation4], 1
    %s6205 = scalar_lea.sflag [#allocation4], 1
    %6206 = vsyncpa %s6205, 1

</llo_original>
